<compile_context>
chip_gen: v7x
topology: tpu7x:2x2x1
jax: 0.10.0
libtpu: 0.0.40
codegen_flags: <defaults>
</compile_context>

<pallas_src>
import math
import functools
import numpy as np
import jax
import jax.numpy as jnp
from jax.experimental import pallas as pl
from jax.experimental.pallas import tpu as pltpu

LANE = 128
NEG_INF = -1e30
_VMEM_LIMIT = 48 * 1024 * 1024   # leave pipeline headroom under v7x's 64 MiB physical VMEM


def _round_up(x, m):
    return ((x + m - 1) // m) * m


def _pick_row_tile(rows, target=512):
    """Largest row tile <= target that divides `rows` and is a multiple of 8
    (falls back to a single full block for small/awkward row counts)."""
    if rows <= target:
        return rows
    for t in range(target, 7, -8):          # 512, 504, ... multiples of 8
        if rows % t == 0:
            return t
    return rows


def _pick_time_tile(T, target=32):
    """Largest multiple-of-8 divisor of T that is <= target, else the full T."""
    if T <= target:
        return T
    best = T
    for t in range(8, target + 1, 8):
        if T % t == 0:
            best = t
    return best


# ----------------------------- Pallas kernels --------------------------------
def input_proj_kernel(x_ref, w_ref, b_ref, o_ref):
    """gates_x tile = x(bf16) @ W_ih(bf16) + (b_ih + b_hh)(f32).  Gridded over row tiles."""
    o_ref[...] = (jnp.dot(x_ref[...], w_ref[...],
                          preferred_element_type=jnp.float32)
                  + b_ref[...]).astype(o_ref.dtype)


def lstm_recurrence_kernel(gx_ref, h0_ref, c0_ref, whh_ref,
                           hall_ref, hn_ref, cn_ref, h_st, c_st):
    """One T-tile of the serial LSTM recurrence.

    gx_ref  : (tT, B, 4*Hp) f32   precomputed input gates for this T tile (bias folded in)
    h0_ref  : (B, Hp)        f32  initial hidden (used only at grid step 0)
    c0_ref  : (B, Hp)        f32
    whh_ref : (Hp, 4*Hp)     bf16 gate-blocked recurrent weight (constant block index)
    hall_ref: (B, tT, Hp)    f32  hidden states, stored BATCH-major
    hn_ref  : (B, Hp)        f32  final hidden (written at the last grid step)
    cn_ref  : (B, Hp)        f32  final cell
    h_st/c_st: (B, Hp) f32 persistent VMEM scratch carrying state across T tiles
    """
    tT = gx_ref.shape[0]
    Hp = h0_ref.shape[-1]

    @pl.when(pl.program_id(0) == 0)
    def _():
        h_st[...] = h0_ref[...]
        c_st[...] = c0_ref[...]

    h = h_st[...]
    c = c_st[...]
    # Static loop over the (bounded) T tile = bounded unroll; all hall stores use
    # static indices.  Whh stays in VMEM — read inside each step, not hoisted to vregs.
    for t in range(tT):
        gates = gx_ref[t] + jnp.dot(h.astype(jnp.bfloat16), whh_ref[...],
                                    preferred_element_type=jnp.float32)
        # Each gate block is a full 128-lane-aligned slice (Hp % 128 == 0).
        i_g = jax.nn.sigmoid(gates[:, 0 * Hp:1 * Hp])
        f_g = jax.nn.sigmoid(gates[:, 1 * Hp:2 * Hp])
        g_g = jnp.tanh(gates[:, 2 * Hp:3 * Hp])
        o_g = jax.nn.sigmoid(gates[:, 3 * Hp:4 * Hp])
        c = f_g * c + i_g * g_g
        h = o_g * jnp.tanh(c)
        hall_ref[:, t, :] = h          # batch-major store; no XLA transpose later

    h_st[...] = h
    c_st[...] = c

    @pl.when(pl.program_id(0) == pl.num_programs(0) - 1)
    def _():
        hn_ref[...] = h
        cn_ref[...] = c

    # TODO(synk): on v7x, shard the batch across the two TensorCores (leading "parallel"
    # grid axis over B tiles, per-core h/c scratch) to ~halve the serial phase.


def proj_logsoftmax_kernel(h_ref, w_ref, b_ref, o_ref):
    """logits tile = h(bf16) @ W_out(bf16) + b_out(f32); lane-wise log-softmax in f32.

    Padded vocab lanes carry a -1e30 bias, so exp() underflows to 0 and they do
    not perturb the softmax of the real vocabulary columns.
    """
    logits = (jnp.dot(h_ref[...].astype(jnp.bfloat16), w_ref[...],
                      preferred_element_type=jnp.float32) + b_ref[...])
    m = jnp.max(logits, axis=-1, keepdims=True)
    e = jnp.exp(logits - m)
    lse = jnp.log(jnp.sum(e, axis=-1, keepdims=True)) + m
    o_ref[...] = (logits - lse).astype(o_ref.dtype)
    # TODO(synk): for very large vocab on v7x (W_out > VMEM), tile Vp with a 2-D grid
    # and an online max/LSE scratch (two-sweep log-softmax) + single-buffered weights.


# --------------------------- parameter re-layout ------------------------------
def _gate_pad_cols(w, H, Hp):
    """(rows, 4H) -> (rows, 4*Hp): gate g's columns land at [g*Hp, g*Hp + H)."""
    blocks = [jnp.pad(w[:, g * H:(g + 1) * H], ((0, 0), (0, Hp - H)))
              for g in range(4)]
    return jnp.concatenate(blocks, axis=1)


def prepare_params(raw):
    """One-time (init/load-time) padding, gate re-layout, and bf16 casts.

    Hoisted out of the jitted forward so W_ih / W_hh / W_out are never
    re-materialized in HBM on the hot path.
    """
    emb = raw["embedding"]                  # (Vocab, E) f32
    wih_t = raw["wih_t"]                    # (E, 4H)
    whh_t = raw["whh_t"]                    # (H, 4H)
    bias = raw["bias"]                      # (1, 4H)
    wout_t = raw["wout_t"]                  # (H, Vocab)
    bout = raw["bout"]                      # (1, Vocab)

    H = whh_t.shape[0]
    V = wout_t.shape[1]
    Hp = _round_up(H, LANE)
    Vp = _round_up(V, LANE)

    wih_p = _gate_pad_cols(wih_t, H, Hp).astype(jnp.bfloat16)                 # (E, 4Hp)
    whh_p = _gate_pad_cols(jnp.pad(whh_t, ((0, Hp - H), (0, 0))), H, Hp)      # (Hp, 4Hp)
    whh_p = whh_p.astype(jnp.bfloat16)
    bias_p = _gate_pad_cols(bias, H, Hp)                                      # (1, 4Hp) f32
    wout_p = jnp.pad(wout_t, ((0, Hp - H), (0, Vp - V))).astype(jnp.bfloat16) # (Hp, Vp)
    bout_p = jnp.pad(bout, ((0, 0), (0, Vp - V)), constant_values=NEG_INF)    # (1, Vp) f32

    return {
        "emb_bf16": emb.astype(jnp.bfloat16),   # gather bf16 rows directly (halves BW)
        "wih_p": wih_p, "whh_p": whh_p, "bias_p": bias_p,
        "wout_p": wout_p, "bout_p": bout_p,
    }


# ------------------------------ JAX wrapper ----------------------------------
@functools.partial(jax.jit, static_argnames=("hidden_dim", "vocab_size", "need_hidden"))
def lstm_generator_forward(params, inp, hidden, *, hidden_dim, vocab_size,
                           need_hidden=False):
    """Mirrors LSTMGenerator.forward.

    inp    : (B, T) or (B,) int32 token ids
    hidden : (h, c), each (1, B, H)
    returns pred (B*T, V) and optionally hidden (h_n, c_n), each (1, B, H)
    """
    emb_table = params["emb_bf16"]             # (Vocab, E) bf16
    wih_p = params["wih_p"]                    # (E, 4Hp)  bf16
    whh_p = params["whh_p"]                    # (Hp, 4Hp) bf16
    bias_p = params["bias_p"]                  # (1, 4Hp)  f32
    wout_p = params["wout_p"]                  # (Hp, Vp)  bf16
    bout_p = params["bout_p"]                  # (1, Vp)   f32

    if inp.ndim == 1:                          # emb.unsqueeze(1) in PyTorch
        inp = inp[:, None]
    B, T = inp.shape
    E = emb_table.shape[1]
    H = hidden_dim
    V = vocab_size
    Hp = whh_p.shape[0]
    Vp = wout_p.shape[1]

    # Embedding gather directly in time-major row order (rows = (t, b)).
    tok_tm = jnp.transpose(inp, (1, 0)).reshape(T * B)
    emb2d = jnp.take(emb_table, tok_tm, axis=0)                # (T*B, E) bf16

    # ---- Phase 1: hoisted input projection (parallel over large row tiles) ----
    rows_tb = T * B
    rt_in = _pick_row_tile(rows_tb)
    gx2d = pl.pallas_call(
        input_proj_kernel,
        out_shape=jax.ShapeDtypeStruct((rows_tb, 4 * Hp), jnp.float32),
        grid=(rows_tb // rt_in,),
        in_specs=[pl.BlockSpec((rt_in, E), lambda i: (i, 0)),
                  pl.BlockSpec((E, 4 * Hp), lambda i: (0, 0)),
                  pl.BlockSpec((1, 4 * Hp), lambda i: (0, 0))],
        out_specs=pl.BlockSpec((rt_in, 4 * Hp), lambda i: (i, 0)),
        compiler_params=pltpu.CompilerParams(
            dimension_semantics=("parallel",),
            vmem_limit_bytes=_VMEM_LIMIT),
    )(emb2d, wih_p, bias_p)
    gx = gx2d.reshape(T, B, 4 * Hp)                            # (T, B, 4Hp) f32
    # TODO(synk): optionally emit gx in bf16 to halve its HBM round trip; kept f32
    # since gate pre-activations feed saturating nonlinearities.

    # ---- Phase 2: serial recurrence, blocked over T with persistent h/c scratch ----
    h0 = jnp.pad(hidden[0][0], ((0, 0), (0, Hp - H)))          # (B, Hp) f32
    c0 = jnp.pad(hidden[1][0], ((0, 0), (0, Hp - H)))          # (B, Hp) f32
    tT = _pick_time_tile(T)
    hall, hn_p, cn_p = pl.pallas_call(
        lstm_recurrence_kernel,
        out_shape=(jax.ShapeDtypeStruct((B, T, Hp), jnp.float32),   # batch-major
                   jax.ShapeDtypeStruct((B, Hp), jnp.float32),
                   jax.ShapeDtypeStruct((B, Hp), jnp.float32)),
        grid=(T // tT,),
        in_specs=[pl.BlockSpec((tT, B, 4 * Hp), lambda j: (j, 0, 0)),
                  pl.BlockSpec((B, Hp), lambda j: (0, 0)),
                  pl.BlockSpec((B, Hp), lambda j: (0, 0)),
                  pl.BlockSpec((Hp, 4 * Hp), lambda j: (0, 0))],
        out_specs=(pl.BlockSpec((B, tT, Hp), lambda j: (0, j, 0)),
                   pl.BlockSpec((B, Hp), lambda j: (0, 0)),
                   pl.BlockSpec((B, Hp), lambda j: (0, 0))),
        scratch_shapes=[pltpu.VMEM((B, Hp), jnp.float32),
                        pltpu.VMEM((B, Hp), jnp.float32)],
        compiler_params=pltpu.CompilerParams(
            dimension_semantics=("arbitrary",),
            vmem_limit_bytes=_VMEM_LIMIT),
    )(gx, h0, c0, whh_p)

    # ---- Phase 3: output projection + log-softmax (parallel over large row tiles) ----
    # hall is already batch-major -> reshape is free (no HBM transpose).
    h_bt = hall.reshape(B * T, Hp)
    rows_bt = B * T
    rt_out = _pick_row_tile(rows_bt)
    logp = pl.pallas_call(
        proj_logsoftmax_kernel,
        out_shape=jax.ShapeDtypeStruct((rows_bt, Vp), jnp.float32),
        grid=(rows_bt // rt_out,),
        in_specs=[pl.BlockSpec((rt_out, Hp), lambda i: (i, 0)),
                  pl.BlockSpec((Hp, Vp), lambda i: (0, 0)),
                  pl.BlockSpec((1, Vp), lambda i: (0, 0))],
        out_specs=pl.BlockSpec((rt_out, Vp), lambda i: (i, 0)),
        compiler_params=pltpu.CompilerParams(
            dimension_semantics=("parallel",),
            vmem_limit_bytes=_VMEM_LIMIT),
    )(h_bt, wout_p, bout_p)

    pred = logp[:, :V]                                         # drop padded vocab lanes
    if need_hidden:
        return pred, (hn_p[None, :, :H], cn_p[None, :, :H])
    return pred


# --------------------------- deterministic params ----------------------------
def init_params(key, vocab_size, embedding_dim, hidden_dim, padding_idx):
    """Normal init with std = 1/sqrt(shape[0]) (cfg.gen_init == 'normal')."""
    ks = jax.random.split(key, 6)

    def nrm(k, shape):
        return jax.random.normal(k, shape, jnp.float32) / math.sqrt(shape[0])

    emb = nrm(ks[0], (vocab_size, embedding_dim))
    emb = emb.at[padding_idx].set(0.0)                          # padding_idx row zeroed

    w_ih = nrm(ks[1], (4 * hidden_dim, embedding_dim))          # PyTorch (4H, E)
    w_hh = nrm(ks[2], (4 * hidden_dim, hidden_dim))             # PyTorch (4H, H)
    b_ih = nrm(ks[3], (4 * hidden_dim,))
    b_hh = nrm(ks[4], (4 * hidden_dim,))
    w_out = nrm(ks[5], (vocab_size, hidden_dim))                # PyTorch (V, H)
    b_out = jax.random.normal(jax.random.fold_in(key, 7),
                              (vocab_size,), jnp.float32) / math.sqrt(vocab_size)

    return {
        "embedding": emb,
        "wih_t": w_ih.T,                      # (E, 4H)
        "whh_t": w_hh.T,                      # (H, 4H)
        "bias": (b_ih + b_hh)[None, :],       # (1, 4H)
        "wout_t": w_out.T,                    # (H, V)
        "bout": b_out[None, :],               # (1, V)
    }


# ------------------------------ pure-JAX reference ----------------------------
def reference_forward(params, inp, hidden):
    emb = jnp.take(params["embedding"], inp, axis=0)            # (B, T, E)
    B, T, _ = emb.shape
    H = params["whh_t"].shape[0]
    h, c = hidden[0][0], hidden[1][0]
    outs = []
    for t in range(T):
        g = emb[:, t, :] @ params["wih_t"] + h @ params["whh_t"] + params["bias"]
        i = jax.nn.sigmoid(g[:, :H]); f = jax.nn.sigmoid(g[:, H:2 * H])
        gg = jnp.tanh(g[:, 2 * H:3 * H]); o = jax.nn.sigmoid(g[:, 3 * H:])
        c = f * c + i * gg
        h = o * jnp.tanh(c)
        outs.append(h)
    out = jnp.stack(outs, axis=1).reshape(B * T, H)
    logits = out @ params["wout_t"] + params["bout"]
    return jax.nn.log_softmax(logits, axis=-1), (h[None], c[None])


# ------------------------------------ main ------------------------------------
if __name__ == "__main__":
    batch_size = 2
    seq_len = 8
    embedding_dim = 16
    hidden_dim = 32
    vocab_size = 16
    padding_idx = 0

    key = jax.random.PRNGKey(0)
    pkey, ikey = jax.random.split(key)
    raw_params = init_params(pkey, vocab_size, embedding_dim, hidden_dim, padding_idx)
    params = prepare_params(raw_params)       # one-time layout/padding/bf16 (off hot path)

    inp = jax.random.randint(ikey, (batch_size, seq_len), 0, vocab_size, jnp.int32)
    # init_hidden: zeros of shape (1, B, H)
    hidden = (jnp.zeros((1, batch_size, hidden_dim), jnp.float32),
              jnp.zeros((1, batch_size, hidden_dim), jnp.float32))

    pred, (hn, cn) = lstm_generator_forward(
        params, inp, hidden, hidden_dim=hidden_dim, vocab_size=vocab_size,
        need_hidden=True)
    jax.block_until_ready((pred, hn, cn))

    assert pred.shape == (batch_size * seq_len, vocab_size)
    assert hn.shape == (1, batch_size, hidden_dim)
    assert cn.shape == (1, batch_size, hidden_dim)

    ref_pred, (ref_h, ref_c) = reference_forward(raw_params, inp, hidden)
    # bf16 MXU operands vs pure-f32 reference -> tolerance loosened accordingly.
    np.testing.assert_allclose(np.asarray(pred), np.asarray(ref_pred),
                               atol=2e-2, rtol=2e-2)
    np.testing.assert_allclose(np.asarray(hn), np.asarray(ref_h), atol=2e-2, rtol=2e-2)
    np.testing.assert_allclose(np.asarray(cn), np.asarray(ref_c), atol=2e-2, rtol=2e-2)

    # TODO(synk): sample() (multinomial sampling loop) and load_dict() are host-side
    # control / I/O and are not part of the forward hot path; not implemented in Pallas.
    print("KERNEL_OK")
</pallas_src>

<mosaic_0001>
module attributes {stable_mosaic.version = 11 : i64} {
  func.func @lstm_recurrence_kernel(%arg0: i32, %arg1: memref<8x2x512xf32, #tpu.memory_space<vmem>>, %arg2: memref<2x128xf32, #tpu.memory_space<vmem>>, %arg3: memref<2x128xf32, #tpu.memory_space<vmem>>, %arg4: memref<128x512xbf16, #tpu.memory_space<vmem>>, %arg5: memref<2x8x128xf32, #tpu.memory_space<vmem>>, %arg6: memref<2x128xf32, #tpu.memory_space<vmem>>, %arg7: memref<2x128xf32, #tpu.memory_space<vmem>>, %arg8: memref<2x128xf32, #tpu.memory_space<vmem>>, %arg9: memref<2x128xf32, #tpu.memory_space<vmem>>) attributes {dimension_semantics = [#tpu.dimension_semantics<arbitrary>], iteration_bounds = array<i64: 1>, scalar_prefetch = 0 : i64, scratch_operands = 2 : i64, tpu.core_type = #tpu.core_type<tc>, window_params = [{transform_indices = @transform_0, window_bounds = array<i64: 8, 2, 512>}, {pipeline_mode = #tpu.pipeline_mode<synchronous>, transform_indices = @transform_1, window_bounds = array<i64: 2, 128>}, {pipeline_mode = #tpu.pipeline_mode<synchronous>, transform_indices = @transform_2, window_bounds = array<i64: 2, 128>}, {pipeline_mode = #tpu.pipeline_mode<synchronous>, transform_indices = @transform_3, window_bounds = array<i64: 128, 512>}, {transform_indices = @transform_4, window_bounds = array<i64: 2, 8, 128>}, {pipeline_mode = #tpu.pipeline_mode<synchronous>, transform_indices = @transform_5, window_bounds = array<i64: 2, 128>}, {pipeline_mode = #tpu.pipeline_mode<synchronous>, transform_indices = @transform_6, window_bounds = array<i64: 2, 128>}]} {
    %c0_i32 = arith.constant 0 : i32
    %0 = arith.cmpi eq, %arg0, %c0_i32 : i32
    %1 = arith.extui %0 : i1 to i32
    %c0_i32_0 = arith.constant 0 : i32
    %2 = arith.cmpi ne, %1, %c0_i32_0 : i32
    scf.if %2 {
      %c0_98 = arith.constant 0 : index
      %c0_99 = arith.constant 0 : index
      %282 = vector.load %arg2[%c0_98, %c0_99] : memref<2x128xf32, #tpu.memory_space<vmem>>, vector<2x128xf32>
      %c0_100 = arith.constant 0 : index
      %c0_101 = arith.constant 0 : index
      %283 = vector.load %arg8[%c0_100, %c0_101] : memref<2x128xf32, #tpu.memory_space<vmem>>, vector<2x128xf32>
      tpu.vector_store %arg8[%c0_100, %c0_101], %282 {strides = array<i32>} : memref<2x128xf32, #tpu.memory_space<vmem>>, vector<2x128xf32>,
      %c0_102 = arith.constant 0 : index
      %c0_103 = arith.constant 0 : index
      %284 = vector.load %arg3[%c0_102, %c0_103] : memref<2x128xf32, #tpu.memory_space<vmem>>, vector<2x128xf32>
      %c0_104 = arith.constant 0 : index
      %c0_105 = arith.constant 0 : index
      %285 = vector.load %arg9[%c0_104, %c0_105] : memref<2x128xf32, #tpu.memory_space<vmem>>, vector<2x128xf32>
      tpu.vector_store %arg9[%c0_104, %c0_105], %284 {strides = array<i32>} : memref<2x128xf32, #tpu.memory_space<vmem>>, vector<2x128xf32>,
    } else {
    }
    %c0 = arith.constant 0 : index
    %c0_1 = arith.constant 0 : index
    %3 = vector.load %arg8[%c0, %c0_1] : memref<2x128xf32, #tpu.memory_space<vmem>>, vector<2x128xf32>
    %c0_2 = arith.constant 0 : index
    %c0_3 = arith.constant 0 : index
    %4 = vector.load %arg9[%c0_2, %c0_3] : memref<2x128xf32, #tpu.memory_space<vmem>>, vector<2x128xf32>
    %c0_4 = arith.constant 0 : index
    %c0_5 = arith.constant 0 : index
    %c0_6 = arith.constant 0 : index
    %5 = vector.load %arg1[%c0_4, %c0_5, %c0_6] : memref<8x2x512xf32, #tpu.memory_space<vmem>>, vector<1x2x512xf32>
    %6 = vector.shape_cast %5 : vector<1x2x512xf32> to vector<2x512xf32>
    %7 = arith.truncf %3 : vector<2x128xf32> to vector<2x128xbf16>
    %c0_7 = arith.constant 0 : index
    %c0_8 = arith.constant 0 : index
    %8 = vector.load %arg4[%c0_7, %c0_8] : memref<128x512xbf16, #tpu.memory_space<vmem>>, vector<128x512xbf16>
    %cst = arith.constant dense<0.000000e+00> : vector<2x512xf32>
    %9 = tpu.matmul %7, %8, %cst {dimension_numbers = #tpu.dot_dimension_numbers<[1], [0], [0], [1], [0, 0, 1, 1], [], []>} : vector<2x128xbf16>, vector<128x512xbf16>, vector<2x512xf32> -> vector<2x512xf32>
    %10 = arith.addf %6, %9 : vector<2x512xf32>
    %11 = vector.extract_strided_slice %10 {offsets = [0, 0], sizes = [2, 128], strides = [1, 1]} : vector<2x512xf32> to vector<2x128xf32>
    %12 = arith.negf %11 : vector<2x128xf32>
    %13 = math.exp %12 : vector<2x128xf32>
    %cst_9 = arith.constant 1.000000e+00 : f32
    %14 = vector.broadcast %cst_9 : f32 to vector<2x128xf32>
    %15 = arith.addf %14, %13 : vector<2x128xf32>
    %16 = arith.divf %14, %15 : vector<2x128xf32>
    %17 = vector.extract_strided_slice %10 {offsets = [0, 128], sizes = [2, 128], strides = [1, 1]} : vector<2x512xf32> to vector<2x128xf32>
    %18 = arith.negf %17 : vector<2x128xf32>
    %19 = math.exp %18 : vector<2x128xf32>
    %cst_10 = arith.constant 1.000000e+00 : f32
    %20 = vector.broadcast %cst_10 : f32 to vector<2x128xf32>
    %21 = arith.addf %20, %19 : vector<2x128xf32>
    %22 = arith.divf %20, %21 : vector<2x128xf32>
    %23 = vector.extract_strided_slice %10 {offsets = [0, 256], sizes = [2, 128], strides = [1, 1]} : vector<2x512xf32> to vector<2x128xf32>
    %24 = math.tanh %23 : vector<2x128xf32>
    %25 = vector.extract_strided_slice %10 {offsets = [0, 384], sizes = [2, 128], strides = [1, 1]} : vector<2x512xf32> to vector<2x128xf32>
    %26 = arith.negf %25 : vector<2x128xf32>
    %27 = math.exp %26 : vector<2x128xf32>
    %cst_11 = arith.constant 1.000000e+00 : f32
    %28 = vector.broadcast %cst_11 : f32 to vector<2x128xf32>
    %29 = arith.addf %28, %27 : vector<2x128xf32>
    %30 = arith.divf %28, %29 : vector<2x128xf32>
    %31 = arith.mulf %22, %4 : vector<2x128xf32>
    %32 = arith.mulf %16, %24 : vector<2x128xf32>
    %33 = arith.addf %31, %32 : vector<2x128xf32>
    %34 = math.tanh %33 : vector<2x128xf32>
    %35 = arith.mulf %30, %34 : vector<2x128xf32>
    %c0_12 = arith.constant 0 : index
    %c0_13 = arith.constant 0 : index
    %c0_14 = arith.constant 0 : index
    %36 = vector.load %arg5[%c0_12, %c0_13, %c0_14] : memref<2x8x128xf32, #tpu.memory_space<vmem>>, vector<2x1x128xf32>
    %37 = vector.shape_cast %36 : vector<2x1x128xf32> to vector<2x128xf32>
    %38 = vector.shape_cast %35 : vector<2x128xf32> to vector<2x1x128xf32>
    tpu.vector_store %arg5[%c0_12, %c0_13, %c0_14], %38 {strides = array<i32>} : memref<2x8x128xf32, #tpu.memory_space<vmem>>, vector<2x1x128xf32>,
    %c1 = arith.constant 1 : index
    %c0_15 = arith.constant 0 : index
    %c0_16 = arith.constant 0 : index
    %39 = vector.load %arg1[%c1, %c0_15, %c0_16] : memref<8x2x512xf32, #tpu.memory_space<vmem>>, vector<1x2x512xf32>
    %40 = vector.shape_cast %39 : vector<1x2x512xf32> to vector<2x512xf32>
    %41 = arith.truncf %35 : vector<2x128xf32> to vector<2x128xbf16>
    %c0_17 = arith.constant 0 : index
    %c0_18 = arith.constant 0 : index
    %42 = vector.load %arg4[%c0_17, %c0_18] : memref<128x512xbf16, #tpu.memory_space<vmem>>, vector<128x512xbf16>
    %cst_19 = arith.constant dense<0.000000e+00> : vector<2x512xf32>
    %43 = tpu.matmul %41, %42, %cst_19 {dimension_numbers = #tpu.dot_dimension_numbers<[1], [0], [0], [1], [0, 0, 1, 1], [], []>} : vector<2x128xbf16>, vector<128x512xbf16>, vector<2x512xf32> -> vector<2x512xf32>
    %44 = arith.addf %40, %43 : vector<2x512xf32>
    %45 = vector.extract_strided_slice %44 {offsets = [0, 0], sizes = [2, 128], strides = [1, 1]} : vector<2x512xf32> to vector<2x128xf32>
    %46 = arith.negf %45 : vector<2x128xf32>
    %47 = math.exp %46 : vector<2x128xf32>
    %cst_20 = arith.constant 1.000000e+00 : f32
    %48 = vector.broadcast %cst_20 : f32 to vector<2x128xf32>
    %49 = arith.addf %48, %47 : vector<2x128xf32>
    %50 = arith.divf %48, %49 : vector<2x128xf32>
    %51 = vector.extract_strided_slice %44 {offsets = [0, 128], sizes = [2, 128], strides = [1, 1]} : vector<2x512xf32> to vector<2x128xf32>
    %52 = arith.negf %51 : vector<2x128xf32>
    %53 = math.exp %52 : vector<2x128xf32>
    %cst_21 = arith.constant 1.000000e+00 : f32
    %54 = vector.broadcast %cst_21 : f32 to vector<2x128xf32>
    %55 = arith.addf %54, %53 : vector<2x128xf32>
    %56 = arith.divf %54, %55 : vector<2x128xf32>
    %57 = vector.extract_strided_slice %44 {offsets = [0, 256], sizes = [2, 128], strides = [1, 1]} : vector<2x512xf32> to vector<2x128xf32>
    %58 = math.tanh %57 : vector<2x128xf32>
    %59 = vector.extract_strided_slice %44 {offsets = [0, 384], sizes = [2, 128], strides = [1, 1]} : vector<2x512xf32> to vector<2x128xf32>
    %60 = arith.negf %59 : vector<2x128xf32>
    %61 = math.exp %60 : vector<2x128xf32>
    %cst_22 = arith.constant 1.000000e+00 : f32
    %62 = vector.broadcast %cst_22 : f32 to vector<2x128xf32>
    %63 = arith.addf %62, %61 : vector<2x128xf32>
    %64 = arith.divf %62, %63 : vector<2x128xf32>
    %65 = arith.mulf %56, %33 : vector<2x128xf32>
    %66 = arith.mulf %50, %58 : vector<2x128xf32>
    %67 = arith.addf %65, %66 : vector<2x128xf32>
    %68 = math.tanh %67 : vector<2x128xf32>
    %69 = arith.mulf %64, %68 : vector<2x128xf32>
    %c0_23 = arith.constant 0 : index
    %c1_24 = arith.constant 1 : index
    %c0_25 = arith.constant 0 : index
    %70 = vector.load %arg5[%c0_23, %c1_24, %c0_25] : memref<2x8x128xf32, #tpu.memory_space<vmem>>, vector<2x1x128xf32>
    %71 = vector.shape_cast %70 : vector<2x1x128xf32> to vector<2x128xf32>
    %72 = vector.shape_cast %69 : vector<2x128xf32> to vector<2x1x128xf32>
    tpu.vector_store %arg5[%c0_23, %c1_24, %c0_25], %72 {strides = array<i32>} : memref<2x8x128xf32, #tpu.memory_space<vmem>>, vector<2x1x128xf32>,
    %c2 = arith.constant 2 : index
    %c0_26 = arith.constant 0 : index
    %c0_27 = arith.constant 0 : index
    %73 = vector.load %arg1[%c2, %c0_26, %c0_27] : memref<8x2x512xf32, #tpu.memory_space<vmem>>, vector<1x2x512xf32>
    %74 = vector.shape_cast %73 : vector<1x2x512xf32> to vector<2x512xf32>
    %75 = arith.truncf %69 : vector<2x128xf32> to vector<2x128xbf16>
    %c0_28 = arith.constant 0 : index
    %c0_29 = arith.constant 0 : index
    %76 = vector.load %arg4[%c0_28, %c0_29] : memref<128x512xbf16, #tpu.memory_space<vmem>>, vector<128x512xbf16>
    %cst_30 = arith.constant dense<0.000000e+00> : vector<2x512xf32>
    %77 = tpu.matmul %75, %76, %cst_30 {dimension_numbers = #tpu.dot_dimension_numbers<[1], [0], [0], [1], [0, 0, 1, 1], [], []>} : vector<2x128xbf16>, vector<128x512xbf16>, vector<2x512xf32> -> vector<2x512xf32>
    %78 = arith.addf %74, %77 : vector<2x512xf32>
    %79 = vector.extract_strided_slice %78 {offsets = [0, 0], sizes = [2, 128], strides = [1, 1]} : vector<2x512xf32> to vector<2x128xf32>
    %80 = arith.negf %79 : vector<2x128xf32>
    %81 = math.exp %80 : vector<2x128xf32>
    %cst_31 = arith.constant 1.000000e+00 : f32
    %82 = vector.broadcast %cst_31 : f32 to vector<2x128xf32>
    %83 = arith.addf %82, %81 : vector<2x128xf32>
    %84 = arith.divf %82, %83 : vector<2x128xf32>
    %85 = vector.extract_strided_slice %78 {offsets = [0, 128], sizes = [2, 128], strides = [1, 1]} : vector<2x512xf32> to vector<2x128xf32>
    %86 = arith.negf %85 : vector<2x128xf32>
    %87 = math.exp %86 : vector<2x128xf32>
    %cst_32 = arith.constant 1.000000e+00 : f32
    %88 = vector.broadcast %cst_32 : f32 to vector<2x128xf32>
    %89 = arith.addf %88, %87 : vector<2x128xf32>
    %90 = arith.divf %88, %89 : vector<2x128xf32>
    %91 = vector.extract_strided_slice %78 {offsets = [0, 256], sizes = [2, 128], strides = [1, 1]} : vector<2x512xf32> to vector<2x128xf32>
    %92 = math.tanh %91 : vector<2x128xf32>
    %93 = vector.extract_strided_slice %78 {offsets = [0, 384], sizes = [2, 128], strides = [1, 1]} : vector<2x512xf32> to vector<2x128xf32>
    %94 = arith.negf %93 : vector<2x128xf32>
    %95 = math.exp %94 : vector<2x128xf32>
    %cst_33 = arith.constant 1.000000e+00 : f32
    %96 = vector.broadcast %cst_33 : f32 to vector<2x128xf32>
    %97 = arith.addf %96, %95 : vector<2x128xf32>
    %98 = arith.divf %96, %97 : vector<2x128xf32>
    %99 = arith.mulf %90, %67 : vector<2x128xf32>
    %100 = arith.mulf %84, %92 : vector<2x128xf32>
    %101 = arith.addf %99, %100 : vector<2x128xf32>
    %102 = math.tanh %101 : vector<2x128xf32>
    %103 = arith.mulf %98, %102 : vector<2x128xf32>
    %c0_34 = arith.constant 0 : index
    %c2_35 = arith.constant 2 : index
    %c0_36 = arith.constant 0 : index
    %104 = vector.load %arg5[%c0_34, %c2_35, %c0_36] : memref<2x8x128xf32, #tpu.memory_space<vmem>>, vector<2x1x128xf32>
    %105 = vector.shape_cast %104 : vector<2x1x128xf32> to vector<2x128xf32>
    %106 = vector.shape_cast %103 : vector<2x128xf32> to vector<2x1x128xf32>
    tpu.vector_store %arg5[%c0_34, %c2_35, %c0_36], %106 {strides = array<i32>} : memref<2x8x128xf32, #tpu.memory_space<vmem>>, vector<2x1x128xf32>,
    %c3 = arith.constant 3 : index
    %c0_37 = arith.constant 0 : index
    %c0_38 = arith.constant 0 : index
    %107 = vector.load %arg1[%c3, %c0_37, %c0_38] : memref<8x2x512xf32, #tpu.memory_space<vmem>>, vector<1x2x512xf32>
    %108 = vector.shape_cast %107 : vector<1x2x512xf32> to vector<2x512xf32>
    %109 = arith.truncf %103 : vector<2x128xf32> to vector<2x128xbf16>
    %c0_39 = arith.constant 0 : index
    %c0_40 = arith.constant 0 : index
    %110 = vector.load %arg4[%c0_39, %c0_40] : memref<128x512xbf16, #tpu.memory_space<vmem>>, vector<128x512xbf16>
    %cst_41 = arith.constant dense<0.000000e+00> : vector<2x512xf32>
    %111 = tpu.matmul %109, %110, %cst_41 {dimension_numbers = #tpu.dot_dimension_numbers<[1], [0], [0], [1], [0, 0, 1, 1], [], []>} : vector<2x128xbf16>, vector<128x512xbf16>, vector<2x512xf32> -> vector<2x512xf32>
    %112 = arith.addf %108, %111 : vector<2x512xf32>
    %113 = vector.extract_strided_slice %112 {offsets = [0, 0], sizes = [2, 128], strides = [1, 1]} : vector<2x512xf32> to vector<2x128xf32>
    %114 = arith.negf %113 : vector<2x128xf32>
    %115 = math.exp %114 : vector<2x128xf32>
    %cst_42 = arith.constant 1.000000e+00 : f32
    %116 = vector.broadcast %cst_42 : f32 to vector<2x128xf32>
    %117 = arith.addf %116, %115 : vector<2x128xf32>
    %118 = arith.divf %116, %117 : vector<2x128xf32>
    %119 = vector.extract_strided_slice %112 {offsets = [0, 128], sizes = [2, 128], strides = [1, 1]} : vector<2x512xf32> to vector<2x128xf32>
    %120 = arith.negf %119 : vector<2x128xf32>
    %121 = math.exp %120 : vector<2x128xf32>
    %cst_43 = arith.constant 1.000000e+00 : f32
    %122 = vector.broadcast %cst_43 : f32 to vector<2x128xf32>
    %123 = arith.addf %122, %121 : vector<2x128xf32>
    %124 = arith.divf %122, %123 : vector<2x128xf32>
    %125 = vector.extract_strided_slice %112 {offsets = [0, 256], sizes = [2, 128], strides = [1, 1]} : vector<2x512xf32> to vector<2x128xf32>
    %126 = math.tanh %125 : vector<2x128xf32>
    %127 = vector.extract_strided_slice %112 {offsets = [0, 384], sizes = [2, 128], strides = [1, 1]} : vector<2x512xf32> to vector<2x128xf32>
    %128 = arith.negf %127 : vector<2x128xf32>
    %129 = math.exp %128 : vector<2x128xf32>
    %cst_44 = arith.constant 1.000000e+00 : f32
    %130 = vector.broadcast %cst_44 : f32 to vector<2x128xf32>
    %131 = arith.addf %130, %129 : vector<2x128xf32>
    %132 = arith.divf %130, %131 : vector<2x128xf32>
    %133 = arith.mulf %124, %101 : vector<2x128xf32>
    %134 = arith.mulf %118, %126 : vector<2x128xf32>
    %135 = arith.addf %133, %134 : vector<2x128xf32>
    %136 = math.tanh %135 : vector<2x128xf32>
    %137 = arith.mulf %132, %136 : vector<2x128xf32>
    %c0_45 = arith.constant 0 : index
    %c3_46 = arith.constant 3 : index
    %c0_47 = arith.constant 0 : index
    %138 = vector.load %arg5[%c0_45, %c3_46, %c0_47] : memref<2x8x128xf32, #tpu.memory_space<vmem>>, vector<2x1x128xf32>
    %139 = vector.shape_cast %138 : vector<2x1x128xf32> to vector<2x128xf32>
    %140 = vector.shape_cast %137 : vector<2x128xf32> to vector<2x1x128xf32>
    tpu.vector_store %arg5[%c0_45, %c3_46, %c0_47], %140 {strides = array<i32>} : memref<2x8x128xf32, #tpu.memory_space<vmem>>, vector<2x1x128xf32>,
    %c4 = arith.constant 4 : index
    %c0_48 = arith.constant 0 : index
    %c0_49 = arith.constant 0 : index
    %141 = vector.load %arg1[%c4, %c0_48, %c0_49] : memref<8x2x512xf32, #tpu.memory_space<vmem>>, vector<1x2x512xf32>
    %142 = vector.shape_cast %141 : vector<1x2x512xf32> to vector<2x512xf32>
    %143 = arith.truncf %137 : vector<2x128xf32> to vector<2x128xbf16>
    %c0_50 = arith.constant 0 : index
    %c0_51 = arith.constant 0 : index
    %144 = vector.load %arg4[%c0_50, %c0_51] : memref<128x512xbf16, #tpu.memory_space<vmem>>, vector<128x512xbf16>
    %cst_52 = arith.constant dense<0.000000e+00> : vector<2x512xf32>
    %145 = tpu.matmul %143, %144, %cst_52 {dimension_numbers = #tpu.dot_dimension_numbers<[1], [0], [0], [1], [0, 0, 1, 1], [], []>} : vector<2x128xbf16>, vector<128x512xbf16>, vector<2x512xf32> -> vector<2x512xf32>
    %146 = arith.addf %142, %145 : vector<2x512xf32>
    %147 = vector.extract_strided_slice %146 {offsets = [0, 0], sizes = [2, 128], strides = [1, 1]} : vector<2x512xf32> to vector<2x128xf32>
    %148 = arith.negf %147 : vector<2x128xf32>
    %149 = math.exp %148 : vector<2x128xf32>
    %cst_53 = arith.constant 1.000000e+00 : f32
    %150 = vector.broadcast %cst_53 : f32 to vector<2x128xf32>
    %151 = arith.addf %150, %149 : vector<2x128xf32>
    %152 = arith.divf %150, %151 : vector<2x128xf32>
    %153 = vector.extract_strided_slice %146 {offsets = [0, 128], sizes = [2, 128], strides = [1, 1]} : vector<2x512xf32> to vector<2x128xf32>
    %154 = arith.negf %153 : vector<2x128xf32>
    %155 = math.exp %154 : vector<2x128xf32>
    %cst_54 = arith.constant 1.000000e+00 : f32
    %156 = vector.broadcast %cst_54 : f32 to vector<2x128xf32>
    %157 = arith.addf %156, %155 : vector<2x128xf32>
    %158 = arith.divf %156, %157 : vector<2x128xf32>
    %159 = vector.extract_strided_slice %146 {offsets = [0, 256], sizes = [2, 128], strides = [1, 1]} : vector<2x512xf32> to vector<2x128xf32>
    %160 = math.tanh %159 : vector<2x128xf32>
    %161 = vector.extract_strided_slice %146 {offsets = [0, 384], sizes = [2, 128], strides = [1, 1]} : vector<2x512xf32> to vector<2x128xf32>
    %162 = arith.negf %161 : vector<2x128xf32>
    %163 = math.exp %162 : vector<2x128xf32>
    %cst_55 = arith.constant 1.000000e+00 : f32
    %164 = vector.broadcast %cst_55 : f32 to vector<2x128xf32>
    %165 = arith.addf %164, %163 : vector<2x128xf32>
    %166 = arith.divf %164, %165 : vector<2x128xf32>
    %167 = arith.mulf %158, %135 : vector<2x128xf32>
    %168 = arith.mulf %152, %160 : vector<2x128xf32>
    %169 = arith.addf %167, %168 : vector<2x128xf32>
    %170 = math.tanh %169 : vector<2x128xf32>
    %171 = arith.mulf %166, %170 : vector<2x128xf32>
    %c0_56 = arith.constant 0 : index
    %c4_57 = arith.constant 4 : index
    %c0_58 = arith.constant 0 : index
    %172 = vector.load %arg5[%c0_56, %c4_57, %c0_58] : memref<2x8x128xf32, #tpu.memory_space<vmem>>, vector<2x1x128xf32>
    %173 = vector.shape_cast %172 : vector<2x1x128xf32> to vector<2x128xf32>
    %174 = vector.shape_cast %171 : vector<2x128xf32> to vector<2x1x128xf32>
    tpu.vector_store %arg5[%c0_56, %c4_57, %c0_58], %174 {strides = array<i32>} : memref<2x8x128xf32, #tpu.memory_space<vmem>>, vector<2x1x128xf32>,
    %c5 = arith.constant 5 : index
    %c0_59 = arith.constant 0 : index
    %c0_60 = arith.constant 0 : index
    %175 = vector.load %arg1[%c5, %c0_59, %c0_60] : memref<8x2x512xf32, #tpu.memory_space<vmem>>, vector<1x2x512xf32>
    %176 = vector.shape_cast %175 : vector<1x2x512xf32> to vector<2x512xf32>
    %177 = arith.truncf %171 : vector<2x128xf32> to vector<2x128xbf16>
    %c0_61 = arith.constant 0 : index
    %c0_62 = arith.constant 0 : index
    %178 = vector.load %arg4[%c0_61, %c0_62] : memref<128x512xbf16, #tpu.memory_space<vmem>>, vector<128x512xbf16>
    %cst_63 = arith.constant dense<0.000000e+00> : vector<2x512xf32>
    %179 = tpu.matmul %177, %178, %cst_63 {dimension_numbers = #tpu.dot_dimension_numbers<[1], [0], [0], [1], [0, 0, 1, 1], [], []>} : vector<2x128xbf16>, vector<128x512xbf16>, vector<2x512xf32> -> vector<2x512xf32>
    %180 = arith.addf %176, %179 : vector<2x512xf32>
    %181 = vector.extract_strided_slice %180 {offsets = [0, 0], sizes = [2, 128], strides = [1, 1]} : vector<2x512xf32> to vector<2x128xf32>
    %182 = arith.negf %181 : vector<2x128xf32>
    %183 = math.exp %182 : vector<2x128xf32>
    %cst_64 = arith.constant 1.000000e+00 : f32
    %184 = vector.broadcast %cst_64 : f32 to vector<2x128xf32>
    %185 = arith.addf %184, %183 : vector<2x128xf32>
    %186 = arith.divf %184, %185 : vector<2x128xf32>
    %187 = vector.extract_strided_slice %180 {offsets = [0, 128], sizes = [2, 128], strides = [1, 1]} : vector<2x512xf32> to vector<2x128xf32>
    %188 = arith.negf %187 : vector<2x128xf32>
    %189 = math.exp %188 : vector<2x128xf32>
    %cst_65 = arith.constant 1.000000e+00 : f32
    %190 = vector.broadcast %cst_65 : f32 to vector<2x128xf32>
    %191 = arith.addf %190, %189 : vector<2x128xf32>
    %192 = arith.divf %190, %191 : vector<2x128xf32>
    %193 = vector.extract_strided_slice %180 {offsets = [0, 256], sizes = [2, 128], strides = [1, 1]} : vector<2x512xf32> to vector<2x128xf32>
    %194 = math.tanh %193 : vector<2x128xf32>
    %195 = vector.extract_strided_slice %180 {offsets = [0, 384], sizes = [2, 128], strides = [1, 1]} : vector<2x512xf32> to vector<2x128xf32>
    %196 = arith.negf %195 : vector<2x128xf32>
    %197 = math.exp %196 : vector<2x128xf32>
    %cst_66 = arith.constant 1.000000e+00 : f32
    %198 = vector.broadcast %cst_66 : f32 to vector<2x128xf32>
    %199 = arith.addf %198, %197 : vector<2x128xf32>
    %200 = arith.divf %198, %199 : vector<2x128xf32>
    %201 = arith.mulf %192, %169 : vector<2x128xf32>
    %202 = arith.mulf %186, %194 : vector<2x128xf32>
    %203 = arith.addf %201, %202 : vector<2x128xf32>
    %204 = math.tanh %203 : vector<2x128xf32>
    %205 = arith.mulf %200, %204 : vector<2x128xf32>
    %c0_67 = arith.constant 0 : index
    %c5_68 = arith.constant 5 : index
    %c0_69 = arith.constant 0 : index
    %206 = vector.load %arg5[%c0_67, %c5_68, %c0_69] : memref<2x8x128xf32, #tpu.memory_space<vmem>>, vector<2x1x128xf32>
    %207 = vector.shape_cast %206 : vector<2x1x128xf32> to vector<2x128xf32>
    %208 = vector.shape_cast %205 : vector<2x128xf32> to vector<2x1x128xf32>
    tpu.vector_store %arg5[%c0_67, %c5_68, %c0_69], %208 {strides = array<i32>} : memref<2x8x128xf32, #tpu.memory_space<vmem>>, vector<2x1x128xf32>,
    %c6 = arith.constant 6 : index
    %c0_70 = arith.constant 0 : index
    %c0_71 = arith.constant 0 : index
    %209 = vector.load %arg1[%c6, %c0_70, %c0_71] : memref<8x2x512xf32, #tpu.memory_space<vmem>>, vector<1x2x512xf32>
    %210 = vector.shape_cast %209 : vector<1x2x512xf32> to vector<2x512xf32>
    %211 = arith.truncf %205 : vector<2x128xf32> to vector<2x128xbf16>
    %c0_72 = arith.constant 0 : index
    %c0_73 = arith.constant 0 : index
    %212 = vector.load %arg4[%c0_72, %c0_73] : memref<128x512xbf16, #tpu.memory_space<vmem>>, vector<128x512xbf16>
    %cst_74 = arith.constant dense<0.000000e+00> : vector<2x512xf32>
    %213 = tpu.matmul %211, %212, %cst_74 {dimension_numbers = #tpu.dot_dimension_numbers<[1], [0], [0], [1], [0, 0, 1, 1], [], []>} : vector<2x128xbf16>, vector<128x512xbf16>, vector<2x512xf32> -> vector<2x512xf32>
    %214 = arith.addf %210, %213 : vector<2x512xf32>
    %215 = vector.extract_strided_slice %214 {offsets = [0, 0], sizes = [2, 128], strides = [1, 1]} : vector<2x512xf32> to vector<2x128xf32>
    %216 = arith.negf %215 : vector<2x128xf32>
    %217 = math.exp %216 : vector<2x128xf32>
    %cst_75 = arith.constant 1.000000e+00 : f32
    %218 = vector.broadcast %cst_75 : f32 to vector<2x128xf32>
    %219 = arith.addf %218, %217 : vector<2x128xf32>
    %220 = arith.divf %218, %219 : vector<2x128xf32>
    %221 = vector.extract_strided_slice %214 {offsets = [0, 128], sizes = [2, 128], strides = [1, 1]} : vector<2x512xf32> to vector<2x128xf32>
    %222 = arith.negf %221 : vector<2x128xf32>
    %223 = math.exp %222 : vector<2x128xf32>
    %cst_76 = arith.constant 1.000000e+00 : f32
    %224 = vector.broadcast %cst_76 : f32 to vector<2x128xf32>
    %225 = arith.addf %224, %223 : vector<2x128xf32>
    %226 = arith.divf %224, %225 : vector<2x128xf32>
    %227 = vector.extract_strided_slice %214 {offsets = [0, 256], sizes = [2, 128], strides = [1, 1]} : vector<2x512xf32> to vector<2x128xf32>
    %228 = math.tanh %227 : vector<2x128xf32>
    %229 = vector.extract_strided_slice %214 {offsets = [0, 384], sizes = [2, 128], strides = [1, 1]} : vector<2x512xf32> to vector<2x128xf32>
    %230 = arith.negf %229 : vector<2x128xf32>
    %231 = math.exp %230 : vector<2x128xf32>
    %cst_77 = arith.constant 1.000000e+00 : f32
    %232 = vector.broadcast %cst_77 : f32 to vector<2x128xf32>
    %233 = arith.addf %232, %231 : vector<2x128xf32>
    %234 = arith.divf %232, %233 : vector<2x128xf32>
    %235 = arith.mulf %226, %203 : vector<2x128xf32>
    %236 = arith.mulf %220, %228 : vector<2x128xf32>
    %237 = arith.addf %235, %236 : vector<2x128xf32>
    %238 = math.tanh %237 : vector<2x128xf32>
    %239 = arith.mulf %234, %238 : vector<2x128xf32>
    %c0_78 = arith.constant 0 : index
    %c6_79 = arith.constant 6 : index
    %c0_80 = arith.constant 0 : index
    %240 = vector.load %arg5[%c0_78, %c6_79, %c0_80] : memref<2x8x128xf32, #tpu.memory_space<vmem>>, vector<2x1x128xf32>
    %241 = vector.shape_cast %240 : vector<2x1x128xf32> to vector<2x128xf32>
    %242 = vector.shape_cast %239 : vector<2x128xf32> to vector<2x1x128xf32>
    tpu.vector_store %arg5[%c0_78, %c6_79, %c0_80], %242 {strides = array<i32>} : memref<2x8x128xf32, #tpu.memory_space<vmem>>, vector<2x1x128xf32>,
    %c7 = arith.constant 7 : index
    %c0_81 = arith.constant 0 : index
    %c0_82 = arith.constant 0 : index
    %243 = vector.load %arg1[%c7, %c0_81, %c0_82] : memref<8x2x512xf32, #tpu.memory_space<vmem>>, vector<1x2x512xf32>
    %244 = vector.shape_cast %243 : vector<1x2x512xf32> to vector<2x512xf32>
    %245 = arith.truncf %239 : vector<2x128xf32> to vector<2x128xbf16>
    %c0_83 = arith.constant 0 : index
    %c0_84 = arith.constant 0 : index
    %246 = vector.load %arg4[%c0_83, %c0_84] : memref<128x512xbf16, #tpu.memory_space<vmem>>, vector<128x512xbf16>
    %cst_85 = arith.constant dense<0.000000e+00> : vector<2x512xf32>
    %247 = tpu.matmul %245, %246, %cst_85 {dimension_numbers = #tpu.dot_dimension_numbers<[1], [0], [0], [1], [0, 0, 1, 1], [], []>} : vector<2x128xbf16>, vector<128x512xbf16>, vector<2x512xf32> -> vector<2x512xf32>
    %248 = arith.addf %244, %247 : vector<2x512xf32>
    %249 = vector.extract_strided_slice %248 {offsets = [0, 0], sizes = [2, 128], strides = [1, 1]} : vector<2x512xf32> to vector<2x128xf32>
    %250 = arith.negf %249 : vector<2x128xf32>
    %251 = math.exp %250 : vector<2x128xf32>
    %cst_86 = arith.constant 1.000000e+00 : f32
    %252 = vector.broadcast %cst_86 : f32 to vector<2x128xf32>
    %253 = arith.addf %252, %251 : vector<2x128xf32>
    %254 = arith.divf %252, %253 : vector<2x128xf32>
    %255 = vector.extract_strided_slice %248 {offsets = [0, 128], sizes = [2, 128], strides = [1, 1]} : vector<2x512xf32> to vector<2x128xf32>
    %256 = arith.negf %255 : vector<2x128xf32>
    %257 = math.exp %256 : vector<2x128xf32>
    %cst_87 = arith.constant 1.000000e+00 : f32
    %258 = vector.broadcast %cst_87 : f32 to vector<2x128xf32>
    %259 = arith.addf %258, %257 : vector<2x128xf32>
    %260 = arith.divf %258, %259 : vector<2x128xf32>
    %261 = vector.extract_strided_slice %248 {offsets = [0, 256], sizes = [2, 128], strides = [1, 1]} : vector<2x512xf32> to vector<2x128xf32>
    %262 = math.tanh %261 : vector<2x128xf32>
    %263 = vector.extract_strided_slice %248 {offsets = [0, 384], sizes = [2, 128], strides = [1, 1]} : vector<2x512xf32> to vector<2x128xf32>
    %264 = arith.negf %263 : vector<2x128xf32>
    %265 = math.exp %264 : vector<2x128xf32>
    %cst_88 = arith.constant 1.000000e+00 : f32
    %266 = vector.broadcast %cst_88 : f32 to vector<2x128xf32>
    %267 = arith.addf %266, %265 : vector<2x128xf32>
    %268 = arith.divf %266, %267 : vector<2x128xf32>
    %269 = arith.mulf %260, %237 : vector<2x128xf32>
    %270 = arith.mulf %254, %262 : vector<2x128xf32>
    %271 = arith.addf %269, %270 : vector<2x128xf32>
    %272 = math.tanh %271 : vector<2x128xf32>
    %273 = arith.mulf %268, %272 : vector<2x128xf32>
    %c0_89 = arith.constant 0 : index
    %c7_90 = arith.constant 7 : index
    %c0_91 = arith.constant 0 : index
    %274 = vector.load %arg5[%c0_89, %c7_90, %c0_91] : memref<2x8x128xf32, #tpu.memory_space<vmem>>, vector<2x1x128xf32>
    %275 = vector.shape_cast %274 : vector<2x1x128xf32> to vector<2x128xf32>
    %276 = vector.shape_cast %273 : vector<2x128xf32> to vector<2x1x128xf32>
    tpu.vector_store %arg5[%c0_89, %c7_90, %c0_91], %276 {strides = array<i32>} : memref<2x8x128xf32, #tpu.memory_space<vmem>>, vector<2x1x128xf32>,
    %c0_92 = arith.constant 0 : index
    %c0_93 = arith.constant 0 : index
    %277 = vector.load %arg8[%c0_92, %c0_93] : memref<2x128xf32, #tpu.memory_space<vmem>>, vector<2x128xf32>
    tpu.vector_store %arg8[%c0_92, %c0_93], %273 {strides = array<i32>} : memref<2x128xf32, #tpu.memory_space<vmem>>, vector<2x128xf32>,
    %c0_94 = arith.constant 0 : index
    %c0_95 = arith.constant 0 : index
    %278 = vector.load %arg9[%c0_94, %c0_95] : memref<2x128xf32, #tpu.memory_space<vmem>>, vector<2x128xf32>
    tpu.vector_store %arg9[%c0_94, %c0_95], %271 {strides = array<i32>} : memref<2x128xf32, #tpu.memory_space<vmem>>, vector<2x128xf32>,
    %c0_i32_96 = arith.constant 0 : i32
    %279 = arith.cmpi eq, %arg0, %c0_i32_96 : i32
    %280 = arith.extui %279 : i1 to i32
    %c0_i32_97 = arith.constant 0 : i32
    %281 = arith.cmpi ne, %280, %c0_i32_97 : i32
    scf.if %281 {
      %c0_98 = arith.constant 0 : index
      %c0_99 = arith.constant 0 : index
      %282 = vector.load %arg6[%c0_98, %c0_99] : memref<2x128xf32, #tpu.memory_space<vmem>>, vector<2x128xf32>
      tpu.vector_store %arg6[%c0_98, %c0_99], %273 {strides = array<i32>} : memref<2x128xf32, #tpu.memory_space<vmem>>, vector<2x128xf32>,
      %c0_100 = arith.constant 0 : index
      %c0_101 = arith.constant 0 : index
      %283 = vector.load %arg7[%c0_100, %c0_101] : memref<2x128xf32, #tpu.memory_space<vmem>>, vector<2x128xf32>
      tpu.vector_store %arg7[%c0_100, %c0_101], %271 {strides = array<i32>} : memref<2x128xf32, #tpu.memory_space<vmem>>, vector<2x128xf32>,
    } else {
    }
    return
  }
  func.func @transform_0(%arg0: i32) -> (i32, i32, i32) {
    %c0_i32 = arith.constant 0 : i32
    %c0_i32_0 = arith.constant 0 : i32
    %c0_i32_1 = arith.constant 0 : i32
    return %arg0, %c0_i32, %c0_i32_0 : i32, i32, i32
  }
  func.func @transform_1(%arg0: i32) -> (i32, i32) {
    %c0_i32 = arith.constant 0 : i32
    %c0_i32_0 = arith.constant 0 : i32
    %c0_i32_1 = arith.constant 0 : i32
    return %c0_i32, %c0_i32_0 : i32, i32
  }
  func.func @transform_2(%arg0: i32) -> (i32, i32) {
    %c0_i32 = arith.constant 0 : i32
    %c0_i32_0 = arith.constant 0 : i32
    %c0_i32_1 = arith.constant 0 : i32
    return %c0_i32, %c0_i32_0 : i32, i32
  }
  func.func @transform_3(%arg0: i32) -> (i32, i32) {
    %c0_i32 = arith.constant 0 : i32
    %c0_i32_0 = arith.constant 0 : i32
    %c0_i32_1 = arith.constant 0 : i32
    return %c0_i32, %c0_i32_0 : i32, i32
  }
  func.func @transform_4(%arg0: i32) -> (i32, i32, i32) {
    %c0_i32 = arith.constant 0 : i32
    %c0_i32_0 = arith.constant 0 : i32
    %c0_i32_1 = arith.constant 0 : i32
    return %c0_i32, %arg0, %c0_i32_0 : i32, i32, i32
  }
  func.func @transform_5(%arg0: i32) -> (i32, i32) {
    %c0_i32 = arith.constant 0 : i32
    %c0_i32_0 = arith.constant 0 : i32
    %c0_i32_1 = arith.constant 0 : i32
    return %c0_i32, %c0_i32_0 : i32, i32
  }
  func.func @transform_6(%arg0: i32) -> (i32, i32) {
    %c0_i32 = arith.constant 0 : i32
    %c0_i32_0 = arith.constant 0 : i32
    %c0_i32_1 = arith.constant 0 : i32
    return %c0_i32, %c0_i32_0 : i32, i32
  }
}

module attributes {stable_mosaic.version = 11 : i64} {
  func.func @input_proj_kernel(%arg0: i32, %arg1: memref<16x16xbf16, #tpu.memory_space<vmem>>, %arg2: memref<16x512xbf16, #tpu.memory_space<vmem>>, %arg3: memref<1x512xf32, #tpu.memory_space<vmem>>, %arg4: memref<16x512xf32, #tpu.memory_space<vmem>>) attributes {dimension_semantics = [#tpu.dimension_semantics<parallel>], iteration_bounds = array<i64: 1>, scalar_prefetch = 0 : i64, scratch_operands = 0 : i64, tpu.core_type = #tpu.core_type<tc>, window_params = [{transform_indices = @transform_0, window_bounds = array<i64: 16, 16>}, {pipeline_mode = #tpu.pipeline_mode<synchronous>, transform_indices = @transform_1, window_bounds = array<i64: 16, 512>}, {pipeline_mode = #tpu.pipeline_mode<synchronous>, transform_indices = @transform_2, window_bounds = array<i64: 1, 512>}, {transform_indices = @transform_3, window_bounds = array<i64: 16, 512>}]} {
    %c0 = arith.constant 0 : index
    %c0_0 = arith.constant 0 : index
    %0 = vector.load %arg1[%c0, %c0_0] : memref<16x16xbf16, #tpu.memory_space<vmem>>, vector<16x16xbf16>
    %c0_1 = arith.constant 0 : index
    %c0_2 = arith.constant 0 : index
    %1 = vector.load %arg2[%c0_1, %c0_2] : memref<16x512xbf16, #tpu.memory_space<vmem>>, vector<16x512xbf16>
    %cst = arith.constant dense<0.000000e+00> : vector<16x512xf32>
    %2 = tpu.matmul %0, %1, %cst {dimension_numbers = #tpu.dot_dimension_numbers<[1], [0], [0], [1], [0, 0, 1, 1], [], []>} : vector<16x16xbf16>, vector<16x512xbf16>, vector<16x512xf32> -> vector<16x512xf32>
    %c0_3 = arith.constant 0 : index
    %c0_4 = arith.constant 0 : index
    %3 = vector.load %arg3[%c0_3, %c0_4] : memref<1x512xf32, #tpu.memory_space<vmem>>, vector<1x512xf32>
    %4 = vector.broadcast %3 : vector<1x512xf32> to vector<16x512xf32>
    %5 = arith.addf %2, %4 : vector<16x512xf32>
    %c0_5 = arith.constant 0 : index
    %c0_6 = arith.constant 0 : index
    %6 = vector.load %arg4[%c0_5, %c0_6] : memref<16x512xf32, #tpu.memory_space<vmem>>, vector<16x512xf32>
    tpu.vector_store %arg4[%c0_5, %c0_6], %5 {strides = array<i32>} : memref<16x512xf32, #tpu.memory_space<vmem>>, vector<16x512xf32>,
    return
  }
  func.func @transform_0(%arg0: i32) -> (i32, i32) {
    %c0_i32 = arith.constant 0 : i32
    %c0_i32_0 = arith.constant 0 : i32
    return %arg0, %c0_i32 : i32, i32
  }
  func.func @transform_1(%arg0: i32) -> (i32, i32) {
    %c0_i32 = arith.constant 0 : i32
    %c0_i32_0 = arith.constant 0 : i32
    %c0_i32_1 = arith.constant 0 : i32
    return %c0_i32, %c0_i32_0 : i32, i32
  }
  func.func @transform_2(%arg0: i32) -> (i32, i32) {
    %c0_i32 = arith.constant 0 : i32
    %c0_i32_0 = arith.constant 0 : i32
    %c0_i32_1 = arith.constant 0 : i32
    return %c0_i32, %c0_i32_0 : i32, i32
  }
  func.func @transform_3(%arg0: i32) -> (i32, i32) {
    %c0_i32 = arith.constant 0 : i32
    %c0_i32_0 = arith.constant 0 : i32
    return %arg0, %c0_i32 : i32, i32
  }
}

module attributes {stable_mosaic.version = 11 : i64} {
  func.func @proj_logsoftmax_kernel(%arg0: i32, %arg1: memref<16x128xf32, #tpu.memory_space<vmem>>, %arg2: memref<128x128xbf16, #tpu.memory_space<vmem>>, %arg3: memref<1x128xf32, #tpu.memory_space<vmem>>, %arg4: memref<16x128xf32, #tpu.memory_space<vmem>>) attributes {dimension_semantics = [#tpu.dimension_semantics<parallel>], iteration_bounds = array<i64: 1>, scalar_prefetch = 0 : i64, scratch_operands = 0 : i64, tpu.core_type = #tpu.core_type<tc>, window_params = [{transform_indices = @transform_0, window_bounds = array<i64: 16, 128>}, {pipeline_mode = #tpu.pipeline_mode<synchronous>, transform_indices = @transform_1, window_bounds = array<i64: 128, 128>}, {pipeline_mode = #tpu.pipeline_mode<synchronous>, transform_indices = @transform_2, window_bounds = array<i64: 1, 128>}, {transform_indices = @transform_3, window_bounds = array<i64: 16, 128>}]} {
    %c0 = arith.constant 0 : index
    %c0_0 = arith.constant 0 : index
    %0 = vector.load %arg1[%c0, %c0_0] : memref<16x128xf32, #tpu.memory_space<vmem>>, vector<16x128xf32>
    %1 = arith.truncf %0 : vector<16x128xf32> to vector<16x128xbf16>
    %c0_1 = arith.constant 0 : index
    %c0_2 = arith.constant 0 : index
    %2 = vector.load %arg2[%c0_1, %c0_2] : memref<128x128xbf16, #tpu.memory_space<vmem>>, vector<128x128xbf16>
    %cst = arith.constant dense<0.000000e+00> : vector<16x128xf32>
    %3 = tpu.matmul %1, %2, %cst {dimension_numbers = #tpu.dot_dimension_numbers<[1], [0], [0], [1], [0, 0, 1, 1], [], []>} : vector<16x128xbf16>, vector<128x128xbf16>, vector<16x128xf32> -> vector<16x128xf32>
    %c0_3 = arith.constant 0 : index
    %c0_4 = arith.constant 0 : index
    %4 = vector.load %arg3[%c0_3, %c0_4] : memref<1x128xf32, #tpu.memory_space<vmem>>, vector<1x128xf32>
    %5 = vector.broadcast %4 : vector<1x128xf32> to vector<16x128xf32>
    %6 = arith.addf %3, %5 : vector<16x128xf32>
    %cst_5 = arith.constant dense<0xFF800000> : vector<16xf32>
    %7 = vector.multi_reduction <maximumf>, %6, %cst_5 [1] : vector<16x128xf32> to vector<16xf32>
    %8 = vector.shape_cast %7 : vector<16xf32> to vector<16x1xf32>
    %9 = vector.broadcast %8 : vector<16x1xf32> to vector<16x128xf32>
    %10 = arith.subf %6, %9 : vector<16x128xf32>
    %11 = math.exp %10 : vector<16x128xf32>
    %cst_6 = arith.constant dense<0.000000e+00> : vector<16xf32>
    %12 = vector.multi_reduction <add>, %11, %cst_6 [1] : vector<16x128xf32> to vector<16xf32>
    %13 = vector.shape_cast %12 : vector<16xf32> to vector<16x1xf32>
    %14 = math.log %13 : vector<16x1xf32>
    %15 = arith.addf %14, %8 : vector<16x1xf32>
    %16 = vector.broadcast %15 : vector<16x1xf32> to vector<16x128xf32>
    %17 = arith.subf %6, %16 : vector<16x128xf32>
    %c0_7 = arith.constant 0 : index
    %c0_8 = arith.constant 0 : index
    %18 = vector.load %arg4[%c0_7, %c0_8] : memref<16x128xf32, #tpu.memory_space<vmem>>, vector<16x128xf32>
    tpu.vector_store %arg4[%c0_7, %c0_8], %17 {strides = array<i32>} : memref<16x128xf32, #tpu.memory_space<vmem>>, vector<16x128xf32>,
    return
  }
  func.func @transform_0(%arg0: i32) -> (i32, i32) {
    %c0_i32 = arith.constant 0 : i32
    %c0_i32_0 = arith.constant 0 : i32
    return %arg0, %c0_i32 : i32, i32
  }
  func.func @transform_1(%arg0: i32) -> (i32, i32) {
    %c0_i32 = arith.constant 0 : i32
    %c0_i32_0 = arith.constant 0 : i32
    %c0_i32_1 = arith.constant 0 : i32
    return %c0_i32, %c0_i32_0 : i32, i32
  }
  func.func @transform_2(%arg0: i32) -> (i32, i32) {
    %c0_i32 = arith.constant 0 : i32
    %c0_i32_0 = arith.constant 0 : i32
    %c0_i32_1 = arith.constant 0 : i32
    return %c0_i32, %c0_i32_0 : i32, i32
  }
  func.func @transform_3(%arg0: i32) -> (i32, i32) {
    %c0_i32 = arith.constant 0 : i32
    %c0_i32_0 = arith.constant 0 : i32
    return %arg0, %c0_i32 : i32, i32
  }
}

</mosaic_0001>

<llo_original>
// kernel: lstm_generator_forward.5
$region0: #{lstm_generator_forward.5}
  #allocation0 [shape = 'u32[]', space=smem, size = 0x4, offset = 0x4, fixed_abs, tag = 'smem constant byte address 0x4 - core index']
  #allocation1 [shape = 'u32[144,128]{1,0:T(1,128)}', space=vmem, size = 0x12000, scoped, tag = 'internal scratch']
  %s0 = inlined_call_operand.vmem [shape: f32[16,128], index: 0, kind: input, shape index: {}]
  %s1 = inlined_call_operand.vmem [shape: bf16[128,128], index: 1, kind: input, shape index: {}]
  %s2 = inlined_call_operand.vmem [shape: f32[1,128], index: 2, kind: input, shape index: {}]
  %s3 = inlined_call_operand.hbm [shape: f32[16,128], index: 3, kind: output, shape index: {}]
  %s4 = sld [smem:[#allocation0]]
  $region22: #{lstm_generator_forward.5} parent=0
    _
  %s6 = ssub.s32 1, %s4
  %s7 = scalar_select 0, %s6, %s4
  $region1: #{lstm_generator_forward.5} parent=0
    #allocation2 [shape = 'u8[8192]{0}', space=vmem, size = 0x2000, scoped, tag = 'output window, operand 0, single buffered']
    #allocation3 [shape = 's32[1]{0}', space=sflag, size = 0x4, scoped, tag = 'scoped memory for lstm_generator_forward.5']
    %8 = vsyncpa [#allocation3], 0
    // Predicated region
    $region2: #{lstm_generator_forward.5} parent=1 // pred_check
      _
    $region3: #{lstm_generator_forward.5} parent=1 // pred_check_branch
      %10 = sbr.rel (0) target = $region5
    $region4: #{lstm_generator_forward.5} parent=1 // pred_region
      _
    $region5: #{lstm_generator_forward.5} parent=1 // pred_fallthru
      _
    // Predicated region
    $region6: #{lstm_generator_forward.5} parent=1 // pred_check
      _
    $region7: #{lstm_generator_forward.5} parent=1 // pred_check_branch
      %12 = sbr.rel (0) target = $region9
    $region8: #{lstm_generator_forward.5} parent=1 // pred_region
      _
    $region9: #{lstm_generator_forward.5} parent=1 // pred_fallthru
      _
    // Predicated region
    $region10: #{lstm_generator_forward.5} parent=1 // pred_check
      _
    $region11: #{lstm_generator_forward.5} parent=1 // pred_check_branch
      %14 = sbr.rel (0) target = $region13
    $region12: #{lstm_generator_forward.5} parent=1 // pred_region
      _
    $region13: #{lstm_generator_forward.5} parent=1 // pred_fallthru
      _
    %v16 = vld [vmem:[%s0] sm:$0xff]
    %v17 = vld [vmem:[%s0 + $0x8] sm:$0xff]
    %v18 = vpack.c.bf16 %v17, %v16
    %v19 = vld [vmem:[%s1] sm:$0xf]
    %v20 = vld [vmem:[%s1 + $0x4] sm:$0xf]
    %v21 = vld [vmem:[%s1 + $0x8] sm:$0xf]
    %v22 = vld [vmem:[%s1 + $0xc] sm:$0xf]
    %v23 = vld [vmem:[%s1 + $0x10] sm:$0xf]
    %v24 = vld [vmem:[%s1 + $0x14] sm:$0xf]
    %v25 = vld [vmem:[%s1 + $0x18] sm:$0xf]
    %v26 = vld [vmem:[%s1 + $0x1c] sm:$0xf]
    %v27 = vld [vmem:[%s1 + $0x20] sm:$0xf]
    %v28 = vld [vmem:[%s1 + $0x24] sm:$0xf]
    %v29 = vld [vmem:[%s1 + $0x28] sm:$0xf]
    %v30 = vld [vmem:[%s1 + $0x2c] sm:$0xf]
    %v31 = vld [vmem:[%s1 + $0x30] sm:$0xf]
    %v32 = vld [vmem:[%s1 + $0x34] sm:$0xf]
    %v33 = vld [vmem:[%s1 + $0x38] sm:$0xf]
    %v34 = vld [vmem:[%s1 + $0x3c] sm:$0xf]
    %v35 = vld [vmem:[%s2] sm:$0x1]
    %v37 = vlaneseq
    %v38 = vshrl.u32 %v37, 7
    %v39 = vsub.s32 0, %v38
    %v40 = vrot.slane %v35, %v39
    %v58 = vunpack.c.l.b16 %v19
    %v59 = vunpack.c.l.b16 %v20
    %v60 = vunpack.c.l.b16 %v21
    %v61 = vunpack.c.l.b16 %v22
    %v62 = vunpack.c.l.b16 %v23
    %v63 = vunpack.c.l.b16 %v24
    %v64 = vunpack.c.l.b16 %v25
    %v65 = vunpack.c.l.b16 %v26
    %v66 = vunpack.c.l.b16 %v27
    %v67 = vunpack.c.l.b16 %v28
    %v68 = vunpack.c.l.b16 %v29
    %v69 = vunpack.c.l.b16 %v30
    %v70 = vunpack.c.l.b16 %v31
    %v71 = vunpack.c.l.b16 %v32
    %v72 = vunpack.c.l.b16 %v33
    %v73 = vunpack.c.l.b16 %v34
    %v74 = vpack.c.b16 %v59, %v58
    %v75 = vpack.c.b16 %v61, %v60
    %v76 = vpack.c.b16 %v63, %v62
    %v77 = vpack.c.b16 %v65, %v64
    %v78 = vpack.c.b16 %v67, %v66
    %v79 = vpack.c.b16 %v69, %v68
    %v80 = vpack.c.b16 %v71, %v70
    %v81 = vpack.c.b16 %v73, %v72
    %90 = vmatprep.subr.bf16.mxu0 0
    %91 = vmatpush1.bf16.msra.mxu0 %v74
    %92 = vmatprep.subr.bf16.mxu0 0
    %93 = vmatpush1.bf16.msra.mxu0 %v75
    %94 = vmatprep.subr.bf16.mxu0 0
    %95 = vmatpush1.bf16.msra.mxu0 %v76
    %96 = vmatprep.subr.bf16.mxu0 0
    %97 = vmatpush1.bf16.msra.mxu0 %v77
    %98 = vmatprep.subr.bf16.mxu0 0
    %99 = vmatpush1.bf16.msra.mxu0 %v78
    %100 = vmatprep.subr.bf16.mxu0 0
    %101 = vmatpush1.bf16.msra.mxu0 %v79
    %102 = vmatprep.subr.bf16.mxu0 0
    %103 = vmatpush1.bf16.msra.mxu0 %v80
    %104 = vmatprep.subr.bf16.mxu0 0
    %105 = vmatpush1.bf16.msra.mxu0 %v81
    %106 = vmatprep.subr.bf16.mxu0 0
    %107 = vmatpush1.bf16.msra.mxu0 0
    %108 = vmatprep.subr.bf16.mxu0 0
    %109 = vmatpush1.bf16.msra.mxu0 0
    %110 = vmatprep.subr.bf16.mxu0 0
    %111 = vmatpush1.bf16.msra.mxu0 0
    %112 = vmatprep.subr.bf16.mxu0 0
    %113 = vmatpush1.bf16.msra.mxu0 0
    %114 = vmatprep.subr.bf16.mxu0 0
    %115 = vmatpush1.bf16.msra.mxu0 0
    %116 = vmatprep.subr.bf16.mxu0 0
    %117 = vmatpush1.bf16.msra.mxu0 0
    %118 = vmatprep.subr.bf16.mxu0 0
    %119 = vmatpush1.bf16.msra.mxu0 0
    %120 = vmatprep.subr.bf16.mxu0 0
    %121 = vmatpush1.bf16.msra.mxu0 0
    %122 = vmatprep.mubr.bf16.mxu0 0
    %123 = vmatmul.mubr.bf16.gmra.mrb[0].mxu0 %v18
    %v124 = vpop.f32.mrb[0].mxu0
    %v125 = vadd.f32 %v40, %v124
    %v126 = vpop.f32.mrb[0].mxu0
    %v127 = vpop.f32.mrb[0].mxu0
    %v128 = vadd.f32 %v40, %v127
    %v129 = vpop.f32.mrb[0].mxu0
    %130 = vdwg.mxu0
    %131 = vmax.xlane.f32.xlu0 %v125
    %v132 = vpop.xlane.xlu0 %131
    %133 = vmax.xlane.f32.xlu0 %v128
    %v134 = vpop.xlane.xlu0 %133
    %v135 = vsub.f32 %v125, %v132
    %v136 = vsub.f32 %v128, %v134
    %v137 = vmul.f32 %v135, 1.442695
    %v138 = vpow.pop %v137
    %v139 = vmul.f32 %v136, 1.442695
    %v140 = vpow.pop %v139
    %141 = vadd.xlane.f32.xlu0 %v138
    %v142 = vpop.xlane.xlu0 %141
    %143 = vadd.xlane.f32.xlu0 %v140
    %v144 = vpop.xlane.xlu0 %143
    %v145 = vlog2.pop %v142
    %v146 = vmul.f32 %v145, 0.6931472
    %v147 = vlog2.pop %v144
    %v148 = vmul.f32 %v147, 0.6931472
    %v149 = vadd.f32 %v146, %v132
    %v150 = vadd.f32 %v148, %v134
    %v151 = vsub.f32 %v125, %v149
    %v152 = vsub.f32 %v128, %v150
    %153 = vst [vmem:[#allocation2] sm:$0xff] %v151
    %154 = vst [vmem:[#allocation2 + $0x8] sm:$0xff] %v152
    // Predicated region
    $region14: #{lstm_generator_forward.5} parent=1 // pred_check
      _
    $region15: #{lstm_generator_forward.5} parent=1 // pred_check_branch
      %156 = sbr.rel (0) target = $region17
    $region16: #{lstm_generator_forward.5} parent=1 // pred_region
      %s158 = ssub.s32 256, 256
      %159 = vsyncadd [#allocation3], %s158
      %s160 = sshll.u32 [#allocation2], 4
      %s161 = int_to_ptr.vmem [resolvable:$true] %s160
      %166 = dma.vmem_to_hbm [thread:$0]  %s161, 256, %s3, [#allocation3], 128, 128, 8
    $region17: #{lstm_generator_forward.5} parent=1 // pred_fallthru
      _
    // Predicated region
    $region18: #{lstm_generator_forward.5} parent=1 // pred_check
      _
    $region19: #{lstm_generator_forward.5} parent=1 // pred_check_branch
      %168 = sbr.rel (0) target = $region21
    $region20: #{lstm_generator_forward.5} parent=1 // pred_region
      %169 = dma.done [#allocation3], 256
    $region21: #{lstm_generator_forward.5} parent=1 // pred_fallthru
      _
    %170 = vsyncpa [#allocation3], 1

// kernel: lstm_generator_forward.3
$region0: #{lstm_generator_forward.3}
  #allocation0 [shape = 'u32[]', space=smem, size = 0x4, offset = 0x4, fixed_abs, tag = 'smem constant byte address 0x4 - core index']
  #allocation1 [shape = 'u32[144,128]{1,0:T(1,128)}', space=vmem, size = 0x12000, scoped, tag = 'internal scratch']
  %s0 = inlined_call_operand.vmem [shape: bf16[16,16], index: 0, kind: input, shape index: {}]
  %s1 = inlined_call_operand.vmem [shape: bf16[16,512], index: 1, kind: input, shape index: {}]
  %s2 = inlined_call_operand.vmem [shape: f32[1,512], index: 2, kind: input, shape index: {}]
  %s3 = inlined_call_operand.vmem [shape: f32[16,512], index: 3, kind: output, shape index: {}]
  %s4 = sld [smem:[#allocation0]]
  $region22: #{lstm_generator_forward.3} parent=0
    _
  %s6 = ssub.s32 1, %s4
  %s7 = scalar_select 0, %s6, %s4
  // Predicated region
  $region2: #{lstm_generator_forward.3} parent=0 // pred_check
    _
  $region3: #{lstm_generator_forward.3} parent=0 // pred_check_branch
    %9 = sbr.rel (0) target = $region5
  $region4: #{lstm_generator_forward.3} parent=0 // pred_region
    _
  $region5: #{lstm_generator_forward.3} parent=0 // pred_fallthru
    _
  // Predicated region
  $region6: #{lstm_generator_forward.3} parent=0 // pred_check
    _
  $region7: #{lstm_generator_forward.3} parent=0 // pred_check_branch
    %11 = sbr.rel (0) target = $region9
  $region8: #{lstm_generator_forward.3} parent=0 // pred_region
    _
  $region9: #{lstm_generator_forward.3} parent=0 // pred_fallthru
    _
  // Predicated region
  $region10: #{lstm_generator_forward.3} parent=0 // pred_check
    _
  $region11: #{lstm_generator_forward.3} parent=0 // pred_check_branch
    %13 = sbr.rel (0) target = $region13
  $region12: #{lstm_generator_forward.3} parent=0 // pred_region
    _
  $region13: #{lstm_generator_forward.3} parent=0 // pred_fallthru
    _
  %v15 = vld [vmem:[%s0] sm:$0xf]
  %v16 = vld [vmem:[%s0 + $0x4] sm:$0xf]
  %v17 = vld [vmem:[%s1] sm:$0xff]
  %v18 = vld [vmem:[%s1 + $0x8] sm:$0xff]
  %v19 = vld [vmem:[%s1 + $0x10] sm:$0xff]
  %v20 = vld [vmem:[%s1 + $0x18] sm:$0xff]
  %v21 = vld [vmem:[%s2] sm:$0xf]
  %v23 = vlaneseq
  %v24 = vshrl.u32 %v23, 7
  %v25 = vsub.s32 0, %v24
  %v26 = vrot.slane %v21, %v25
  %v27 = vlaneseq
  %v28 = vshrl.u32 %v27, 7
  %v29 = vsub.s32 1, %v28
  %v30 = vrot.slane %v21, %v29
  %v31 = vlaneseq
  %v32 = vshrl.u32 %v31, 7
  %v33 = vsub.s32 2, %v32
  %v34 = vrot.slane %v21, %v33
  %v35 = vlaneseq
  %v36 = vshrl.u32 %v35, 7
  %v37 = vsub.s32 3, %v36
  %v38 = vrot.slane %v21, %v37
  %v45 = vunpack.c.l.b16 %v15
  %v46 = vunpack.c.l.b16 %v16
  %v47 = vpack.c.b16 %v46, %v45
  %v52 = vunpack.c.l.b16 %v17
  %v53 = vunpack.c.h.b16 %v17
  %v54 = vunpack.c.l.b16 %v18
  %v55 = vunpack.c.h.b16 %v18
  %v56 = vunpack.c.l.b16 %v19
  %v57 = vunpack.c.h.b16 %v19
  %v58 = vunpack.c.l.b16 %v20
  %v59 = vunpack.c.h.b16 %v20
  %v60 = vpack.c.b16 %v56, %v52
  %v61 = vpack.c.b16 %v57, %v53
  %v62 = vpack.c.b16 %v58, %v54
  %v63 = vpack.c.b16 %v59, %v55
  %vm68 = vcmask 130048
  %v70 = vsel %vm68, %v47, 0
  %72 = vmatprep.subr.bf16.mxu0 %v61
  %73 = vmatpush1.bf16.msra.mxu0 %v60
  %74 = vmatprep.subr.bf16.mxu0 0
  %75 = vmatpush1.bf16.msra.mxu0 0
  %76 = vmatprep.subr.bf16.mxu0 0
  %77 = vmatpush1.bf16.msra.mxu0 0
  %78 = vmatprep.subr.bf16.mxu0 0
  %79 = vmatpush1.bf16.msra.mxu0 0
  %80 = vmatprep.subr.bf16.mxu0 0
  %81 = vmatpush1.bf16.msra.mxu0 0
  %82 = vmatprep.subr.bf16.mxu0 0
  %83 = vmatpush1.bf16.msra.mxu0 0
  %84 = vmatprep.subr.bf16.mxu0 0
  %85 = vmatpush1.bf16.msra.mxu0 0
  %86 = vmatprep.subr.bf16.mxu0 0
  %87 = vmatpush1.bf16.msra.mxu0 0
  %88 = vmatprep.subr.bf16.mxu0 0
  %89 = vmatpush1.bf16.msra.mxu0 0
  %90 = vmatprep.subr.bf16.mxu0 0
  %91 = vmatpush1.bf16.msra.mxu0 0
  %92 = vmatprep.subr.bf16.mxu0 0
  %93 = vmatpush1.bf16.msra.mxu0 0
  %94 = vmatprep.subr.bf16.mxu0 0
  %95 = vmatpush1.bf16.msra.mxu0 0
  %96 = vmatprep.subr.bf16.mxu0 0
  %97 = vmatpush1.bf16.msra.mxu0 0
  %98 = vmatprep.subr.bf16.mxu0 0
  %99 = vmatpush1.bf16.msra.mxu0 0
  %100 = vmatprep.subr.bf16.mxu0 0
  %101 = vmatpush1.bf16.msra.mxu0 0
  %102 = vmatprep.subr.bf16.mxu0 0
  %103 = vmatpush1.bf16.msra.mxu0 0
  %104 = vmatprep.mubr.bf16.mxu0 0
  %105 = vmatmul.mubr.bf16.gmra.mrb[0].mxu0 %v70
  %v106 = vpop.f32.mrb[0].mxu0
  %v107 = vadd.f32 %v26, %v106
  %v108 = vpop.f32.mrb[0].mxu0
  %v109 = vadd.f32 %v30, %v108
  %v110 = vpop.f32.mrb[0].mxu0
  %v111 = vadd.f32 %v26, %v110
  %v112 = vpop.f32.mrb[0].mxu0
  %v113 = vadd.f32 %v30, %v112
  %114 = vdwg.mxu0
  %115 = vmatprep.subr.bf16.mxu0 %v63
  %116 = vmatpush1.bf16.msra.mxu0 %v62
  %117 = vmatprep.subr.bf16.mxu0 0
  %118 = vmatpush1.bf16.msra.mxu0 0
  %119 = vmatprep.subr.bf16.mxu0 0
  %120 = vmatpush1.bf16.msra.mxu0 0
  %121 = vmatprep.subr.bf16.mxu0 0
  %122 = vmatpush1.bf16.msra.mxu0 0
  %123 = vmatprep.subr.bf16.mxu0 0
  %124 = vmatpush1.bf16.msra.mxu0 0
  %125 = vmatprep.subr.bf16.mxu0 0
  %126 = vmatpush1.bf16.msra.mxu0 0
  %127 = vmatprep.subr.bf16.mxu0 0
  %128 = vmatpush1.bf16.msra.mxu0 0
  %129 = vmatprep.subr.bf16.mxu0 0
  %130 = vmatpush1.bf16.msra.mxu0 0
  %131 = vmatprep.subr.bf16.mxu0 0
  %132 = vmatpush1.bf16.msra.mxu0 0
  %133 = vmatprep.subr.bf16.mxu0 0
  %134 = vmatpush1.bf16.msra.mxu0 0
  %135 = vmatprep.subr.bf16.mxu0 0
  %136 = vmatpush1.bf16.msra.mxu0 0
  %137 = vmatprep.subr.bf16.mxu0 0
  %138 = vmatpush1.bf16.msra.mxu0 0
  %139 = vmatprep.subr.bf16.mxu0 0
  %140 = vmatpush1.bf16.msra.mxu0 0
  %141 = vmatprep.subr.bf16.mxu0 0
  %142 = vmatpush1.bf16.msra.mxu0 0
  %143 = vmatprep.subr.bf16.mxu0 0
  %144 = vmatpush1.bf16.msra.mxu0 0
  %145 = vmatprep.subr.bf16.mxu0 0
  %146 = vmatpush1.bf16.msra.mxu0 0
  %147 = vmatprep.mubr.bf16.mxu0 0
  %148 = vmatmul.mubr.bf16.gmra.mrb[0].mxu0 %v70
  %v149 = vpop.f32.mrb[0].mxu0
  %v150 = vadd.f32 %v34, %v149
  %v151 = vpop.f32.mrb[0].mxu0
  %v152 = vadd.f32 %v38, %v151
  %v153 = vpop.f32.mrb[0].mxu0
  %v154 = vadd.f32 %v34, %v153
  %v155 = vpop.f32.mrb[0].mxu0
  %v156 = vadd.f32 %v38, %v155
  %157 = vdwg.mxu0
  %158 = vst [vmem:[%s3] sm:$0xff] %v107
  %159 = vst [vmem:[%s3 + $0x8] sm:$0xff] %v109
  %160 = vst [vmem:[%s3 + $0x10] sm:$0xff] %v150
  %161 = vst [vmem:[%s3 + $0x18] sm:$0xff] %v152
  %162 = vst [vmem:[%s3 + $0x20] sm:$0xff] %v111
  %163 = vst [vmem:[%s3 + $0x28] sm:$0xff] %v113
  %164 = vst [vmem:[%s3 + $0x30] sm:$0xff] %v154
  %165 = vst [vmem:[%s3 + $0x38] sm:$0xff] %v156
  // Predicated region
  $region14: #{lstm_generator_forward.3} parent=0 // pred_check
    _
  $region15: #{lstm_generator_forward.3} parent=0 // pred_check_branch
    %167 = sbr.rel (0) target = $region17
  $region16: #{lstm_generator_forward.3} parent=0 // pred_region
    _
  $region17: #{lstm_generator_forward.3} parent=0 // pred_fallthru
    _
  // Predicated region
  $region18: #{lstm_generator_forward.3} parent=0 // pred_check
    _
  $region19: #{lstm_generator_forward.3} parent=0 // pred_check_branch
    %169 = sbr.rel (0) target = $region21
  $region20: #{lstm_generator_forward.3} parent=0 // pred_region
    _
  $region21: #{lstm_generator_forward.3} parent=0 // pred_fallthru
    _

// kernel: lstm_generator_forward.4
$region0: #{lstm_generator_forward.4}
  #allocation0 [shape = 'u32[]', space=smem, size = 0x4, offset = 0x4, fixed_abs, tag = 'smem constant byte address 0x4 - core index']
  #allocation1 [shape = 'u32[144,128]{1,0:T(1,128)}', space=vmem, size = 0x12000, scoped, tag = 'internal scratch']
  #allocation2 [shape = 'f32[2,128]{1,0:T(2,128)}', space=vmem, size = 0x400, scoped, tag = 'scratch operand']
  #allocation3 [shape = 'f32[2,128]{1,0:T(2,128)}', space=vmem, size = 0x400, scoped, tag = 'scratch operand']
  %s0 = inlined_call_operand.vmem [shape: f32[8,2,512], index: 0, kind: input, shape index: {}]
  %s1 = inlined_call_operand.vmem [shape: f32[2,128], index: 1, kind: input, shape index: {}]
  %s2 = inlined_call_operand.vmem [shape: f32[2,128], index: 2, kind: input, shape index: {}]
  %s3 = inlined_call_operand.vmem [shape: bf16[128,512], index: 3, kind: input, shape index: {}]
  %s4 = inlined_call_operand.vmem [shape: f32[2,8,128], index: 4, kind: output, shape index: {0}]
  %s5 = inlined_call_operand.vmem [shape: f32[2,128], index: 5, kind: output, shape index: {1}]
  %s6 = inlined_call_operand.vmem [shape: f32[2,128], index: 6, kind: output, shape index: {2}]
  %7 = xla_tuple %s4, %s5, %s6
  %s8 = sld [smem:[#allocation0]]
  $region50: #{lstm_generator_forward.4} parent=0
    _
  %s10 = ssub.s32 1, %s8
  %s11 = scalar_select 0, %s10, %s8
  // Predicated region
  $region2: #{lstm_generator_forward.4} parent=0 // pred_check
    _
  $region3: #{lstm_generator_forward.4} parent=0 // pred_check_branch
    %13 = sbr.rel (0) target = $region5
  $region4: #{lstm_generator_forward.4} parent=0 // pred_region
    _
  $region5: #{lstm_generator_forward.4} parent=0 // pred_fallthru
    _
  // Predicated region
  $region6: #{lstm_generator_forward.4} parent=0 // pred_check
    _
  $region7: #{lstm_generator_forward.4} parent=0 // pred_check_branch
    %15 = sbr.rel (0) target = $region9
  $region8: #{lstm_generator_forward.4} parent=0 // pred_region
    _
  $region9: #{lstm_generator_forward.4} parent=0 // pred_fallthru
    _
  // Predicated region
  $region10: #{lstm_generator_forward.4} parent=0 // pred_check
    _
  $region11: #{lstm_generator_forward.4} parent=0 // pred_check_branch
    %17 = sbr.rel (0) target = $region13
  $region12: #{lstm_generator_forward.4} parent=0 // pred_region
    _
  $region13: #{lstm_generator_forward.4} parent=0 // pred_fallthru
    _
  // Predicated region
  $region14: #{lstm_generator_forward.4} parent=0 // pred_check
    _
  $region15: #{lstm_generator_forward.4} parent=0 // pred_check_branch
    %19 = sbr.rel (0) target = $region17
  $region16: #{lstm_generator_forward.4} parent=0 // pred_region
    _
  $region17: #{lstm_generator_forward.4} parent=0 // pred_fallthru
    _
  %p21 = scmp.eq.s32.totalorder 0, 0
  // Predicated region
  $region18: #{lstm_generator_forward.4} parent=0 // pred_check
    %p22 = pneg %p21
  $region19: #{lstm_generator_forward.4} parent=0 // pred_check_branch
    %24 = sbr.rel (%p22) target = $region21
  $region20: #{lstm_generator_forward.4} parent=0 // pred_region
    %v25 = vld [vmem:[%s1] sm:$0x3]
    %26 = vst [vmem:[#allocation2] sm:$0x3] %v25
    %v27 = vld [vmem:[%s2] sm:$0x3]
    %28 = vst [vmem:[#allocation3] sm:$0x3] %v27
  $region21: #{lstm_generator_forward.4} parent=0 // pred_fallthru
    _
  %v29 = vld [vmem:[#allocation2] sm:$0x3]
  %v30 = vld [vmem:[#allocation3] sm:$0x3]
  %v31 = vld [vmem:[%s0] sm:$0xff]
  %v32 = vpack.c.bf16 %v29, %v29
  %v33 = vld [vmem:[%s3] sm:$0xff]
  %v34 = vld [vmem:[%s3 + $0x8] sm:$0xff]
  %v35 = vld [vmem:[%s3 + $0x10] sm:$0xff]
  %v36 = vld [vmem:[%s3 + $0x18] sm:$0xff]
  %v37 = vld [vmem:[%s3 + $0x20] sm:$0xff]
  %v38 = vld [vmem:[%s3 + $0x28] sm:$0xff]
  %v39 = vld [vmem:[%s3 + $0x30] sm:$0xff]
  %v40 = vld [vmem:[%s3 + $0x38] sm:$0xff]
  %v41 = vld [vmem:[%s3 + $0x40] sm:$0xff]
  %v42 = vld [vmem:[%s3 + $0x48] sm:$0xff]
  %v43 = vld [vmem:[%s3 + $0x50] sm:$0xff]
  %v44 = vld [vmem:[%s3 + $0x58] sm:$0xff]
  %v45 = vld [vmem:[%s3 + $0x60] sm:$0xff]
  %v46 = vld [vmem:[%s3 + $0x68] sm:$0xff]
  %v47 = vld [vmem:[%s3 + $0x70] sm:$0xff]
  %v48 = vld [vmem:[%s3 + $0x78] sm:$0xff]
  %v49 = vld [vmem:[%s3 + $0x80] sm:$0xff]
  %v50 = vld [vmem:[%s3 + $0x88] sm:$0xff]
  %v51 = vld [vmem:[%s3 + $0x90] sm:$0xff]
  %v52 = vld [vmem:[%s3 + $0x98] sm:$0xff]
  %v53 = vld [vmem:[%s3 + $0xa0] sm:$0xff]
  %v54 = vld [vmem:[%s3 + $0xa8] sm:$0xff]
  %v55 = vld [vmem:[%s3 + $0xb0] sm:$0xff]
  %v56 = vld [vmem:[%s3 + $0xb8] sm:$0xff]
  %v57 = vld [vmem:[%s3 + $0xc0] sm:$0xff]
  %v58 = vld [vmem:[%s3 + $0xc8] sm:$0xff]
  %v59 = vld [vmem:[%s3 + $0xd0] sm:$0xff]
  %v60 = vld [vmem:[%s3 + $0xd8] sm:$0xff]
  %v61 = vld [vmem:[%s3 + $0xe0] sm:$0xff]
  %v62 = vld [vmem:[%s3 + $0xe8] sm:$0xff]
  %v63 = vld [vmem:[%s3 + $0xf0] sm:$0xff]
  %v64 = vld [vmem:[%s3 + $0xf8] sm:$0xff]
  %v97 = vunpack.c.l.b16 %v33
  %v98 = vunpack.c.h.b16 %v33
  %v99 = vunpack.c.l.b16 %v34
  %v100 = vunpack.c.h.b16 %v34
  %v101 = vunpack.c.l.b16 %v35
  %v102 = vunpack.c.h.b16 %v35
  %v103 = vunpack.c.l.b16 %v36
  %v104 = vunpack.c.h.b16 %v36
  %v105 = vunpack.c.l.b16 %v37
  %v106 = vunpack.c.h.b16 %v37
  %v107 = vunpack.c.l.b16 %v38
  %v108 = vunpack.c.h.b16 %v38
  %v109 = vunpack.c.l.b16 %v39
  %v110 = vunpack.c.h.b16 %v39
  %v111 = vunpack.c.l.b16 %v40
  %v112 = vunpack.c.h.b16 %v40
  %v113 = vunpack.c.l.b16 %v41
  %v114 = vunpack.c.h.b16 %v41
  %v115 = vunpack.c.l.b16 %v42
  %v116 = vunpack.c.h.b16 %v42
  %v117 = vunpack.c.l.b16 %v43
  %v118 = vunpack.c.h.b16 %v43
  %v119 = vunpack.c.l.b16 %v44
  %v120 = vunpack.c.h.b16 %v44
  %v121 = vunpack.c.l.b16 %v45
  %v122 = vunpack.c.h.b16 %v45
  %v123 = vunpack.c.l.b16 %v46
  %v124 = vunpack.c.h.b16 %v46
  %v125 = vunpack.c.l.b16 %v47
  %v126 = vunpack.c.h.b16 %v47
  %v127 = vunpack.c.l.b16 %v48
  %v128 = vunpack.c.h.b16 %v48
  %v129 = vunpack.c.l.b16 %v49
  %v130 = vunpack.c.h.b16 %v49
  %v131 = vunpack.c.l.b16 %v50
  %v132 = vunpack.c.h.b16 %v50
  %v133 = vunpack.c.l.b16 %v51
  %v134 = vunpack.c.h.b16 %v51
  %v135 = vunpack.c.l.b16 %v52
  %v136 = vunpack.c.h.b16 %v52
  %v137 = vunpack.c.l.b16 %v53
  %v138 = vunpack.c.h.b16 %v53
  %v139 = vunpack.c.l.b16 %v54
  %v140 = vunpack.c.h.b16 %v54
  %v141 = vunpack.c.l.b16 %v55
  %v142 = vunpack.c.h.b16 %v55
  %v143 = vunpack.c.l.b16 %v56
  %v144 = vunpack.c.h.b16 %v56
  %v145 = vunpack.c.l.b16 %v57
  %v146 = vunpack.c.h.b16 %v57
  %v147 = vunpack.c.l.b16 %v58
  %v148 = vunpack.c.h.b16 %v58
  %v149 = vunpack.c.l.b16 %v59
  %v150 = vunpack.c.h.b16 %v59
  %v151 = vunpack.c.l.b16 %v60
  %v152 = vunpack.c.h.b16 %v60
  %v153 = vunpack.c.l.b16 %v61
  %v154 = vunpack.c.h.b16 %v61
  %v155 = vunpack.c.l.b16 %v62
  %v156 = vunpack.c.h.b16 %v62
  %v157 = vunpack.c.l.b16 %v63
  %v158 = vunpack.c.h.b16 %v63
  %v159 = vunpack.c.l.b16 %v64
  %v160 = vunpack.c.h.b16 %v64
  %v161 = vpack.c.b16 %v101, %v97
  %v162 = vpack.c.b16 %v102, %v98
  %v163 = vpack.c.b16 %v103, %v99
  %v164 = vpack.c.b16 %v104, %v100
  %v165 = vpack.c.b16 %v109, %v105
  %v166 = vpack.c.b16 %v110, %v106
  %v167 = vpack.c.b16 %v111, %v107
  %v168 = vpack.c.b16 %v112, %v108
  %v169 = vpack.c.b16 %v117, %v113
  %v170 = vpack.c.b16 %v118, %v114
  %v171 = vpack.c.b16 %v119, %v115
  %v172 = vpack.c.b16 %v120, %v116
  %v173 = vpack.c.b16 %v125, %v121
  %v174 = vpack.c.b16 %v126, %v122
  %v175 = vpack.c.b16 %v127, %v123
  %v176 = vpack.c.b16 %v128, %v124
  %v177 = vpack.c.b16 %v133, %v129
  %v178 = vpack.c.b16 %v134, %v130
  %v179 = vpack.c.b16 %v135, %v131
  %v180 = vpack.c.b16 %v136, %v132
  %v181 = vpack.c.b16 %v141, %v137
  %v182 = vpack.c.b16 %v142, %v138
  %v183 = vpack.c.b16 %v143, %v139
  %v184 = vpack.c.b16 %v144, %v140
  %v185 = vpack.c.b16 %v149, %v145
  %v186 = vpack.c.b16 %v150, %v146
  %v187 = vpack.c.b16 %v151, %v147
  %v188 = vpack.c.b16 %v152, %v148
  %v189 = vpack.c.b16 %v157, %v153
  %v190 = vpack.c.b16 %v158, %v154
  %v191 = vpack.c.b16 %v159, %v155
  %v192 = vpack.c.b16 %v160, %v156
  %225 = vmatprep.subr.bf16.mxu0 %v162
  %226 = vmatpush1.bf16.msra.mxu0 %v161
  %227 = vmatprep.subr.bf16.mxu0 %v166
  %228 = vmatpush1.bf16.msra.mxu0 %v165
  %229 = vmatprep.subr.bf16.mxu0 %v170
  %230 = vmatpush1.bf16.msra.mxu0 %v169
  %231 = vmatprep.subr.bf16.mxu0 %v174
  %232 = vmatpush1.bf16.msra.mxu0 %v173
  %233 = vmatprep.subr.bf16.mxu0 %v178
  %234 = vmatpush1.bf16.msra.mxu0 %v177
  %235 = vmatprep.subr.bf16.mxu0 %v182
  %236 = vmatpush1.bf16.msra.mxu0 %v181
  %237 = vmatprep.subr.bf16.mxu0 %v186
  %238 = vmatpush1.bf16.msra.mxu0 %v185
  %239 = vmatprep.subr.bf16.mxu0 %v190
  %240 = vmatpush1.bf16.msra.mxu0 %v189
  %241 = vmatprep.subr.bf16.mxu0 0
  %242 = vmatpush1.bf16.msra.mxu0 0
  %243 = vmatprep.subr.bf16.mxu0 0
  %244 = vmatpush1.bf16.msra.mxu0 0
  %245 = vmatprep.subr.bf16.mxu0 0
  %246 = vmatpush1.bf16.msra.mxu0 0
  %247 = vmatprep.subr.bf16.mxu0 0
  %248 = vmatpush1.bf16.msra.mxu0 0
  %249 = vmatprep.subr.bf16.mxu0 0
  %250 = vmatpush1.bf16.msra.mxu0 0
  %251 = vmatprep.subr.bf16.mxu0 0
  %252 = vmatpush1.bf16.msra.mxu0 0
  %253 = vmatprep.subr.bf16.mxu0 0
  %254 = vmatpush1.bf16.msra.mxu0 0
  %255 = vmatprep.subr.bf16.mxu0 0
  %256 = vmatpush1.bf16.msra.mxu0 0
  %257 = vmatprep.mubr.bf16.mxu0 0
  %258 = vmatmul.mubr.bf16.gmra.mrb[0].mxu0 %v32
  %v259 = vpop.f32.mrb[0].mxu0
  %v260 = vadd.f32 0.0, %v259
  %v261 = vpop.f32.mrb[0].mxu0
  %v262 = vadd.f32 0.0, %v261
  %v263 = vpop.f32.mrb[0].mxu0
  %v264 = vpop.f32.mrb[0].mxu0
  %265 = vdwg.mxu0
  %266 = vmatprep.subr.bf16.mxu0 %v164
  %267 = vmatpush1.bf16.msra.mxu0 %v163
  %268 = vmatprep.subr.bf16.mxu0 %v168
  %269 = vmatpush1.bf16.msra.mxu0 %v167
  %270 = vmatprep.subr.bf16.mxu0 %v172
  %271 = vmatpush1.bf16.msra.mxu0 %v171
  %272 = vmatprep.subr.bf16.mxu0 %v176
  %273 = vmatpush1.bf16.msra.mxu0 %v175
  %274 = vmatprep.subr.bf16.mxu0 %v180
  %275 = vmatpush1.bf16.msra.mxu0 %v179
  %276 = vmatprep.subr.bf16.mxu0 %v184
  %277 = vmatpush1.bf16.msra.mxu0 %v183
  %278 = vmatprep.subr.bf16.mxu0 %v188
  %279 = vmatpush1.bf16.msra.mxu0 %v187
  %280 = vmatprep.subr.bf16.mxu0 %v192
  %281 = vmatpush1.bf16.msra.mxu0 %v191
  %282 = vmatprep.subr.bf16.mxu0 0
  %283 = vmatpush1.bf16.msra.mxu0 0
  %284 = vmatprep.subr.bf16.mxu0 0
  %285 = vmatpush1.bf16.msra.mxu0 0
  %286 = vmatprep.subr.bf16.mxu0 0
  %287 = vmatpush1.bf16.msra.mxu0 0
  %288 = vmatprep.subr.bf16.mxu0 0
  %289 = vmatpush1.bf16.msra.mxu0 0
  %290 = vmatprep.subr.bf16.mxu0 0
  %291 = vmatpush1.bf16.msra.mxu0 0
  %292 = vmatprep.subr.bf16.mxu0 0
  %293 = vmatpush1.bf16.msra.mxu0 0
  %294 = vmatprep.subr.bf16.mxu0 0
  %295 = vmatpush1.bf16.msra.mxu0 0
  %296 = vmatprep.subr.bf16.mxu0 0
  %297 = vmatpush1.bf16.msra.mxu0 0
  %298 = vmatprep.mubr.bf16.mxu0 0
  %299 = vmatmul.mubr.bf16.gmra.mrb[0].mxu0 %v32
  %v300 = vpop.f32.mrb[0].mxu0
  %v301 = vadd.f32 0.0, %v300
  %v302 = vpop.f32.mrb[0].mxu0
  %v303 = vadd.f32 0.0, %v302
  %v304 = vpop.f32.mrb[0].mxu0
  %v305 = vpop.f32.mrb[0].mxu0
  %306 = vdwg.mxu0
  %v311 = vcombine.low %v260, %v262
  %v312 = vcombine.low %v301, %v303
  %v314 = vunpack.c.l.s4 1983009808
  %v315 = vunpack.c.0.s8 %v314
  %v316 = vlaneseq
  %v317 = vshrl.u32 %v316, 7
  %v318 = vsub.s32 %v315, %v317
  %v319 = vrot.slane %v311, %v318
  %v321 = vunpack.c.l.s4 1983009808
  %v322 = vunpack.c.0.s8 %v321
  %v323 = vlaneseq
  %v324 = vshrl.u32 %v323, 7
  %v325 = vsub.s32 %v322, %v324
  %v326 = vrot.slane %v312, %v325
  %v327 = vcombine.low %v319, %v326
  %v329 = vadd.f32 %v31, %v327
  %v330 = vxor.u32 %v329, 2147483648
  %v331 = vmul.f32 %v330, 1.442695
  %v332 = vpow.pop %v331
  %v333 = vadd.f32 %v332, 1.0
  %v334 = vrcp.pop %v333
  %v335 = vmul.f32 1.0, %v334
  %v337 = vrot.slane %v329, 2
  %v339 = vxor.u32 %v337, 2147483648
  %v340 = vmul.f32 %v339, 1.442695
  %v341 = vpow.pop %v340
  %v342 = vadd.f32 %v341, 1.0
  %v343 = vrcp.pop %v342
  %v344 = vmul.f32 1.0, %v343
  %v345 = vrot.slane %v329, 4
  %v347 = vtanh.pop %v345
  %v348 = vrot.slane %v329, 6
  %v350 = vxor.u32 %v348, 2147483648
  %v351 = vmul.f32 %v350, 1.442695
  %v352 = vpow.pop %v351
  %v353 = vadd.f32 %v352, 1.0
  %v354 = vrcp.pop %v353
  %v355 = vmul.f32 1.0, %v354
  %v356 = vmul.f32 %v344, %v30
  %v357 = vmul.f32 %v335, %v347
  %v358 = vadd.f32 %v356, %v357
  %v359 = vtanh.pop %v358
  %v360 = vmul.f32 %v355, %v359
  %v363 = vunpack.c.l.s4 1966171168
  %v364 = vunpack.c.0.s8 %v363
  %v365 = vlaneseq
  %v366 = vshrl.u32 %v365, 7
  %v367 = vsub.s32 %v364, %v366
  %v368 = vrot.slane %v360, %v367
  %v369 = vcombine.high %v368, %v368
  %372 = vst [vmem:[%s4] sm:$0x1] %v368
  %373 = vst [vmem:[%s4 + $0x8] sm:$0x1] %v369
  %s374 = scalar_lea.vmem %s0, 8
  %v375 = vld [vmem:[%s374] sm:$0xff]
  %v376 = vpack.c.bf16 %v360, %v360
  %v377 = vld [vmem:[%s3] sm:$0xff]
  %v378 = vld [vmem:[%s3 + $0x8] sm:$0xff]
  %v379 = vld [vmem:[%s3 + $0x10] sm:$0xff]
  %v380 = vld [vmem:[%s3 + $0x18] sm:$0xff]
  %v381 = vld [vmem:[%s3 + $0x20] sm:$0xff]
  %v382 = vld [vmem:[%s3 + $0x28] sm:$0xff]
  %v383 = vld [vmem:[%s3 + $0x30] sm:$0xff]
  %v384 = vld [vmem:[%s3 + $0x38] sm:$0xff]
  %v385 = vld [vmem:[%s3 + $0x40] sm:$0xff]
  %v386 = vld [vmem:[%s3 + $0x48] sm:$0xff]
  %v387 = vld [vmem:[%s3 + $0x50] sm:$0xff]
  %v388 = vld [vmem:[%s3 + $0x58] sm:$0xff]
  %v389 = vld [vmem:[%s3 + $0x60] sm:$0xff]
  %v390 = vld [vmem:[%s3 + $0x68] sm:$0xff]
  %v391 = vld [vmem:[%s3 + $0x70] sm:$0xff]
  %v392 = vld [vmem:[%s3 + $0x78] sm:$0xff]
  %v393 = vld [vmem:[%s3 + $0x80] sm:$0xff]
  %v394 = vld [vmem:[%s3 + $0x88] sm:$0xff]
  %v395 = vld [vmem:[%s3 + $0x90] sm:$0xff]
  %v396 = vld [vmem:[%s3 + $0x98] sm:$0xff]
  %v397 = vld [vmem:[%s3 + $0xa0] sm:$0xff]
  %v398 = vld [vmem:[%s3 + $0xa8] sm:$0xff]
  %v399 = vld [vmem:[%s3 + $0xb0] sm:$0xff]
  %v400 = vld [vmem:[%s3 + $0xb8] sm:$0xff]
  %v401 = vld [vmem:[%s3 + $0xc0] sm:$0xff]
  %v402 = vld [vmem:[%s3 + $0xc8] sm:$0xff]
  %v403 = vld [vmem:[%s3 + $0xd0] sm:$0xff]
  %v404 = vld [vmem:[%s3 + $0xd8] sm:$0xff]
  %v405 = vld [vmem:[%s3 + $0xe0] sm:$0xff]
  %v406 = vld [vmem:[%s3 + $0xe8] sm:$0xff]
  %v407 = vld [vmem:[%s3 + $0xf0] sm:$0xff]
  %v408 = vld [vmem:[%s3 + $0xf8] sm:$0xff]
  %v441 = vunpack.c.l.b16 %v377
  %v442 = vunpack.c.h.b16 %v377
  %v443 = vunpack.c.l.b16 %v378
  %v444 = vunpack.c.h.b16 %v378
  %v445 = vunpack.c.l.b16 %v379
  %v446 = vunpack.c.h.b16 %v379
  %v447 = vunpack.c.l.b16 %v380
  %v448 = vunpack.c.h.b16 %v380
  %v449 = vunpack.c.l.b16 %v381
  %v450 = vunpack.c.h.b16 %v381
  %v451 = vunpack.c.l.b16 %v382
  %v452 = vunpack.c.h.b16 %v382
  %v453 = vunpack.c.l.b16 %v383
  %v454 = vunpack.c.h.b16 %v383
  %v455 = vunpack.c.l.b16 %v384
  %v456 = vunpack.c.h.b16 %v384
  %v457 = vunpack.c.l.b16 %v385
  %v458 = vunpack.c.h.b16 %v385
  %v459 = vunpack.c.l.b16 %v386
  %v460 = vunpack.c.h.b16 %v386
  %v461 = vunpack.c.l.b16 %v387
  %v462 = vunpack.c.h.b16 %v387
  %v463 = vunpack.c.l.b16 %v388
  %v464 = vunpack.c.h.b16 %v388
  %v465 = vunpack.c.l.b16 %v389
  %v466 = vunpack.c.h.b16 %v389
  %v467 = vunpack.c.l.b16 %v390
  %v468 = vunpack.c.h.b16 %v390
  %v469 = vunpack.c.l.b16 %v391
  %v470 = vunpack.c.h.b16 %v391
  %v471 = vunpack.c.l.b16 %v392
  %v472 = vunpack.c.h.b16 %v392
  %v473 = vunpack.c.l.b16 %v393
  %v474 = vunpack.c.h.b16 %v393
  %v475 = vunpack.c.l.b16 %v394
  %v476 = vunpack.c.h.b16 %v394
  %v477 = vunpack.c.l.b16 %v395
  %v478 = vunpack.c.h.b16 %v395
  %v479 = vunpack.c.l.b16 %v396
  %v480 = vunpack.c.h.b16 %v396
  %v481 = vunpack.c.l.b16 %v397
  %v482 = vunpack.c.h.b16 %v397
  %v483 = vunpack.c.l.b16 %v398
  %v484 = vunpack.c.h.b16 %v398
  %v485 = vunpack.c.l.b16 %v399
  %v486 = vunpack.c.h.b16 %v399
  %v487 = vunpack.c.l.b16 %v400
  %v488 = vunpack.c.h.b16 %v400
  %v489 = vunpack.c.l.b16 %v401
  %v490 = vunpack.c.h.b16 %v401
  %v491 = vunpack.c.l.b16 %v402
  %v492 = vunpack.c.h.b16 %v402
  %v493 = vunpack.c.l.b16 %v403
  %v494 = vunpack.c.h.b16 %v403
  %v495 = vunpack.c.l.b16 %v404
  %v496 = vunpack.c.h.b16 %v404
  %v497 = vunpack.c.l.b16 %v405
  %v498 = vunpack.c.h.b16 %v405
  %v499 = vunpack.c.l.b16 %v406
  %v500 = vunpack.c.h.b16 %v406
  %v501 = vunpack.c.l.b16 %v407
  %v502 = vunpack.c.h.b16 %v407
  %v503 = vunpack.c.l.b16 %v408
  %v504 = vunpack.c.h.b16 %v408
  %v505 = vpack.c.b16 %v445, %v441
  %v506 = vpack.c.b16 %v446, %v442
  %v507 = vpack.c.b16 %v447, %v443
  %v508 = vpack.c.b16 %v448, %v444
  %v509 = vpack.c.b16 %v453, %v449
  %v510 = vpack.c.b16 %v454, %v450
  %v511 = vpack.c.b16 %v455, %v451
  %v512 = vpack.c.b16 %v456, %v452
  %v513 = vpack.c.b16 %v461, %v457
  %v514 = vpack.c.b16 %v462, %v458
  %v515 = vpack.c.b16 %v463, %v459
  %v516 = vpack.c.b16 %v464, %v460
  %v517 = vpack.c.b16 %v469, %v465
  %v518 = vpack.c.b16 %v470, %v466
  %v519 = vpack.c.b16 %v471, %v467
  %v520 = vpack.c.b16 %v472, %v468
  %v521 = vpack.c.b16 %v477, %v473
  %v522 = vpack.c.b16 %v478, %v474
  %v523 = vpack.c.b16 %v479, %v475
  %v524 = vpack.c.b16 %v480, %v476
  %v525 = vpack.c.b16 %v485, %v481
  %v526 = vpack.c.b16 %v486, %v482
  %v527 = vpack.c.b16 %v487, %v483
  %v528 = vpack.c.b16 %v488, %v484
  %v529 = vpack.c.b16 %v493, %v489
  %v530 = vpack.c.b16 %v494, %v490
  %v531 = vpack.c.b16 %v495, %v491
  %v532 = vpack.c.b16 %v496, %v492
  %v533 = vpack.c.b16 %v501, %v497
  %v534 = vpack.c.b16 %v502, %v498
  %v535 = vpack.c.b16 %v503, %v499
  %v536 = vpack.c.b16 %v504, %v500
  %569 = vmatprep.subr.bf16.mxu0 %v506
  %570 = vmatpush1.bf16.msra.mxu0 %v505
  %571 = vmatprep.subr.bf16.mxu0 %v510
  %572 = vmatpush1.bf16.msra.mxu0 %v509
  %573 = vmatprep.subr.bf16.mxu0 %v514
  %574 = vmatpush1.bf16.msra.mxu0 %v513
  %575 = vmatprep.subr.bf16.mxu0 %v518
  %576 = vmatpush1.bf16.msra.mxu0 %v517
  %577 = vmatprep.subr.bf16.mxu0 %v522
  %578 = vmatpush1.bf16.msra.mxu0 %v521
  %579 = vmatprep.subr.bf16.mxu0 %v526
  %580 = vmatpush1.bf16.msra.mxu0 %v525
  %581 = vmatprep.subr.bf16.mxu0 %v530
  %582 = vmatpush1.bf16.msra.mxu0 %v529
  %583 = vmatprep.subr.bf16.mxu0 %v534
  %584 = vmatpush1.bf16.msra.mxu0 %v533
  %585 = vmatprep.subr.bf16.mxu0 0
  %586 = vmatpush1.bf16.msra.mxu0 0
  %587 = vmatprep.subr.bf16.mxu0 0
  %588 = vmatpush1.bf16.msra.mxu0 0
  %589 = vmatprep.subr.bf16.mxu0 0
  %590 = vmatpush1.bf16.msra.mxu0 0
  %591 = vmatprep.subr.bf16.mxu0 0
  %592 = vmatpush1.bf16.msra.mxu0 0
  %593 = vmatprep.subr.bf16.mxu0 0
  %594 = vmatpush1.bf16.msra.mxu0 0
  %595 = vmatprep.subr.bf16.mxu0 0
  %596 = vmatpush1.bf16.msra.mxu0 0
  %597 = vmatprep.subr.bf16.mxu0 0
  %598 = vmatpush1.bf16.msra.mxu0 0
  %599 = vmatprep.subr.bf16.mxu0 0
  %600 = vmatpush1.bf16.msra.mxu0 0
  %601 = vmatprep.mubr.bf16.mxu0 0
  %602 = vmatmul.mubr.bf16.gmra.mrb[0].mxu0 %v376
  %v603 = vpop.f32.mrb[0].mxu0
  %v604 = vadd.f32 0.0, %v603
  %v605 = vpop.f32.mrb[0].mxu0
  %v606 = vadd.f32 0.0, %v605
  %v607 = vpop.f32.mrb[0].mxu0
  %v608 = vpop.f32.mrb[0].mxu0
  %609 = vdwg.mxu0
  %610 = vmatprep.subr.bf16.mxu0 %v508
  %611 = vmatpush1.bf16.msra.mxu0 %v507
  %612 = vmatprep.subr.bf16.mxu0 %v512
  %613 = vmatpush1.bf16.msra.mxu0 %v511
  %614 = vmatprep.subr.bf16.mxu0 %v516
  %615 = vmatpush1.bf16.msra.mxu0 %v515
  %616 = vmatprep.subr.bf16.mxu0 %v520
  %617 = vmatpush1.bf16.msra.mxu0 %v519
  %618 = vmatprep.subr.bf16.mxu0 %v524
  %619 = vmatpush1.bf16.msra.mxu0 %v523
  %620 = vmatprep.subr.bf16.mxu0 %v528
  %621 = vmatpush1.bf16.msra.mxu0 %v527
  %622 = vmatprep.subr.bf16.mxu0 %v532
  %623 = vmatpush1.bf16.msra.mxu0 %v531
  %624 = vmatprep.subr.bf16.mxu0 %v536
  %625 = vmatpush1.bf16.msra.mxu0 %v535
  %626 = vmatprep.subr.bf16.mxu0 0
  %627 = vmatpush1.bf16.msra.mxu0 0
  %628 = vmatprep.subr.bf16.mxu0 0
  %629 = vmatpush1.bf16.msra.mxu0 0
  %630 = vmatprep.subr.bf16.mxu0 0
  %631 = vmatpush1.bf16.msra.mxu0 0
  %632 = vmatprep.subr.bf16.mxu0 0
  %633 = vmatpush1.bf16.msra.mxu0 0
  %634 = vmatprep.subr.bf16.mxu0 0
  %635 = vmatpush1.bf16.msra.mxu0 0
  %636 = vmatprep.subr.bf16.mxu0 0
  %637 = vmatpush1.bf16.msra.mxu0 0
  %638 = vmatprep.subr.bf16.mxu0 0
  %639 = vmatpush1.bf16.msra.mxu0 0
  %640 = vmatprep.subr.bf16.mxu0 0
  %641 = vmatpush1.bf16.msra.mxu0 0
  %642 = vmatprep.mubr.bf16.mxu0 0
  %643 = vmatmul.mubr.bf16.gmra.mrb[0].mxu0 %v376
  %v644 = vpop.f32.mrb[0].mxu0
  %v645 = vadd.f32 0.0, %v644
  %v646 = vpop.f32.mrb[0].mxu0
  %v647 = vadd.f32 0.0, %v646
  %v648 = vpop.f32.mrb[0].mxu0
  %v649 = vpop.f32.mrb[0].mxu0
  %650 = vdwg.mxu0
  %v655 = vcombine.low %v604, %v606
  %v656 = vcombine.low %v645, %v647
  %v658 = vunpack.c.l.s4 1983009808
  %v659 = vunpack.c.0.s8 %v658
  %v660 = vlaneseq
  %v661 = vshrl.u32 %v660, 7
  %v662 = vsub.s32 %v659, %v661
  %v663 = vrot.slane %v655, %v662
  %v665 = vunpack.c.l.s4 1983009808
  %v666 = vunpack.c.0.s8 %v665
  %v667 = vlaneseq
  %v668 = vshrl.u32 %v667, 7
  %v669 = vsub.s32 %v666, %v668
  %v670 = vrot.slane %v656, %v669
  %v671 = vcombine.low %v663, %v670
  %v673 = vadd.f32 %v375, %v671
  %v674 = vxor.u32 %v673, 2147483648
  %v675 = vmul.f32 %v674, 1.442695
  %v676 = vpow.pop %v675
  %v677 = vadd.f32 %v676, 1.0
  %v678 = vrcp.pop %v677
  %v679 = vmul.f32 1.0, %v678
  %v681 = vrot.slane %v673, 2
  %v683 = vxor.u32 %v681, 2147483648
  %v684 = vmul.f32 %v683, 1.442695
  %v685 = vpow.pop %v684
  %v686 = vadd.f32 %v685, 1.0
  %v687 = vrcp.pop %v686
  %v688 = vmul.f32 1.0, %v687
  %v689 = vrot.slane %v673, 4
  %v691 = vtanh.pop %v689
  %v692 = vrot.slane %v673, 6
  %v694 = vxor.u32 %v692, 2147483648
  %v695 = vmul.f32 %v694, 1.442695
  %v696 = vpow.pop %v695
  %v697 = vadd.f32 %v696, 1.0
  %v698 = vrcp.pop %v697
  %v699 = vmul.f32 1.0, %v698
  %v700 = vmul.f32 %v688, %v358
  %v701 = vmul.f32 %v679, %v691
  %v702 = vadd.f32 %v700, %v701
  %v703 = vtanh.pop %v702
  %v704 = vmul.f32 %v699, %v703
  %v707 = vunpack.c.l.s4 1966171168
  %v708 = vunpack.c.0.s8 %v707
  %v709 = vlaneseq
  %v710 = vshrl.u32 %v709, 7
  %v711 = vsub.s32 %v708, %v710
  %v712 = vrot.slane %v704, %v711
  %v713 = vcombine.high %v712, %v712
  %716 = vst [vmem:[%s4 + $0x1] sm:$0x1] %v712
  %717 = vst [vmem:[%s4 + $0x9] sm:$0x1] %v713
  %s718 = scalar_lea.vmem %s0, 16
  %v719 = vld [vmem:[%s718] sm:$0xff]
  %v720 = vpack.c.bf16 %v704, %v704
  %v721 = vld [vmem:[%s3] sm:$0xff]
  %v722 = vld [vmem:[%s3 + $0x8] sm:$0xff]
  %v723 = vld [vmem:[%s3 + $0x10] sm:$0xff]
  %v724 = vld [vmem:[%s3 + $0x18] sm:$0xff]
  %v725 = vld [vmem:[%s3 + $0x20] sm:$0xff]
  %v726 = vld [vmem:[%s3 + $0x28] sm:$0xff]
  %v727 = vld [vmem:[%s3 + $0x30] sm:$0xff]
  %v728 = vld [vmem:[%s3 + $0x38] sm:$0xff]
  %v729 = vld [vmem:[%s3 + $0x40] sm:$0xff]
  %v730 = vld [vmem:[%s3 + $0x48] sm:$0xff]
  %v731 = vld [vmem:[%s3 + $0x50] sm:$0xff]
  %v732 = vld [vmem:[%s3 + $0x58] sm:$0xff]
  %v733 = vld [vmem:[%s3 + $0x60] sm:$0xff]
  %v734 = vld [vmem:[%s3 + $0x68] sm:$0xff]
  %v735 = vld [vmem:[%s3 + $0x70] sm:$0xff]
  %v736 = vld [vmem:[%s3 + $0x78] sm:$0xff]
  %v737 = vld [vmem:[%s3 + $0x80] sm:$0xff]
  %v738 = vld [vmem:[%s3 + $0x88] sm:$0xff]
  %v739 = vld [vmem:[%s3 + $0x90] sm:$0xff]
  %v740 = vld [vmem:[%s3 + $0x98] sm:$0xff]
  %v741 = vld [vmem:[%s3 + $0xa0] sm:$0xff]
  %v742 = vld [vmem:[%s3 + $0xa8] sm:$0xff]
  %v743 = vld [vmem:[%s3 + $0xb0] sm:$0xff]
  %v744 = vld [vmem:[%s3 + $0xb8] sm:$0xff]
  %v745 = vld [vmem:[%s3 + $0xc0] sm:$0xff]
  %v746 = vld [vmem:[%s3 + $0xc8] sm:$0xff]
  %v747 = vld [vmem:[%s3 + $0xd0] sm:$0xff]
  %v748 = vld [vmem:[%s3 + $0xd8] sm:$0xff]
  %v749 = vld [vmem:[%s3 + $0xe0] sm:$0xff]
  %v750 = vld [vmem:[%s3 + $0xe8] sm:$0xff]
  %v751 = vld [vmem:[%s3 + $0xf0] sm:$0xff]
  %v752 = vld [vmem:[%s3 + $0xf8] sm:$0xff]
  %v785 = vunpack.c.l.b16 %v721
  %v786 = vunpack.c.h.b16 %v721
  %v787 = vunpack.c.l.b16 %v722
  %v788 = vunpack.c.h.b16 %v722
  %v789 = vunpack.c.l.b16 %v723
  %v790 = vunpack.c.h.b16 %v723
  %v791 = vunpack.c.l.b16 %v724
  %v792 = vunpack.c.h.b16 %v724
  %v793 = vunpack.c.l.b16 %v725
  %v794 = vunpack.c.h.b16 %v725
  %v795 = vunpack.c.l.b16 %v726
  %v796 = vunpack.c.h.b16 %v726
  %v797 = vunpack.c.l.b16 %v727
  %v798 = vunpack.c.h.b16 %v727
  %v799 = vunpack.c.l.b16 %v728
  %v800 = vunpack.c.h.b16 %v728
  %v801 = vunpack.c.l.b16 %v729
  %v802 = vunpack.c.h.b16 %v729
  %v803 = vunpack.c.l.b16 %v730
  %v804 = vunpack.c.h.b16 %v730
  %v805 = vunpack.c.l.b16 %v731
  %v806 = vunpack.c.h.b16 %v731
  %v807 = vunpack.c.l.b16 %v732
  %v808 = vunpack.c.h.b16 %v732
  %v809 = vunpack.c.l.b16 %v733
  %v810 = vunpack.c.h.b16 %v733
  %v811 = vunpack.c.l.b16 %v734
  %v812 = vunpack.c.h.b16 %v734
  %v813 = vunpack.c.l.b16 %v735
  %v814 = vunpack.c.h.b16 %v735
  %v815 = vunpack.c.l.b16 %v736
  %v816 = vunpack.c.h.b16 %v736
  %v817 = vunpack.c.l.b16 %v737
  %v818 = vunpack.c.h.b16 %v737
  %v819 = vunpack.c.l.b16 %v738
  %v820 = vunpack.c.h.b16 %v738
  %v821 = vunpack.c.l.b16 %v739
  %v822 = vunpack.c.h.b16 %v739
  %v823 = vunpack.c.l.b16 %v740
  %v824 = vunpack.c.h.b16 %v740
  %v825 = vunpack.c.l.b16 %v741
  %v826 = vunpack.c.h.b16 %v741
  %v827 = vunpack.c.l.b16 %v742
  %v828 = vunpack.c.h.b16 %v742
  %v829 = vunpack.c.l.b16 %v743
  %v830 = vunpack.c.h.b16 %v743
  %v831 = vunpack.c.l.b16 %v744
  %v832 = vunpack.c.h.b16 %v744
  %v833 = vunpack.c.l.b16 %v745
  %v834 = vunpack.c.h.b16 %v745
  %v835 = vunpack.c.l.b16 %v746
  %v836 = vunpack.c.h.b16 %v746
  %v837 = vunpack.c.l.b16 %v747
  %v838 = vunpack.c.h.b16 %v747
  %v839 = vunpack.c.l.b16 %v748
  %v840 = vunpack.c.h.b16 %v748
  %v841 = vunpack.c.l.b16 %v749
  %v842 = vunpack.c.h.b16 %v749
  %v843 = vunpack.c.l.b16 %v750
  %v844 = vunpack.c.h.b16 %v750
  %v845 = vunpack.c.l.b16 %v751
  %v846 = vunpack.c.h.b16 %v751
  %v847 = vunpack.c.l.b16 %v752
  %v848 = vunpack.c.h.b16 %v752
  %v849 = vpack.c.b16 %v789, %v785
  %v850 = vpack.c.b16 %v790, %v786
  %v851 = vpack.c.b16 %v791, %v787
  %v852 = vpack.c.b16 %v792, %v788
  %v853 = vpack.c.b16 %v797, %v793
  %v854 = vpack.c.b16 %v798, %v794
  %v855 = vpack.c.b16 %v799, %v795
  %v856 = vpack.c.b16 %v800, %v796
  %v857 = vpack.c.b16 %v805, %v801
  %v858 = vpack.c.b16 %v806, %v802
  %v859 = vpack.c.b16 %v807, %v803
  %v860 = vpack.c.b16 %v808, %v804
  %v861 = vpack.c.b16 %v813, %v809
  %v862 = vpack.c.b16 %v814, %v810
  %v863 = vpack.c.b16 %v815, %v811
  %v864 = vpack.c.b16 %v816, %v812
  %v865 = vpack.c.b16 %v821, %v817
  %v866 = vpack.c.b16 %v822, %v818
  %v867 = vpack.c.b16 %v823, %v819
  %v868 = vpack.c.b16 %v824, %v820
  %v869 = vpack.c.b16 %v829, %v825
  %v870 = vpack.c.b16 %v830, %v826
  %v871 = vpack.c.b16 %v831, %v827
  %v872 = vpack.c.b16 %v832, %v828
  %v873 = vpack.c.b16 %v837, %v833
  %v874 = vpack.c.b16 %v838, %v834
  %v875 = vpack.c.b16 %v839, %v835
  %v876 = vpack.c.b16 %v840, %v836
  %v877 = vpack.c.b16 %v845, %v841
  %v878 = vpack.c.b16 %v846, %v842
  %v879 = vpack.c.b16 %v847, %v843
  %v880 = vpack.c.b16 %v848, %v844
  %913 = vmatprep.subr.bf16.mxu0 %v850
  %914 = vmatpush1.bf16.msra.mxu0 %v849
  %915 = vmatprep.subr.bf16.mxu0 %v854
  %916 = vmatpush1.bf16.msra.mxu0 %v853
  %917 = vmatprep.subr.bf16.mxu0 %v858
  %918 = vmatpush1.bf16.msra.mxu0 %v857
  %919 = vmatprep.subr.bf16.mxu0 %v862
  %920 = vmatpush1.bf16.msra.mxu0 %v861
  %921 = vmatprep.subr.bf16.mxu0 %v866
  %922 = vmatpush1.bf16.msra.mxu0 %v865
  %923 = vmatprep.subr.bf16.mxu0 %v870
  %924 = vmatpush1.bf16.msra.mxu0 %v869
  %925 = vmatprep.subr.bf16.mxu0 %v874
  %926 = vmatpush1.bf16.msra.mxu0 %v873
  %927 = vmatprep.subr.bf16.mxu0 %v878
  %928 = vmatpush1.bf16.msra.mxu0 %v877
  %929 = vmatprep.subr.bf16.mxu0 0
  %930 = vmatpush1.bf16.msra.mxu0 0
  %931 = vmatprep.subr.bf16.mxu0 0
  %932 = vmatpush1.bf16.msra.mxu0 0
  %933 = vmatprep.subr.bf16.mxu0 0
  %934 = vmatpush1.bf16.msra.mxu0 0
  %935 = vmatprep.subr.bf16.mxu0 0
  %936 = vmatpush1.bf16.msra.mxu0 0
  %937 = vmatprep.subr.bf16.mxu0 0
  %938 = vmatpush1.bf16.msra.mxu0 0
  %939 = vmatprep.subr.bf16.mxu0 0
  %940 = vmatpush1.bf16.msra.mxu0 0
  %941 = vmatprep.subr.bf16.mxu0 0
  %942 = vmatpush1.bf16.msra.mxu0 0
  %943 = vmatprep.subr.bf16.mxu0 0
  %944 = vmatpush1.bf16.msra.mxu0 0
  %945 = vmatprep.mubr.bf16.mxu0 0
  %946 = vmatmul.mubr.bf16.gmra.mrb[0].mxu0 %v720
  %v947 = vpop.f32.mrb[0].mxu0
  %v948 = vadd.f32 0.0, %v947
  %v949 = vpop.f32.mrb[0].mxu0
  %v950 = vadd.f32 0.0, %v949
  %v951 = vpop.f32.mrb[0].mxu0
  %v952 = vpop.f32.mrb[0].mxu0
  %953 = vdwg.mxu0
  %954 = vmatprep.subr.bf16.mxu0 %v852
  %955 = vmatpush1.bf16.msra.mxu0 %v851
  %956 = vmatprep.subr.bf16.mxu0 %v856
  %957 = vmatpush1.bf16.msra.mxu0 %v855
  %958 = vmatprep.subr.bf16.mxu0 %v860
  %959 = vmatpush1.bf16.msra.mxu0 %v859
  %960 = vmatprep.subr.bf16.mxu0 %v864
  %961 = vmatpush1.bf16.msra.mxu0 %v863
  %962 = vmatprep.subr.bf16.mxu0 %v868
  %963 = vmatpush1.bf16.msra.mxu0 %v867
  %964 = vmatprep.subr.bf16.mxu0 %v872
  %965 = vmatpush1.bf16.msra.mxu0 %v871
  %966 = vmatprep.subr.bf16.mxu0 %v876
  %967 = vmatpush1.bf16.msra.mxu0 %v875
  %968 = vmatprep.subr.bf16.mxu0 %v880
  %969 = vmatpush1.bf16.msra.mxu0 %v879
  %970 = vmatprep.subr.bf16.mxu0 0
  %971 = vmatpush1.bf16.msra.mxu0 0
  %972 = vmatprep.subr.bf16.mxu0 0
  %973 = vmatpush1.bf16.msra.mxu0 0
  %974 = vmatprep.subr.bf16.mxu0 0
  %975 = vmatpush1.bf16.msra.mxu0 0
  %976 = vmatprep.subr.bf16.mxu0 0
  %977 = vmatpush1.bf16.msra.mxu0 0
  %978 = vmatprep.subr.bf16.mxu0 0
  %979 = vmatpush1.bf16.msra.mxu0 0
  %980 = vmatprep.subr.bf16.mxu0 0
  %981 = vmatpush1.bf16.msra.mxu0 0
  %982 = vmatprep.subr.bf16.mxu0 0
  %983 = vmatpush1.bf16.msra.mxu0 0
  %984 = vmatprep.subr.bf16.mxu0 0
  %985 = vmatpush1.bf16.msra.mxu0 0
  %986 = vmatprep.mubr.bf16.mxu0 0
  %987 = vmatmul.mubr.bf16.gmra.mrb[0].mxu0 %v720
  %v988 = vpop.f32.mrb[0].mxu0
  %v989 = vadd.f32 0.0, %v988
  %v990 = vpop.f32.mrb[0].mxu0
  %v991 = vadd.f32 0.0, %v990
  %v992 = vpop.f32.mrb[0].mxu0
  %v993 = vpop.f32.mrb[0].mxu0
  %994 = vdwg.mxu0
  %v999 = vcombine.low %v948, %v950
  %v1000 = vcombine.low %v989, %v991
  %v1002 = vunpack.c.l.s4 1983009808
  %v1003 = vunpack.c.0.s8 %v1002
  %v1004 = vlaneseq
  %v1005 = vshrl.u32 %v1004, 7
  %v1006 = vsub.s32 %v1003, %v1005
  %v1007 = vrot.slane %v999, %v1006
  %v1009 = vunpack.c.l.s4 1983009808
  %v1010 = vunpack.c.0.s8 %v1009
  %v1011 = vlaneseq
  %v1012 = vshrl.u32 %v1011, 7
  %v1013 = vsub.s32 %v1010, %v1012
  %v1014 = vrot.slane %v1000, %v1013
  %v1015 = vcombine.low %v1007, %v1014
  %v1017 = vadd.f32 %v719, %v1015
  %v1018 = vxor.u32 %v1017, 2147483648
  %v1019 = vmul.f32 %v1018, 1.442695
  %v1020 = vpow.pop %v1019
  %v1021 = vadd.f32 %v1020, 1.0
  %v1022 = vrcp.pop %v1021
  %v1023 = vmul.f32 1.0, %v1022
  %v1025 = vrot.slane %v1017, 2
  %v1027 = vxor.u32 %v1025, 2147483648
  %v1028 = vmul.f32 %v1027, 1.442695
  %v1029 = vpow.pop %v1028
  %v1030 = vadd.f32 %v1029, 1.0
  %v1031 = vrcp.pop %v1030
  %v1032 = vmul.f32 1.0, %v1031
  %v1033 = vrot.slane %v1017, 4
  %v1035 = vtanh.pop %v1033
  %v1036 = vrot.slane %v1017, 6
  %v1038 = vxor.u32 %v1036, 2147483648
  %v1039 = vmul.f32 %v1038, 1.442695
  %v1040 = vpow.pop %v1039
  %v1041 = vadd.f32 %v1040, 1.0
  %v1042 = vrcp.pop %v1041
  %v1043 = vmul.f32 1.0, %v1042
  %v1044 = vmul.f32 %v1032, %v702
  %v1045 = vmul.f32 %v1023, %v1035
  %v1046 = vadd.f32 %v1044, %v1045
  %v1047 = vtanh.pop %v1046
  %v1048 = vmul.f32 %v1043, %v1047
  %v1051 = vunpack.c.l.s4 1966171168
  %v1052 = vunpack.c.0.s8 %v1051
  %v1053 = vlaneseq
  %v1054 = vshrl.u32 %v1053, 7
  %v1055 = vsub.s32 %v1052, %v1054
  %v1056 = vrot.slane %v1048, %v1055
  %v1057 = vcombine.high %v1056, %v1056
  %1060 = vst [vmem:[%s4 + $0x2] sm:$0x1] %v1056
  %1061 = vst [vmem:[%s4 + $0xa] sm:$0x1] %v1057
  %s1062 = scalar_lea.vmem %s0, 24
  %v1063 = vld [vmem:[%s1062] sm:$0xff]
  %v1064 = vpack.c.bf16 %v1048, %v1048
  %v1065 = vld [vmem:[%s3] sm:$0xff]
  %v1066 = vld [vmem:[%s3 + $0x8] sm:$0xff]
  %v1067 = vld [vmem:[%s3 + $0x10] sm:$0xff]
  %v1068 = vld [vmem:[%s3 + $0x18] sm:$0xff]
  %v1069 = vld [vmem:[%s3 + $0x20] sm:$0xff]
  %v1070 = vld [vmem:[%s3 + $0x28] sm:$0xff]
  %v1071 = vld [vmem:[%s3 + $0x30] sm:$0xff]
  %v1072 = vld [vmem:[%s3 + $0x38] sm:$0xff]
  %v1073 = vld [vmem:[%s3 + $0x40] sm:$0xff]
  %v1074 = vld [vmem:[%s3 + $0x48] sm:$0xff]
  %v1075 = vld [vmem:[%s3 + $0x50] sm:$0xff]
  %v1076 = vld [vmem:[%s3 + $0x58] sm:$0xff]
  %v1077 = vld [vmem:[%s3 + $0x60] sm:$0xff]
  %v1078 = vld [vmem:[%s3 + $0x68] sm:$0xff]
  %v1079 = vld [vmem:[%s3 + $0x70] sm:$0xff]
  %v1080 = vld [vmem:[%s3 + $0x78] sm:$0xff]
  %v1081 = vld [vmem:[%s3 + $0x80] sm:$0xff]
  %v1082 = vld [vmem:[%s3 + $0x88] sm:$0xff]
  %v1083 = vld [vmem:[%s3 + $0x90] sm:$0xff]
  %v1084 = vld [vmem:[%s3 + $0x98] sm:$0xff]
  %v1085 = vld [vmem:[%s3 + $0xa0] sm:$0xff]
  %v1086 = vld [vmem:[%s3 + $0xa8] sm:$0xff]
  %v1087 = vld [vmem:[%s3 + $0xb0] sm:$0xff]
  %v1088 = vld [vmem:[%s3 + $0xb8] sm:$0xff]
  %v1089 = vld [vmem:[%s3 + $0xc0] sm:$0xff]
  %v1090 = vld [vmem:[%s3 + $0xc8] sm:$0xff]
  %v1091 = vld [vmem:[%s3 + $0xd0] sm:$0xff]
  %v1092 = vld [vmem:[%s3 + $0xd8] sm:$0xff]
  %v1093 = vld [vmem:[%s3 + $0xe0] sm:$0xff]
  %v1094 = vld [vmem:[%s3 + $0xe8] sm:$0xff]
  %v1095 = vld [vmem:[%s3 + $0xf0] sm:$0xff]
  %v1096 = vld [vmem:[%s3 + $0xf8] sm:$0xff]
  %v1129 = vunpack.c.l.b16 %v1065
  %v1130 = vunpack.c.h.b16 %v1065
  %v1131 = vunpack.c.l.b16 %v1066
  %v1132 = vunpack.c.h.b16 %v1066
  %v1133 = vunpack.c.l.b16 %v1067
  %v1134 = vunpack.c.h.b16 %v1067
  %v1135 = vunpack.c.l.b16 %v1068
  %v1136 = vunpack.c.h.b16 %v1068
  %v1137 = vunpack.c.l.b16 %v1069
  %v1138 = vunpack.c.h.b16 %v1069
  %v1139 = vunpack.c.l.b16 %v1070
  %v1140 = vunpack.c.h.b16 %v1070
  %v1141 = vunpack.c.l.b16 %v1071
  %v1142 = vunpack.c.h.b16 %v1071
  %v1143 = vunpack.c.l.b16 %v1072
  %v1144 = vunpack.c.h.b16 %v1072
  %v1145 = vunpack.c.l.b16 %v1073
  %v1146 = vunpack.c.h.b16 %v1073
  %v1147 = vunpack.c.l.b16 %v1074
  %v1148 = vunpack.c.h.b16 %v1074
  %v1149 = vunpack.c.l.b16 %v1075
  %v1150 = vunpack.c.h.b16 %v1075
  %v1151 = vunpack.c.l.b16 %v1076
  %v1152 = vunpack.c.h.b16 %v1076
  %v1153 = vunpack.c.l.b16 %v1077
  %v1154 = vunpack.c.h.b16 %v1077
  %v1155 = vunpack.c.l.b16 %v1078
  %v1156 = vunpack.c.h.b16 %v1078
  %v1157 = vunpack.c.l.b16 %v1079
  %v1158 = vunpack.c.h.b16 %v1079
  %v1159 = vunpack.c.l.b16 %v1080
  %v1160 = vunpack.c.h.b16 %v1080
  %v1161 = vunpack.c.l.b16 %v1081
  %v1162 = vunpack.c.h.b16 %v1081
  %v1163 = vunpack.c.l.b16 %v1082
  %v1164 = vunpack.c.h.b16 %v1082
  %v1165 = vunpack.c.l.b16 %v1083
  %v1166 = vunpack.c.h.b16 %v1083
  %v1167 = vunpack.c.l.b16 %v1084
  %v1168 = vunpack.c.h.b16 %v1084
  %v1169 = vunpack.c.l.b16 %v1085
  %v1170 = vunpack.c.h.b16 %v1085
  %v1171 = vunpack.c.l.b16 %v1086
  %v1172 = vunpack.c.h.b16 %v1086
  %v1173 = vunpack.c.l.b16 %v1087
  %v1174 = vunpack.c.h.b16 %v1087
  %v1175 = vunpack.c.l.b16 %v1088
  %v1176 = vunpack.c.h.b16 %v1088
  %v1177 = vunpack.c.l.b16 %v1089
  %v1178 = vunpack.c.h.b16 %v1089
  %v1179 = vunpack.c.l.b16 %v1090
  %v1180 = vunpack.c.h.b16 %v1090
  %v1181 = vunpack.c.l.b16 %v1091
  %v1182 = vunpack.c.h.b16 %v1091
  %v1183 = vunpack.c.l.b16 %v1092
  %v1184 = vunpack.c.h.b16 %v1092
  %v1185 = vunpack.c.l.b16 %v1093
  %v1186 = vunpack.c.h.b16 %v1093
  %v1187 = vunpack.c.l.b16 %v1094
  %v1188 = vunpack.c.h.b16 %v1094
  %v1189 = vunpack.c.l.b16 %v1095
  %v1190 = vunpack.c.h.b16 %v1095
  %v1191 = vunpack.c.l.b16 %v1096
  %v1192 = vunpack.c.h.b16 %v1096
  %v1193 = vpack.c.b16 %v1133, %v1129
  %v1194 = vpack.c.b16 %v1134, %v1130
  %v1195 = vpack.c.b16 %v1135, %v1131
  %v1196 = vpack.c.b16 %v1136, %v1132
  %v1197 = vpack.c.b16 %v1141, %v1137
  %v1198 = vpack.c.b16 %v1142, %v1138
  %v1199 = vpack.c.b16 %v1143, %v1139
  %v1200 = vpack.c.b16 %v1144, %v1140
  %v1201 = vpack.c.b16 %v1149, %v1145
  %v1202 = vpack.c.b16 %v1150, %v1146
  %v1203 = vpack.c.b16 %v1151, %v1147
  %v1204 = vpack.c.b16 %v1152, %v1148
  %v1205 = vpack.c.b16 %v1157, %v1153
  %v1206 = vpack.c.b16 %v1158, %v1154
  %v1207 = vpack.c.b16 %v1159, %v1155
  %v1208 = vpack.c.b16 %v1160, %v1156
  %v1209 = vpack.c.b16 %v1165, %v1161
  %v1210 = vpack.c.b16 %v1166, %v1162
  %v1211 = vpack.c.b16 %v1167, %v1163
  %v1212 = vpack.c.b16 %v1168, %v1164
  %v1213 = vpack.c.b16 %v1173, %v1169
  %v1214 = vpack.c.b16 %v1174, %v1170
  %v1215 = vpack.c.b16 %v1175, %v1171
  %v1216 = vpack.c.b16 %v1176, %v1172
  %v1217 = vpack.c.b16 %v1181, %v1177
  %v1218 = vpack.c.b16 %v1182, %v1178
  %v1219 = vpack.c.b16 %v1183, %v1179
  %v1220 = vpack.c.b16 %v1184, %v1180
  %v1221 = vpack.c.b16 %v1189, %v1185
  %v1222 = vpack.c.b16 %v1190, %v1186
  %v1223 = vpack.c.b16 %v1191, %v1187
  %v1224 = vpack.c.b16 %v1192, %v1188
  %1257 = vmatprep.subr.bf16.mxu0 %v1194
  %1258 = vmatpush1.bf16.msra.mxu0 %v1193
  %1259 = vmatprep.subr.bf16.mxu0 %v1198
  %1260 = vmatpush1.bf16.msra.mxu0 %v1197
  %1261 = vmatprep.subr.bf16.mxu0 %v1202
  %1262 = vmatpush1.bf16.msra.mxu0 %v1201
  %1263 = vmatprep.subr.bf16.mxu0 %v1206
  %1264 = vmatpush1.bf16.msra.mxu0 %v1205
  %1265 = vmatprep.subr.bf16.mxu0 %v1210
  %1266 = vmatpush1.bf16.msra.mxu0 %v1209
  %1267 = vmatprep.subr.bf16.mxu0 %v1214
  %1268 = vmatpush1.bf16.msra.mxu0 %v1213
  %1269 = vmatprep.subr.bf16.mxu0 %v1218
  %1270 = vmatpush1.bf16.msra.mxu0 %v1217
  %1271 = vmatprep.subr.bf16.mxu0 %v1222
  %1272 = vmatpush1.bf16.msra.mxu0 %v1221
  %1273 = vmatprep.subr.bf16.mxu0 0
  %1274 = vmatpush1.bf16.msra.mxu0 0
  %1275 = vmatprep.subr.bf16.mxu0 0
  %1276 = vmatpush1.bf16.msra.mxu0 0
  %1277 = vmatprep.subr.bf16.mxu0 0
  %1278 = vmatpush1.bf16.msra.mxu0 0
  %1279 = vmatprep.subr.bf16.mxu0 0
  %1280 = vmatpush1.bf16.msra.mxu0 0
  %1281 = vmatprep.subr.bf16.mxu0 0
  %1282 = vmatpush1.bf16.msra.mxu0 0
  %1283 = vmatprep.subr.bf16.mxu0 0
  %1284 = vmatpush1.bf16.msra.mxu0 0
  %1285 = vmatprep.subr.bf16.mxu0 0
  %1286 = vmatpush1.bf16.msra.mxu0 0
  %1287 = vmatprep.subr.bf16.mxu0 0
  %1288 = vmatpush1.bf16.msra.mxu0 0
  %1289 = vmatprep.mubr.bf16.mxu0 0
  %1290 = vmatmul.mubr.bf16.gmra.mrb[0].mxu0 %v1064
  %v1291 = vpop.f32.mrb[0].mxu0
  %v1292 = vadd.f32 0.0, %v1291
  %v1293 = vpop.f32.mrb[0].mxu0
  %v1294 = vadd.f32 0.0, %v1293
  %v1295 = vpop.f32.mrb[0].mxu0
  %v1296 = vpop.f32.mrb[0].mxu0
  %1297 = vdwg.mxu0
  %1298 = vmatprep.subr.bf16.mxu0 %v1196
  %1299 = vmatpush1.bf16.msra.mxu0 %v1195
  %1300 = vmatprep.subr.bf16.mxu0 %v1200
  %1301 = vmatpush1.bf16.msra.mxu0 %v1199
  %1302 = vmatprep.subr.bf16.mxu0 %v1204
  %1303 = vmatpush1.bf16.msra.mxu0 %v1203
  %1304 = vmatprep.subr.bf16.mxu0 %v1208
  %1305 = vmatpush1.bf16.msra.mxu0 %v1207
  %1306 = vmatprep.subr.bf16.mxu0 %v1212
  %1307 = vmatpush1.bf16.msra.mxu0 %v1211
  %1308 = vmatprep.subr.bf16.mxu0 %v1216
  %1309 = vmatpush1.bf16.msra.mxu0 %v1215
  %1310 = vmatprep.subr.bf16.mxu0 %v1220
  %1311 = vmatpush1.bf16.msra.mxu0 %v1219
  %1312 = vmatprep.subr.bf16.mxu0 %v1224
  %1313 = vmatpush1.bf16.msra.mxu0 %v1223
  %1314 = vmatprep.subr.bf16.mxu0 0
  %1315 = vmatpush1.bf16.msra.mxu0 0
  %1316 = vmatprep.subr.bf16.mxu0 0
  %1317 = vmatpush1.bf16.msra.mxu0 0
  %1318 = vmatprep.subr.bf16.mxu0 0
  %1319 = vmatpush1.bf16.msra.mxu0 0
  %1320 = vmatprep.subr.bf16.mxu0 0
  %1321 = vmatpush1.bf16.msra.mxu0 0
  %1322 = vmatprep.subr.bf16.mxu0 0
  %1323 = vmatpush1.bf16.msra.mxu0 0
  %1324 = vmatprep.subr.bf16.mxu0 0
  %1325 = vmatpush1.bf16.msra.mxu0 0
  %1326 = vmatprep.subr.bf16.mxu0 0
  %1327 = vmatpush1.bf16.msra.mxu0 0
  %1328 = vmatprep.subr.bf16.mxu0 0
  %1329 = vmatpush1.bf16.msra.mxu0 0
  %1330 = vmatprep.mubr.bf16.mxu0 0
  %1331 = vmatmul.mubr.bf16.gmra.mrb[0].mxu0 %v1064
  %v1332 = vpop.f32.mrb[0].mxu0
  %v1333 = vadd.f32 0.0, %v1332
  %v1334 = vpop.f32.mrb[0].mxu0
  %v1335 = vadd.f32 0.0, %v1334
  %v1336 = vpop.f32.mrb[0].mxu0
  %v1337 = vpop.f32.mrb[0].mxu0
  %1338 = vdwg.mxu0
  %v1343 = vcombine.low %v1292, %v1294
  %v1344 = vcombine.low %v1333, %v1335
  %v1346 = vunpack.c.l.s4 1983009808
  %v1347 = vunpack.c.0.s8 %v1346
  %v1348 = vlaneseq
  %v1349 = vshrl.u32 %v1348, 7
  %v1350 = vsub.s32 %v1347, %v1349
  %v1351 = vrot.slane %v1343, %v1350
  %v1353 = vunpack.c.l.s4 1983009808
  %v1354 = vunpack.c.0.s8 %v1353
  %v1355 = vlaneseq
  %v1356 = vshrl.u32 %v1355, 7
  %v1357 = vsub.s32 %v1354, %v1356
  %v1358 = vrot.slane %v1344, %v1357
  %v1359 = vcombine.low %v1351, %v1358
  %v1361 = vadd.f32 %v1063, %v1359
  %v1362 = vxor.u32 %v1361, 2147483648
  %v1363 = vmul.f32 %v1362, 1.442695
  %v1364 = vpow.pop %v1363
  %v1365 = vadd.f32 %v1364, 1.0
  %v1366 = vrcp.pop %v1365
  %v1367 = vmul.f32 1.0, %v1366
  %v1369 = vrot.slane %v1361, 2
  %v1371 = vxor.u32 %v1369, 2147483648
  %v1372 = vmul.f32 %v1371, 1.442695
  %v1373 = vpow.pop %v1372
  %v1374 = vadd.f32 %v1373, 1.0
  %v1375 = vrcp.pop %v1374
  %v1376 = vmul.f32 1.0, %v1375
  %v1377 = vrot.slane %v1361, 4
  %v1379 = vtanh.pop %v1377
  %v1380 = vrot.slane %v1361, 6
  %v1382 = vxor.u32 %v1380, 2147483648
  %v1383 = vmul.f32 %v1382, 1.442695
  %v1384 = vpow.pop %v1383
  %v1385 = vadd.f32 %v1384, 1.0
  %v1386 = vrcp.pop %v1385
  %v1387 = vmul.f32 1.0, %v1386
  %v1388 = vmul.f32 %v1376, %v1046
  %v1389 = vmul.f32 %v1367, %v1379
  %v1390 = vadd.f32 %v1388, %v1389
  %v1391 = vtanh.pop %v1390
  %v1392 = vmul.f32 %v1387, %v1391
  %v1395 = vunpack.c.l.s4 1966171168
  %v1396 = vunpack.c.0.s8 %v1395
  %v1397 = vlaneseq
  %v1398 = vshrl.u32 %v1397, 7
  %v1399 = vsub.s32 %v1396, %v1398
  %v1400 = vrot.slane %v1392, %v1399
  %v1401 = vcombine.high %v1400, %v1400
  %1404 = vst [vmem:[%s4 + $0x3] sm:$0x1] %v1400
  %1405 = vst [vmem:[%s4 + $0xb] sm:$0x1] %v1401
  %s1406 = scalar_lea.vmem %s0, 32
  %v1407 = vld [vmem:[%s1406] sm:$0xff]
  %v1408 = vpack.c.bf16 %v1392, %v1392
  %v1409 = vld [vmem:[%s3] sm:$0xff]
  %v1410 = vld [vmem:[%s3 + $0x8] sm:$0xff]
  %v1411 = vld [vmem:[%s3 + $0x10] sm:$0xff]
  %v1412 = vld [vmem:[%s3 + $0x18] sm:$0xff]
  %v1413 = vld [vmem:[%s3 + $0x20] sm:$0xff]
  %v1414 = vld [vmem:[%s3 + $0x28] sm:$0xff]
  %v1415 = vld [vmem:[%s3 + $0x30] sm:$0xff]
  %v1416 = vld [vmem:[%s3 + $0x38] sm:$0xff]
  %v1417 = vld [vmem:[%s3 + $0x40] sm:$0xff]
  %v1418 = vld [vmem:[%s3 + $0x48] sm:$0xff]
  %v1419 = vld [vmem:[%s3 + $0x50] sm:$0xff]
  %v1420 = vld [vmem:[%s3 + $0x58] sm:$0xff]
  %v1421 = vld [vmem:[%s3 + $0x60] sm:$0xff]
  %v1422 = vld [vmem:[%s3 + $0x68] sm:$0xff]
  %v1423 = vld [vmem:[%s3 + $0x70] sm:$0xff]
  %v1424 = vld [vmem:[%s3 + $0x78] sm:$0xff]
  %v1425 = vld [vmem:[%s3 + $0x80] sm:$0xff]
  %v1426 = vld [vmem:[%s3 + $0x88] sm:$0xff]
  %v1427 = vld [vmem:[%s3 + $0x90] sm:$0xff]
  %v1428 = vld [vmem:[%s3 + $0x98] sm:$0xff]
  %v1429 = vld [vmem:[%s3 + $0xa0] sm:$0xff]
  %v1430 = vld [vmem:[%s3 + $0xa8] sm:$0xff]
  %v1431 = vld [vmem:[%s3 + $0xb0] sm:$0xff]
  %v1432 = vld [vmem:[%s3 + $0xb8] sm:$0xff]
  %v1433 = vld [vmem:[%s3 + $0xc0] sm:$0xff]
  %v1434 = vld [vmem:[%s3 + $0xc8] sm:$0xff]
  %v1435 = vld [vmem:[%s3 + $0xd0] sm:$0xff]
  %v1436 = vld [vmem:[%s3 + $0xd8] sm:$0xff]
  %v1437 = vld [vmem:[%s3 + $0xe0] sm:$0xff]
  %v1438 = vld [vmem:[%s3 + $0xe8] sm:$0xff]
  %v1439 = vld [vmem:[%s3 + $0xf0] sm:$0xff]
  %v1440 = vld [vmem:[%s3 + $0xf8] sm:$0xff]
  %v1473 = vunpack.c.l.b16 %v1409
  %v1474 = vunpack.c.h.b16 %v1409
  %v1475 = vunpack.c.l.b16 %v1410
  %v1476 = vunpack.c.h.b16 %v1410
  %v1477 = vunpack.c.l.b16 %v1411
  %v1478 = vunpack.c.h.b16 %v1411
  %v1479 = vunpack.c.l.b16 %v1412
  %v1480 = vunpack.c.h.b16 %v1412
  %v1481 = vunpack.c.l.b16 %v1413
  %v1482 = vunpack.c.h.b16 %v1413
  %v1483 = vunpack.c.l.b16 %v1414
  %v1484 = vunpack.c.h.b16 %v1414
  %v1485 = vunpack.c.l.b16 %v1415
  %v1486 = vunpack.c.h.b16 %v1415
  %v1487 = vunpack.c.l.b16 %v1416
  %v1488 = vunpack.c.h.b16 %v1416
  %v1489 = vunpack.c.l.b16 %v1417
  %v1490 = vunpack.c.h.b16 %v1417
  %v1491 = vunpack.c.l.b16 %v1418
  %v1492 = vunpack.c.h.b16 %v1418
  %v1493 = vunpack.c.l.b16 %v1419
  %v1494 = vunpack.c.h.b16 %v1419
  %v1495 = vunpack.c.l.b16 %v1420
  %v1496 = vunpack.c.h.b16 %v1420
  %v1497 = vunpack.c.l.b16 %v1421
  %v1498 = vunpack.c.h.b16 %v1421
  %v1499 = vunpack.c.l.b16 %v1422
  %v1500 = vunpack.c.h.b16 %v1422
  %v1501 = vunpack.c.l.b16 %v1423
  %v1502 = vunpack.c.h.b16 %v1423
  %v1503 = vunpack.c.l.b16 %v1424
  %v1504 = vunpack.c.h.b16 %v1424
  %v1505 = vunpack.c.l.b16 %v1425
  %v1506 = vunpack.c.h.b16 %v1425
  %v1507 = vunpack.c.l.b16 %v1426
  %v1508 = vunpack.c.h.b16 %v1426
  %v1509 = vunpack.c.l.b16 %v1427
  %v1510 = vunpack.c.h.b16 %v1427
  %v1511 = vunpack.c.l.b16 %v1428
  %v1512 = vunpack.c.h.b16 %v1428
  %v1513 = vunpack.c.l.b16 %v1429
  %v1514 = vunpack.c.h.b16 %v1429
  %v1515 = vunpack.c.l.b16 %v1430
  %v1516 = vunpack.c.h.b16 %v1430
  %v1517 = vunpack.c.l.b16 %v1431
  %v1518 = vunpack.c.h.b16 %v1431
  %v1519 = vunpack.c.l.b16 %v1432
  %v1520 = vunpack.c.h.b16 %v1432
  %v1521 = vunpack.c.l.b16 %v1433
  %v1522 = vunpack.c.h.b16 %v1433
  %v1523 = vunpack.c.l.b16 %v1434
  %v1524 = vunpack.c.h.b16 %v1434
  %v1525 = vunpack.c.l.b16 %v1435
  %v1526 = vunpack.c.h.b16 %v1435
  %v1527 = vunpack.c.l.b16 %v1436
  %v1528 = vunpack.c.h.b16 %v1436
  %v1529 = vunpack.c.l.b16 %v1437
  %v1530 = vunpack.c.h.b16 %v1437
  %v1531 = vunpack.c.l.b16 %v1438
  %v1532 = vunpack.c.h.b16 %v1438
  %v1533 = vunpack.c.l.b16 %v1439
  %v1534 = vunpack.c.h.b16 %v1439
  %v1535 = vunpack.c.l.b16 %v1440
  %v1536 = vunpack.c.h.b16 %v1440
  %v1537 = vpack.c.b16 %v1477, %v1473
  %v1538 = vpack.c.b16 %v1478, %v1474
  %v1539 = vpack.c.b16 %v1479, %v1475
  %v1540 = vpack.c.b16 %v1480, %v1476
  %v1541 = vpack.c.b16 %v1485, %v1481
  %v1542 = vpack.c.b16 %v1486, %v1482
  %v1543 = vpack.c.b16 %v1487, %v1483
  %v1544 = vpack.c.b16 %v1488, %v1484
  %v1545 = vpack.c.b16 %v1493, %v1489
  %v1546 = vpack.c.b16 %v1494, %v1490
  %v1547 = vpack.c.b16 %v1495, %v1491
  %v1548 = vpack.c.b16 %v1496, %v1492
  %v1549 = vpack.c.b16 %v1501, %v1497
  %v1550 = vpack.c.b16 %v1502, %v1498
  %v1551 = vpack.c.b16 %v1503, %v1499
  %v1552 = vpack.c.b16 %v1504, %v1500
  %v1553 = vpack.c.b16 %v1509, %v1505
  %v1554 = vpack.c.b16 %v1510, %v1506
  %v1555 = vpack.c.b16 %v1511, %v1507
  %v1556 = vpack.c.b16 %v1512, %v1508
  %v1557 = vpack.c.b16 %v1517, %v1513
  %v1558 = vpack.c.b16 %v1518, %v1514
  %v1559 = vpack.c.b16 %v1519, %v1515
  %v1560 = vpack.c.b16 %v1520, %v1516
  %v1561 = vpack.c.b16 %v1525, %v1521
  %v1562 = vpack.c.b16 %v1526, %v1522
  %v1563 = vpack.c.b16 %v1527, %v1523
  %v1564 = vpack.c.b16 %v1528, %v1524
  %v1565 = vpack.c.b16 %v1533, %v1529
  %v1566 = vpack.c.b16 %v1534, %v1530
  %v1567 = vpack.c.b16 %v1535, %v1531
  %v1568 = vpack.c.b16 %v1536, %v1532
  %1601 = vmatprep.subr.bf16.mxu0 %v1538
  %1602 = vmatpush1.bf16.msra.mxu0 %v1537
  %1603 = vmatprep.subr.bf16.mxu0 %v1542
  %1604 = vmatpush1.bf16.msra.mxu0 %v1541
  %1605 = vmatprep.subr.bf16.mxu0 %v1546
  %1606 = vmatpush1.bf16.msra.mxu0 %v1545
  %1607 = vmatprep.subr.bf16.mxu0 %v1550
  %1608 = vmatpush1.bf16.msra.mxu0 %v1549
  %1609 = vmatprep.subr.bf16.mxu0 %v1554
  %1610 = vmatpush1.bf16.msra.mxu0 %v1553
  %1611 = vmatprep.subr.bf16.mxu0 %v1558
  %1612 = vmatpush1.bf16.msra.mxu0 %v1557
  %1613 = vmatprep.subr.bf16.mxu0 %v1562
  %1614 = vmatpush1.bf16.msra.mxu0 %v1561
  %1615 = vmatprep.subr.bf16.mxu0 %v1566
  %1616 = vmatpush1.bf16.msra.mxu0 %v1565
  %1617 = vmatprep.subr.bf16.mxu0 0
  %1618 = vmatpush1.bf16.msra.mxu0 0
  %1619 = vmatprep.subr.bf16.mxu0 0
  %1620 = vmatpush1.bf16.msra.mxu0 0
  %1621 = vmatprep.subr.bf16.mxu0 0
  %1622 = vmatpush1.bf16.msra.mxu0 0
  %1623 = vmatprep.subr.bf16.mxu0 0
  %1624 = vmatpush1.bf16.msra.mxu0 0
  %1625 = vmatprep.subr.bf16.mxu0 0
  %1626 = vmatpush1.bf16.msra.mxu0 0
  %1627 = vmatprep.subr.bf16.mxu0 0
  %1628 = vmatpush1.bf16.msra.mxu0 0
  %1629 = vmatprep.subr.bf16.mxu0 0
  %1630 = vmatpush1.bf16.msra.mxu0 0
  %1631 = vmatprep.subr.bf16.mxu0 0
  %1632 = vmatpush1.bf16.msra.mxu0 0
  %1633 = vmatprep.mubr.bf16.mxu0 0
  %1634 = vmatmul.mubr.bf16.gmra.mrb[0].mxu0 %v1408
  %v1635 = vpop.f32.mrb[0].mxu0
  %v1636 = vadd.f32 0.0, %v1635
  %v1637 = vpop.f32.mrb[0].mxu0
  %v1638 = vadd.f32 0.0, %v1637
  %v1639 = vpop.f32.mrb[0].mxu0
  %v1640 = vpop.f32.mrb[0].mxu0
  %1641 = vdwg.mxu0
  %1642 = vmatprep.subr.bf16.mxu0 %v1540
  %1643 = vmatpush1.bf16.msra.mxu0 %v1539
  %1644 = vmatprep.subr.bf16.mxu0 %v1544
  %1645 = vmatpush1.bf16.msra.mxu0 %v1543
  %1646 = vmatprep.subr.bf16.mxu0 %v1548
  %1647 = vmatpush1.bf16.msra.mxu0 %v1547
  %1648 = vmatprep.subr.bf16.mxu0 %v1552
  %1649 = vmatpush1.bf16.msra.mxu0 %v1551
  %1650 = vmatprep.subr.bf16.mxu0 %v1556
  %1651 = vmatpush1.bf16.msra.mxu0 %v1555
  %1652 = vmatprep.subr.bf16.mxu0 %v1560
  %1653 = vmatpush1.bf16.msra.mxu0 %v1559
  %1654 = vmatprep.subr.bf16.mxu0 %v1564
  %1655 = vmatpush1.bf16.msra.mxu0 %v1563
  %1656 = vmatprep.subr.bf16.mxu0 %v1568
  %1657 = vmatpush1.bf16.msra.mxu0 %v1567
  %1658 = vmatprep.subr.bf16.mxu0 0
  %1659 = vmatpush1.bf16.msra.mxu0 0
  %1660 = vmatprep.subr.bf16.mxu0 0
  %1661 = vmatpush1.bf16.msra.mxu0 0
  %1662 = vmatprep.subr.bf16.mxu0 0
  %1663 = vmatpush1.bf16.msra.mxu0 0
  %1664 = vmatprep.subr.bf16.mxu0 0
  %1665 = vmatpush1.bf16.msra.mxu0 0
  %1666 = vmatprep.subr.bf16.mxu0 0
  %1667 = vmatpush1.bf16.msra.mxu0 0
  %1668 = vmatprep.subr.bf16.mxu0 0
  %1669 = vmatpush1.bf16.msra.mxu0 0
  %1670 = vmatprep.subr.bf16.mxu0 0
  %1671 = vmatpush1.bf16.msra.mxu0 0
  %1672 = vmatprep.subr.bf16.mxu0 0
  %1673 = vmatpush1.bf16.msra.mxu0 0
  %1674 = vmatprep.mubr.bf16.mxu0 0
  %1675 = vmatmul.mubr.bf16.gmra.mrb[0].mxu0 %v1408
  %v1676 = vpop.f32.mrb[0].mxu0
  %v1677 = vadd.f32 0.0, %v1676
  %v1678 = vpop.f32.mrb[0].mxu0
  %v1679 = vadd.f32 0.0, %v1678
  %v1680 = vpop.f32.mrb[0].mxu0
  %v1681 = vpop.f32.mrb[0].mxu0
  %1682 = vdwg.mxu0
  %v1687 = vcombine.low %v1636, %v1638
  %v1688 = vcombine.low %v1677, %v1679
  %v1690 = vunpack.c.l.s4 1983009808
  %v1691 = vunpack.c.0.s8 %v1690
  %v1692 = vlaneseq
  %v1693 = vshrl.u32 %v1692, 7
  %v1694 = vsub.s32 %v1691, %v1693
  %v1695 = vrot.slane %v1687, %v1694
  %v1697 = vunpack.c.l.s4 1983009808
  %v1698 = vunpack.c.0.s8 %v1697
  %v1699 = vlaneseq
  %v1700 = vshrl.u32 %v1699, 7
  %v1701 = vsub.s32 %v1698, %v1700
  %v1702 = vrot.slane %v1688, %v1701
  %v1703 = vcombine.low %v1695, %v1702
  %v1705 = vadd.f32 %v1407, %v1703
  %v1706 = vxor.u32 %v1705, 2147483648
  %v1707 = vmul.f32 %v1706, 1.442695
  %v1708 = vpow.pop %v1707
  %v1709 = vadd.f32 %v1708, 1.0
  %v1710 = vrcp.pop %v1709
  %v1711 = vmul.f32 1.0, %v1710
  %v1713 = vrot.slane %v1705, 2
  %v1715 = vxor.u32 %v1713, 2147483648
  %v1716 = vmul.f32 %v1715, 1.442695
  %v1717 = vpow.pop %v1716
  %v1718 = vadd.f32 %v1717, 1.0
  %v1719 = vrcp.pop %v1718
  %v1720 = vmul.f32 1.0, %v1719
  %v1721 = vrot.slane %v1705, 4
  %v1723 = vtanh.pop %v1721
  %v1724 = vrot.slane %v1705, 6
  %v1726 = vxor.u32 %v1724, 2147483648
  %v1727 = vmul.f32 %v1726, 1.442695
  %v1728 = vpow.pop %v1727
  %v1729 = vadd.f32 %v1728, 1.0
  %v1730 = vrcp.pop %v1729
  %v1731 = vmul.f32 1.0, %v1730
  %v1732 = vmul.f32 %v1720, %v1390
  %v1733 = vmul.f32 %v1711, %v1723
  %v1734 = vadd.f32 %v1732, %v1733
  %v1735 = vtanh.pop %v1734
  %v1736 = vmul.f32 %v1731, %v1735
  %v1739 = vunpack.c.l.s4 1966171168
  %v1740 = vunpack.c.0.s8 %v1739
  %v1741 = vlaneseq
  %v1742 = vshrl.u32 %v1741, 7
  %v1743 = vsub.s32 %v1740, %v1742
  %v1744 = vrot.slane %v1736, %v1743
  %v1745 = vcombine.high %v1744, %v1744
  %1748 = vst [vmem:[%s4 + $0x4] sm:$0x1] %v1744
  %1749 = vst [vmem:[%s4 + $0xc] sm:$0x1] %v1745
  %s1750 = scalar_lea.vmem %s0, 40
  %v1751 = vld [vmem:[%s1750] sm:$0xff]
  %v1752 = vpack.c.bf16 %v1736, %v1736
  %v1753 = vld [vmem:[%s3] sm:$0xff]
  %v1754 = vld [vmem:[%s3 + $0x8] sm:$0xff]
  %v1755 = vld [vmem:[%s3 + $0x10] sm:$0xff]
  %v1756 = vld [vmem:[%s3 + $0x18] sm:$0xff]
  %v1757 = vld [vmem:[%s3 + $0x20] sm:$0xff]
  %v1758 = vld [vmem:[%s3 + $0x28] sm:$0xff]
  %v1759 = vld [vmem:[%s3 + $0x30] sm:$0xff]
  %v1760 = vld [vmem:[%s3 + $0x38] sm:$0xff]
  %v1761 = vld [vmem:[%s3 + $0x40] sm:$0xff]
  %v1762 = vld [vmem:[%s3 + $0x48] sm:$0xff]
  %v1763 = vld [vmem:[%s3 + $0x50] sm:$0xff]
  %v1764 = vld [vmem:[%s3 + $0x58] sm:$0xff]
  %v1765 = vld [vmem:[%s3 + $0x60] sm:$0xff]
  %v1766 = vld [vmem:[%s3 + $0x68] sm:$0xff]
  %v1767 = vld [vmem:[%s3 + $0x70] sm:$0xff]
  %v1768 = vld [vmem:[%s3 + $0x78] sm:$0xff]
  %v1769 = vld [vmem:[%s3 + $0x80] sm:$0xff]
  %v1770 = vld [vmem:[%s3 + $0x88] sm:$0xff]
  %v1771 = vld [vmem:[%s3 + $0x90] sm:$0xff]
  %v1772 = vld [vmem:[%s3 + $0x98] sm:$0xff]
  %v1773 = vld [vmem:[%s3 + $0xa0] sm:$0xff]
  %v1774 = vld [vmem:[%s3 + $0xa8] sm:$0xff]
  %v1775 = vld [vmem:[%s3 + $0xb0] sm:$0xff]
  %v1776 = vld [vmem:[%s3 + $0xb8] sm:$0xff]
  %v1777 = vld [vmem:[%s3 + $0xc0] sm:$0xff]
  %v1778 = vld [vmem:[%s3 + $0xc8] sm:$0xff]
  %v1779 = vld [vmem:[%s3 + $0xd0] sm:$0xff]
  %v1780 = vld [vmem:[%s3 + $0xd8] sm:$0xff]
  %v1781 = vld [vmem:[%s3 + $0xe0] sm:$0xff]
  %v1782 = vld [vmem:[%s3 + $0xe8] sm:$0xff]
  %v1783 = vld [vmem:[%s3 + $0xf0] sm:$0xff]
  %v1784 = vld [vmem:[%s3 + $0xf8] sm:$0xff]
  %v1817 = vunpack.c.l.b16 %v1753
  %v1818 = vunpack.c.h.b16 %v1753
  %v1819 = vunpack.c.l.b16 %v1754
  %v1820 = vunpack.c.h.b16 %v1754
  %v1821 = vunpack.c.l.b16 %v1755
  %v1822 = vunpack.c.h.b16 %v1755
  %v1823 = vunpack.c.l.b16 %v1756
  %v1824 = vunpack.c.h.b16 %v1756
  %v1825 = vunpack.c.l.b16 %v1757
  %v1826 = vunpack.c.h.b16 %v1757
  %v1827 = vunpack.c.l.b16 %v1758
  %v1828 = vunpack.c.h.b16 %v1758
  %v1829 = vunpack.c.l.b16 %v1759
  %v1830 = vunpack.c.h.b16 %v1759
  %v1831 = vunpack.c.l.b16 %v1760
  %v1832 = vunpack.c.h.b16 %v1760
  %v1833 = vunpack.c.l.b16 %v1761
  %v1834 = vunpack.c.h.b16 %v1761
  %v1835 = vunpack.c.l.b16 %v1762
  %v1836 = vunpack.c.h.b16 %v1762
  %v1837 = vunpack.c.l.b16 %v1763
  %v1838 = vunpack.c.h.b16 %v1763
  %v1839 = vunpack.c.l.b16 %v1764
  %v1840 = vunpack.c.h.b16 %v1764
  %v1841 = vunpack.c.l.b16 %v1765
  %v1842 = vunpack.c.h.b16 %v1765
  %v1843 = vunpack.c.l.b16 %v1766
  %v1844 = vunpack.c.h.b16 %v1766
  %v1845 = vunpack.c.l.b16 %v1767
  %v1846 = vunpack.c.h.b16 %v1767
  %v1847 = vunpack.c.l.b16 %v1768
  %v1848 = vunpack.c.h.b16 %v1768
  %v1849 = vunpack.c.l.b16 %v1769
  %v1850 = vunpack.c.h.b16 %v1769
  %v1851 = vunpack.c.l.b16 %v1770
  %v1852 = vunpack.c.h.b16 %v1770
  %v1853 = vunpack.c.l.b16 %v1771
  %v1854 = vunpack.c.h.b16 %v1771
  %v1855 = vunpack.c.l.b16 %v1772
  %v1856 = vunpack.c.h.b16 %v1772
  %v1857 = vunpack.c.l.b16 %v1773
  %v1858 = vunpack.c.h.b16 %v1773
  %v1859 = vunpack.c.l.b16 %v1774
  %v1860 = vunpack.c.h.b16 %v1774
  %v1861 = vunpack.c.l.b16 %v1775
  %v1862 = vunpack.c.h.b16 %v1775
  %v1863 = vunpack.c.l.b16 %v1776
  %v1864 = vunpack.c.h.b16 %v1776
  %v1865 = vunpack.c.l.b16 %v1777
  %v1866 = vunpack.c.h.b16 %v1777
  %v1867 = vunpack.c.l.b16 %v1778
  %v1868 = vunpack.c.h.b16 %v1778
  %v1869 = vunpack.c.l.b16 %v1779
  %v1870 = vunpack.c.h.b16 %v1779
  %v1871 = vunpack.c.l.b16 %v1780
  %v1872 = vunpack.c.h.b16 %v1780
  %v1873 = vunpack.c.l.b16 %v1781
  %v1874 = vunpack.c.h.b16 %v1781
  %v1875 = vunpack.c.l.b16 %v1782
  %v1876 = vunpack.c.h.b16 %v1782
  %v1877 = vunpack.c.l.b16 %v1783
  %v1878 = vunpack.c.h.b16 %v1783
  %v1879 = vunpack.c.l.b16 %v1784
  %v1880 = vunpack.c.h.b16 %v1784
  %v1881 = vpack.c.b16 %v1821, %v1817
  %v1882 = vpack.c.b16 %v1822, %v1818
  %v1883 = vpack.c.b16 %v1823, %v1819
  %v1884 = vpack.c.b16 %v1824, %v1820
  %v1885 = vpack.c.b16 %v1829, %v1825
  %v1886 = vpack.c.b16 %v1830, %v1826
  %v1887 = vpack.c.b16 %v1831, %v1827
  %v1888 = vpack.c.b16 %v1832, %v1828
  %v1889 = vpack.c.b16 %v1837, %v1833
  %v1890 = vpack.c.b16 %v1838, %v1834
  %v1891 = vpack.c.b16 %v1839, %v1835
  %v1892 = vpack.c.b16 %v1840, %v1836
  %v1893 = vpack.c.b16 %v1845, %v1841
  %v1894 = vpack.c.b16 %v1846, %v1842
  %v1895 = vpack.c.b16 %v1847, %v1843
  %v1896 = vpack.c.b16 %v1848, %v1844
  %v1897 = vpack.c.b16 %v1853, %v1849
  %v1898 = vpack.c.b16 %v1854, %v1850
  %v1899 = vpack.c.b16 %v1855, %v1851
  %v1900 = vpack.c.b16 %v1856, %v1852
  %v1901 = vpack.c.b16 %v1861, %v1857
  %v1902 = vpack.c.b16 %v1862, %v1858
  %v1903 = vpack.c.b16 %v1863, %v1859
  %v1904 = vpack.c.b16 %v1864, %v1860
  %v1905 = vpack.c.b16 %v1869, %v1865
  %v1906 = vpack.c.b16 %v1870, %v1866
  %v1907 = vpack.c.b16 %v1871, %v1867
  %v1908 = vpack.c.b16 %v1872, %v1868
  %v1909 = vpack.c.b16 %v1877, %v1873
  %v1910 = vpack.c.b16 %v1878, %v1874
  %v1911 = vpack.c.b16 %v1879, %v1875
  %v1912 = vpack.c.b16 %v1880, %v1876
  %1945 = vmatprep.subr.bf16.mxu0 %v1882
  %1946 = vmatpush1.bf16.msra.mxu0 %v1881
  %1947 = vmatprep.subr.bf16.mxu0 %v1886
  %1948 = vmatpush1.bf16.msra.mxu0 %v1885
  %1949 = vmatprep.subr.bf16.mxu0 %v1890
  %1950 = vmatpush1.bf16.msra.mxu0 %v1889
  %1951 = vmatprep.subr.bf16.mxu0 %v1894
  %1952 = vmatpush1.bf16.msra.mxu0 %v1893
  %1953 = vmatprep.subr.bf16.mxu0 %v1898
  %1954 = vmatpush1.bf16.msra.mxu0 %v1897
  %1955 = vmatprep.subr.bf16.mxu0 %v1902
  %1956 = vmatpush1.bf16.msra.mxu0 %v1901
  %1957 = vmatprep.subr.bf16.mxu0 %v1906
  %1958 = vmatpush1.bf16.msra.mxu0 %v1905
  %1959 = vmatprep.subr.bf16.mxu0 %v1910
  %1960 = vmatpush1.bf16.msra.mxu0 %v1909
  %1961 = vmatprep.subr.bf16.mxu0 0
  %1962 = vmatpush1.bf16.msra.mxu0 0
  %1963 = vmatprep.subr.bf16.mxu0 0
  %1964 = vmatpush1.bf16.msra.mxu0 0
  %1965 = vmatprep.subr.bf16.mxu0 0
  %1966 = vmatpush1.bf16.msra.mxu0 0
  %1967 = vmatprep.subr.bf16.mxu0 0
  %1968 = vmatpush1.bf16.msra.mxu0 0
  %1969 = vmatprep.subr.bf16.mxu0 0
  %1970 = vmatpush1.bf16.msra.mxu0 0
  %1971 = vmatprep.subr.bf16.mxu0 0
  %1972 = vmatpush1.bf16.msra.mxu0 0
  %1973 = vmatprep.subr.bf16.mxu0 0
  %1974 = vmatpush1.bf16.msra.mxu0 0
  %1975 = vmatprep.subr.bf16.mxu0 0
  %1976 = vmatpush1.bf16.msra.mxu0 0
  %1977 = vmatprep.mubr.bf16.mxu0 0
  %1978 = vmatmul.mubr.bf16.gmra.mrb[0].mxu0 %v1752
  %v1979 = vpop.f32.mrb[0].mxu0
  %v1980 = vadd.f32 0.0, %v1979
  %v1981 = vpop.f32.mrb[0].mxu0
  %v1982 = vadd.f32 0.0, %v1981
  %v1983 = vpop.f32.mrb[0].mxu0
  %v1984 = vpop.f32.mrb[0].mxu0
  %1985 = vdwg.mxu0
  %1986 = vmatprep.subr.bf16.mxu0 %v1884
  %1987 = vmatpush1.bf16.msra.mxu0 %v1883
  %1988 = vmatprep.subr.bf16.mxu0 %v1888
  %1989 = vmatpush1.bf16.msra.mxu0 %v1887
  %1990 = vmatprep.subr.bf16.mxu0 %v1892
  %1991 = vmatpush1.bf16.msra.mxu0 %v1891
  %1992 = vmatprep.subr.bf16.mxu0 %v1896
  %1993 = vmatpush1.bf16.msra.mxu0 %v1895
  %1994 = vmatprep.subr.bf16.mxu0 %v1900
  %1995 = vmatpush1.bf16.msra.mxu0 %v1899
  %1996 = vmatprep.subr.bf16.mxu0 %v1904
  %1997 = vmatpush1.bf16.msra.mxu0 %v1903
  %1998 = vmatprep.subr.bf16.mxu0 %v1908
  %1999 = vmatpush1.bf16.msra.mxu0 %v1907
  %2000 = vmatprep.subr.bf16.mxu0 %v1912
  %2001 = vmatpush1.bf16.msra.mxu0 %v1911
  %2002 = vmatprep.subr.bf16.mxu0 0
  %2003 = vmatpush1.bf16.msra.mxu0 0
  %2004 = vmatprep.subr.bf16.mxu0 0
  %2005 = vmatpush1.bf16.msra.mxu0 0
  %2006 = vmatprep.subr.bf16.mxu0 0
  %2007 = vmatpush1.bf16.msra.mxu0 0
  %2008 = vmatprep.subr.bf16.mxu0 0
  %2009 = vmatpush1.bf16.msra.mxu0 0
  %2010 = vmatprep.subr.bf16.mxu0 0
  %2011 = vmatpush1.bf16.msra.mxu0 0
  %2012 = vmatprep.subr.bf16.mxu0 0
  %2013 = vmatpush1.bf16.msra.mxu0 0
  %2014 = vmatprep.subr.bf16.mxu0 0
  %2015 = vmatpush1.bf16.msra.mxu0 0
  %2016 = vmatprep.subr.bf16.mxu0 0
  %2017 = vmatpush1.bf16.msra.mxu0 0
  %2018 = vmatprep.mubr.bf16.mxu0 0
  %2019 = vmatmul.mubr.bf16.gmra.mrb[0].mxu0 %v1752
  %v2020 = vpop.f32.mrb[0].mxu0
  %v2021 = vadd.f32 0.0, %v2020
  %v2022 = vpop.f32.mrb[0].mxu0
  %v2023 = vadd.f32 0.0, %v2022
  %v2024 = vpop.f32.mrb[0].mxu0
  %v2025 = vpop.f32.mrb[0].mxu0
  %2026 = vdwg.mxu0
  %v2031 = vcombine.low %v1980, %v1982
  %v2032 = vcombine.low %v2021, %v2023
  %v2034 = vunpack.c.l.s4 1983009808
  %v2035 = vunpack.c.0.s8 %v2034
  %v2036 = vlaneseq
  %v2037 = vshrl.u32 %v2036, 7
  %v2038 = vsub.s32 %v2035, %v2037
  %v2039 = vrot.slane %v2031, %v2038
  %v2041 = vunpack.c.l.s4 1983009808
  %v2042 = vunpack.c.0.s8 %v2041
  %v2043 = vlaneseq
  %v2044 = vshrl.u32 %v2043, 7
  %v2045 = vsub.s32 %v2042, %v2044
  %v2046 = vrot.slane %v2032, %v2045
  %v2047 = vcombine.low %v2039, %v2046
  %v2049 = vadd.f32 %v1751, %v2047
  %v2050 = vxor.u32 %v2049, 2147483648
  %v2051 = vmul.f32 %v2050, 1.442695
  %v2052 = vpow.pop %v2051
  %v2053 = vadd.f32 %v2052, 1.0
  %v2054 = vrcp.pop %v2053
  %v2055 = vmul.f32 1.0, %v2054
  %v2057 = vrot.slane %v2049, 2
  %v2059 = vxor.u32 %v2057, 2147483648
  %v2060 = vmul.f32 %v2059, 1.442695
  %v2061 = vpow.pop %v2060
  %v2062 = vadd.f32 %v2061, 1.0
  %v2063 = vrcp.pop %v2062
  %v2064 = vmul.f32 1.0, %v2063
  %v2065 = vrot.slane %v2049, 4
  %v2067 = vtanh.pop %v2065
  %v2068 = vrot.slane %v2049, 6
  %v2070 = vxor.u32 %v2068, 2147483648
  %v2071 = vmul.f32 %v2070, 1.442695
  %v2072 = vpow.pop %v2071
  %v2073 = vadd.f32 %v2072, 1.0
  %v2074 = vrcp.pop %v2073
  %v2075 = vmul.f32 1.0, %v2074
  %v2076 = vmul.f32 %v2064, %v1734
  %v2077 = vmul.f32 %v2055, %v2067
  %v2078 = vadd.f32 %v2076, %v2077
  %v2079 = vtanh.pop %v2078
  %v2080 = vmul.f32 %v2075, %v2079
  %v2083 = vunpack.c.l.s4 1966171168
  %v2084 = vunpack.c.0.s8 %v2083
  %v2085 = vlaneseq
  %v2086 = vshrl.u32 %v2085, 7
  %v2087 = vsub.s32 %v2084, %v2086
  %v2088 = vrot.slane %v2080, %v2087
  %v2089 = vcombine.high %v2088, %v2088
  %2092 = vst [vmem:[%s4 + $0x5] sm:$0x1] %v2088
  %2093 = vst [vmem:[%s4 + $0xd] sm:$0x1] %v2089
  %s2094 = scalar_lea.vmem %s0, 48
  %v2095 = vld [vmem:[%s2094] sm:$0xff]
  %v2096 = vpack.c.bf16 %v2080, %v2080
  %v2097 = vld [vmem:[%s3] sm:$0xff]
  %v2098 = vld [vmem:[%s3 + $0x8] sm:$0xff]
  %v2099 = vld [vmem:[%s3 + $0x10] sm:$0xff]
  %v2100 = vld [vmem:[%s3 + $0x18] sm:$0xff]
  %v2101 = vld [vmem:[%s3 + $0x20] sm:$0xff]
  %v2102 = vld [vmem:[%s3 + $0x28] sm:$0xff]
  %v2103 = vld [vmem:[%s3 + $0x30] sm:$0xff]
  %v2104 = vld [vmem:[%s3 + $0x38] sm:$0xff]
  %v2105 = vld [vmem:[%s3 + $0x40] sm:$0xff]
  %v2106 = vld [vmem:[%s3 + $0x48] sm:$0xff]
  %v2107 = vld [vmem:[%s3 + $0x50] sm:$0xff]
  %v2108 = vld [vmem:[%s3 + $0x58] sm:$0xff]
  %v2109 = vld [vmem:[%s3 + $0x60] sm:$0xff]
  %v2110 = vld [vmem:[%s3 + $0x68] sm:$0xff]
  %v2111 = vld [vmem:[%s3 + $0x70] sm:$0xff]
  %v2112 = vld [vmem:[%s3 + $0x78] sm:$0xff]
  %v2113 = vld [vmem:[%s3 + $0x80] sm:$0xff]
  %v2114 = vld [vmem:[%s3 + $0x88] sm:$0xff]
  %v2115 = vld [vmem:[%s3 + $0x90] sm:$0xff]
  %v2116 = vld [vmem:[%s3 + $0x98] sm:$0xff]
  %v2117 = vld [vmem:[%s3 + $0xa0] sm:$0xff]
  %v2118 = vld [vmem:[%s3 + $0xa8] sm:$0xff]
  %v2119 = vld [vmem:[%s3 + $0xb0] sm:$0xff]
  %v2120 = vld [vmem:[%s3 + $0xb8] sm:$0xff]
  %v2121 = vld [vmem:[%s3 + $0xc0] sm:$0xff]
  %v2122 = vld [vmem:[%s3 + $0xc8] sm:$0xff]
  %v2123 = vld [vmem:[%s3 + $0xd0] sm:$0xff]
  %v2124 = vld [vmem:[%s3 + $0xd8] sm:$0xff]
  %v2125 = vld [vmem:[%s3 + $0xe0] sm:$0xff]
  %v2126 = vld [vmem:[%s3 + $0xe8] sm:$0xff]
  %v2127 = vld [vmem:[%s3 + $0xf0] sm:$0xff]
  %v2128 = vld [vmem:[%s3 + $0xf8] sm:$0xff]
  %v2161 = vunpack.c.l.b16 %v2097
  %v2162 = vunpack.c.h.b16 %v2097
  %v2163 = vunpack.c.l.b16 %v2098
  %v2164 = vunpack.c.h.b16 %v2098
  %v2165 = vunpack.c.l.b16 %v2099
  %v2166 = vunpack.c.h.b16 %v2099
  %v2167 = vunpack.c.l.b16 %v2100
  %v2168 = vunpack.c.h.b16 %v2100
  %v2169 = vunpack.c.l.b16 %v2101
  %v2170 = vunpack.c.h.b16 %v2101
  %v2171 = vunpack.c.l.b16 %v2102
  %v2172 = vunpack.c.h.b16 %v2102
  %v2173 = vunpack.c.l.b16 %v2103
  %v2174 = vunpack.c.h.b16 %v2103
  %v2175 = vunpack.c.l.b16 %v2104
  %v2176 = vunpack.c.h.b16 %v2104
  %v2177 = vunpack.c.l.b16 %v2105
  %v2178 = vunpack.c.h.b16 %v2105
  %v2179 = vunpack.c.l.b16 %v2106
  %v2180 = vunpack.c.h.b16 %v2106
  %v2181 = vunpack.c.l.b16 %v2107
  %v2182 = vunpack.c.h.b16 %v2107
  %v2183 = vunpack.c.l.b16 %v2108
  %v2184 = vunpack.c.h.b16 %v2108
  %v2185 = vunpack.c.l.b16 %v2109
  %v2186 = vunpack.c.h.b16 %v2109
  %v2187 = vunpack.c.l.b16 %v2110
  %v2188 = vunpack.c.h.b16 %v2110
  %v2189 = vunpack.c.l.b16 %v2111
  %v2190 = vunpack.c.h.b16 %v2111
  %v2191 = vunpack.c.l.b16 %v2112
  %v2192 = vunpack.c.h.b16 %v2112
  %v2193 = vunpack.c.l.b16 %v2113
  %v2194 = vunpack.c.h.b16 %v2113
  %v2195 = vunpack.c.l.b16 %v2114
  %v2196 = vunpack.c.h.b16 %v2114
  %v2197 = vunpack.c.l.b16 %v2115
  %v2198 = vunpack.c.h.b16 %v2115
  %v2199 = vunpack.c.l.b16 %v2116
  %v2200 = vunpack.c.h.b16 %v2116
  %v2201 = vunpack.c.l.b16 %v2117
  %v2202 = vunpack.c.h.b16 %v2117
  %v2203 = vunpack.c.l.b16 %v2118
  %v2204 = vunpack.c.h.b16 %v2118
  %v2205 = vunpack.c.l.b16 %v2119
  %v2206 = vunpack.c.h.b16 %v2119
  %v2207 = vunpack.c.l.b16 %v2120
  %v2208 = vunpack.c.h.b16 %v2120
  %v2209 = vunpack.c.l.b16 %v2121
  %v2210 = vunpack.c.h.b16 %v2121
  %v2211 = vunpack.c.l.b16 %v2122
  %v2212 = vunpack.c.h.b16 %v2122
  %v2213 = vunpack.c.l.b16 %v2123
  %v2214 = vunpack.c.h.b16 %v2123
  %v2215 = vunpack.c.l.b16 %v2124
  %v2216 = vunpack.c.h.b16 %v2124
  %v2217 = vunpack.c.l.b16 %v2125
  %v2218 = vunpack.c.h.b16 %v2125
  %v2219 = vunpack.c.l.b16 %v2126
  %v2220 = vunpack.c.h.b16 %v2126
  %v2221 = vunpack.c.l.b16 %v2127
  %v2222 = vunpack.c.h.b16 %v2127
  %v2223 = vunpack.c.l.b16 %v2128
  %v2224 = vunpack.c.h.b16 %v2128
  %v2225 = vpack.c.b16 %v2165, %v2161
  %v2226 = vpack.c.b16 %v2166, %v2162
  %v2227 = vpack.c.b16 %v2167, %v2163
  %v2228 = vpack.c.b16 %v2168, %v2164
  %v2229 = vpack.c.b16 %v2173, %v2169
  %v2230 = vpack.c.b16 %v2174, %v2170
  %v2231 = vpack.c.b16 %v2175, %v2171
  %v2232 = vpack.c.b16 %v2176, %v2172
  %v2233 = vpack.c.b16 %v2181, %v2177
  %v2234 = vpack.c.b16 %v2182, %v2178
  %v2235 = vpack.c.b16 %v2183, %v2179
  %v2236 = vpack.c.b16 %v2184, %v2180
  %v2237 = vpack.c.b16 %v2189, %v2185
  %v2238 = vpack.c.b16 %v2190, %v2186
  %v2239 = vpack.c.b16 %v2191, %v2187
  %v2240 = vpack.c.b16 %v2192, %v2188
  %v2241 = vpack.c.b16 %v2197, %v2193
  %v2242 = vpack.c.b16 %v2198, %v2194
  %v2243 = vpack.c.b16 %v2199, %v2195
  %v2244 = vpack.c.b16 %v2200, %v2196
  %v2245 = vpack.c.b16 %v2205, %v2201
  %v2246 = vpack.c.b16 %v2206, %v2202
  %v2247 = vpack.c.b16 %v2207, %v2203
  %v2248 = vpack.c.b16 %v2208, %v2204
  %v2249 = vpack.c.b16 %v2213, %v2209
  %v2250 = vpack.c.b16 %v2214, %v2210
  %v2251 = vpack.c.b16 %v2215, %v2211
  %v2252 = vpack.c.b16 %v2216, %v2212
  %v2253 = vpack.c.b16 %v2221, %v2217
  %v2254 = vpack.c.b16 %v2222, %v2218
  %v2255 = vpack.c.b16 %v2223, %v2219
  %v2256 = vpack.c.b16 %v2224, %v2220
  %2289 = vmatprep.subr.bf16.mxu0 %v2226
  %2290 = vmatpush1.bf16.msra.mxu0 %v2225
  %2291 = vmatprep.subr.bf16.mxu0 %v2230
  %2292 = vmatpush1.bf16.msra.mxu0 %v2229
  %2293 = vmatprep.subr.bf16.mxu0 %v2234
  %2294 = vmatpush1.bf16.msra.mxu0 %v2233
  %2295 = vmatprep.subr.bf16.mxu0 %v2238
  %2296 = vmatpush1.bf16.msra.mxu0 %v2237
  %2297 = vmatprep.subr.bf16.mxu0 %v2242
  %2298 = vmatpush1.bf16.msra.mxu0 %v2241
  %2299 = vmatprep.subr.bf16.mxu0 %v2246
  %2300 = vmatpush1.bf16.msra.mxu0 %v2245
  %2301 = vmatprep.subr.bf16.mxu0 %v2250
  %2302 = vmatpush1.bf16.msra.mxu0 %v2249
  %2303 = vmatprep.subr.bf16.mxu0 %v2254
  %2304 = vmatpush1.bf16.msra.mxu0 %v2253
  %2305 = vmatprep.subr.bf16.mxu0 0
  %2306 = vmatpush1.bf16.msra.mxu0 0
  %2307 = vmatprep.subr.bf16.mxu0 0
  %2308 = vmatpush1.bf16.msra.mxu0 0
  %2309 = vmatprep.subr.bf16.mxu0 0
  %2310 = vmatpush1.bf16.msra.mxu0 0
  %2311 = vmatprep.subr.bf16.mxu0 0
  %2312 = vmatpush1.bf16.msra.mxu0 0
  %2313 = vmatprep.subr.bf16.mxu0 0
  %2314 = vmatpush1.bf16.msra.mxu0 0
  %2315 = vmatprep.subr.bf16.mxu0 0
  %2316 = vmatpush1.bf16.msra.mxu0 0
  %2317 = vmatprep.subr.bf16.mxu0 0
  %2318 = vmatpush1.bf16.msra.mxu0 0
  %2319 = vmatprep.subr.bf16.mxu0 0
  %2320 = vmatpush1.bf16.msra.mxu0 0
  %2321 = vmatprep.mubr.bf16.mxu0 0
  %2322 = vmatmul.mubr.bf16.gmra.mrb[0].mxu0 %v2096
  %v2323 = vpop.f32.mrb[0].mxu0
  %v2324 = vadd.f32 0.0, %v2323
  %v2325 = vpop.f32.mrb[0].mxu0
  %v2326 = vadd.f32 0.0, %v2325
  %v2327 = vpop.f32.mrb[0].mxu0
  %v2328 = vpop.f32.mrb[0].mxu0
  %2329 = vdwg.mxu0
  %2330 = vmatprep.subr.bf16.mxu0 %v2228
  %2331 = vmatpush1.bf16.msra.mxu0 %v2227
  %2332 = vmatprep.subr.bf16.mxu0 %v2232
  %2333 = vmatpush1.bf16.msra.mxu0 %v2231
  %2334 = vmatprep.subr.bf16.mxu0 %v2236
  %2335 = vmatpush1.bf16.msra.mxu0 %v2235
  %2336 = vmatprep.subr.bf16.mxu0 %v2240
  %2337 = vmatpush1.bf16.msra.mxu0 %v2239
  %2338 = vmatprep.subr.bf16.mxu0 %v2244
  %2339 = vmatpush1.bf16.msra.mxu0 %v2243
  %2340 = vmatprep.subr.bf16.mxu0 %v2248
  %2341 = vmatpush1.bf16.msra.mxu0 %v2247
  %2342 = vmatprep.subr.bf16.mxu0 %v2252
  %2343 = vmatpush1.bf16.msra.mxu0 %v2251
  %2344 = vmatprep.subr.bf16.mxu0 %v2256
  %2345 = vmatpush1.bf16.msra.mxu0 %v2255
  %2346 = vmatprep.subr.bf16.mxu0 0
  %2347 = vmatpush1.bf16.msra.mxu0 0
  %2348 = vmatprep.subr.bf16.mxu0 0
  %2349 = vmatpush1.bf16.msra.mxu0 0
  %2350 = vmatprep.subr.bf16.mxu0 0
  %2351 = vmatpush1.bf16.msra.mxu0 0
  %2352 = vmatprep.subr.bf16.mxu0 0
  %2353 = vmatpush1.bf16.msra.mxu0 0
  %2354 = vmatprep.subr.bf16.mxu0 0
  %2355 = vmatpush1.bf16.msra.mxu0 0
  %2356 = vmatprep.subr.bf16.mxu0 0
  %2357 = vmatpush1.bf16.msra.mxu0 0
  %2358 = vmatprep.subr.bf16.mxu0 0
  %2359 = vmatpush1.bf16.msra.mxu0 0
  %2360 = vmatprep.subr.bf16.mxu0 0
  %2361 = vmatpush1.bf16.msra.mxu0 0
  %2362 = vmatprep.mubr.bf16.mxu0 0
  %2363 = vmatmul.mubr.bf16.gmra.mrb[0].mxu0 %v2096
  %v2364 = vpop.f32.mrb[0].mxu0
  %v2365 = vadd.f32 0.0, %v2364
  %v2366 = vpop.f32.mrb[0].mxu0
  %v2367 = vadd.f32 0.0, %v2366
  %v2368 = vpop.f32.mrb[0].mxu0
  %v2369 = vpop.f32.mrb[0].mxu0
  %2370 = vdwg.mxu0
  %v2375 = vcombine.low %v2324, %v2326
  %v2376 = vcombine.low %v2365, %v2367
  %v2378 = vunpack.c.l.s4 1983009808
  %v2379 = vunpack.c.0.s8 %v2378
  %v2380 = vlaneseq
  %v2381 = vshrl.u32 %v2380, 7
  %v2382 = vsub.s32 %v2379, %v2381
  %v2383 = vrot.slane %v2375, %v2382
  %v2385 = vunpack.c.l.s4 1983009808
  %v2386 = vunpack.c.0.s8 %v2385
  %v2387 = vlaneseq
  %v2388 = vshrl.u32 %v2387, 7
  %v2389 = vsub.s32 %v2386, %v2388
  %v2390 = vrot.slane %v2376, %v2389
  %v2391 = vcombine.low %v2383, %v2390
  %v2393 = vadd.f32 %v2095, %v2391
  %v2394 = vxor.u32 %v2393, 2147483648
  %v2395 = vmul.f32 %v2394, 1.442695
  %v2396 = vpow.pop %v2395
  %v2397 = vadd.f32 %v2396, 1.0
  %v2398 = vrcp.pop %v2397
  %v2399 = vmul.f32 1.0, %v2398
  %v2401 = vrot.slane %v2393, 2
  %v2403 = vxor.u32 %v2401, 2147483648
  %v2404 = vmul.f32 %v2403, 1.442695
  %v2405 = vpow.pop %v2404
  %v2406 = vadd.f32 %v2405, 1.0
  %v2407 = vrcp.pop %v2406
  %v2408 = vmul.f32 1.0, %v2407
  %v2409 = vrot.slane %v2393, 4
  %v2411 = vtanh.pop %v2409
  %v2412 = vrot.slane %v2393, 6
  %v2414 = vxor.u32 %v2412, 2147483648
  %v2415 = vmul.f32 %v2414, 1.442695
  %v2416 = vpow.pop %v2415
  %v2417 = vadd.f32 %v2416, 1.0
  %v2418 = vrcp.pop %v2417
  %v2419 = vmul.f32 1.0, %v2418
  %v2420 = vmul.f32 %v2408, %v2078
  %v2421 = vmul.f32 %v2399, %v2411
  %v2422 = vadd.f32 %v2420, %v2421
  %v2423 = vtanh.pop %v2422
  %v2424 = vmul.f32 %v2419, %v2423
  %v2427 = vunpack.c.l.s4 1966171168
  %v2428 = vunpack.c.0.s8 %v2427
  %v2429 = vlaneseq
  %v2430 = vshrl.u32 %v2429, 7
  %v2431 = vsub.s32 %v2428, %v2430
  %v2432 = vrot.slane %v2424, %v2431
  %v2433 = vcombine.high %v2432, %v2432
  %2436 = vst [vmem:[%s4 + $0x6] sm:$0x1] %v2432
  %2437 = vst [vmem:[%s4 + $0xe] sm:$0x1] %v2433
  %s2438 = scalar_lea.vmem %s0, 56
  %v2439 = vld [vmem:[%s2438] sm:$0xff]
  %v2440 = vpack.c.bf16 %v2424, %v2424
  %v2441 = vld [vmem:[%s3] sm:$0xff]
  %v2442 = vld [vmem:[%s3 + $0x8] sm:$0xff]
  %v2443 = vld [vmem:[%s3 + $0x10] sm:$0xff]
  %v2444 = vld [vmem:[%s3 + $0x18] sm:$0xff]
  %v2445 = vld [vmem:[%s3 + $0x20] sm:$0xff]
  %v2446 = vld [vmem:[%s3 + $0x28] sm:$0xff]
  %v2447 = vld [vmem:[%s3 + $0x30] sm:$0xff]
  %v2448 = vld [vmem:[%s3 + $0x38] sm:$0xff]
  %v2449 = vld [vmem:[%s3 + $0x40] sm:$0xff]
  %v2450 = vld [vmem:[%s3 + $0x48] sm:$0xff]
  %v2451 = vld [vmem:[%s3 + $0x50] sm:$0xff]
  %v2452 = vld [vmem:[%s3 + $0x58] sm:$0xff]
  %v2453 = vld [vmem:[%s3 + $0x60] sm:$0xff]
  %v2454 = vld [vmem:[%s3 + $0x68] sm:$0xff]
  %v2455 = vld [vmem:[%s3 + $0x70] sm:$0xff]
  %v2456 = vld [vmem:[%s3 + $0x78] sm:$0xff]
  %v2457 = vld [vmem:[%s3 + $0x80] sm:$0xff]
  %v2458 = vld [vmem:[%s3 + $0x88] sm:$0xff]
  %v2459 = vld [vmem:[%s3 + $0x90] sm:$0xff]
  %v2460 = vld [vmem:[%s3 + $0x98] sm:$0xff]
  %v2461 = vld [vmem:[%s3 + $0xa0] sm:$0xff]
  %v2462 = vld [vmem:[%s3 + $0xa8] sm:$0xff]
  %v2463 = vld [vmem:[%s3 + $0xb0] sm:$0xff]
  %v2464 = vld [vmem:[%s3 + $0xb8] sm:$0xff]
  %v2465 = vld [vmem:[%s3 + $0xc0] sm:$0xff]
  %v2466 = vld [vmem:[%s3 + $0xc8] sm:$0xff]
  %v2467 = vld [vmem:[%s3 + $0xd0] sm:$0xff]
  %v2468 = vld [vmem:[%s3 + $0xd8] sm:$0xff]
  %v2469 = vld [vmem:[%s3 + $0xe0] sm:$0xff]
  %v2470 = vld [vmem:[%s3 + $0xe8] sm:$0xff]
  %v2471 = vld [vmem:[%s3 + $0xf0] sm:$0xff]
  %v2472 = vld [vmem:[%s3 + $0xf8] sm:$0xff]
  %v2505 = vunpack.c.l.b16 %v2441
  %v2506 = vunpack.c.h.b16 %v2441
  %v2507 = vunpack.c.l.b16 %v2442
  %v2508 = vunpack.c.h.b16 %v2442
  %v2509 = vunpack.c.l.b16 %v2443
  %v2510 = vunpack.c.h.b16 %v2443
  %v2511 = vunpack.c.l.b16 %v2444
  %v2512 = vunpack.c.h.b16 %v2444
  %v2513 = vunpack.c.l.b16 %v2445
  %v2514 = vunpack.c.h.b16 %v2445
  %v2515 = vunpack.c.l.b16 %v2446
  %v2516 = vunpack.c.h.b16 %v2446
  %v2517 = vunpack.c.l.b16 %v2447
  %v2518 = vunpack.c.h.b16 %v2447
  %v2519 = vunpack.c.l.b16 %v2448
  %v2520 = vunpack.c.h.b16 %v2448
  %v2521 = vunpack.c.l.b16 %v2449
  %v2522 = vunpack.c.h.b16 %v2449
  %v2523 = vunpack.c.l.b16 %v2450
  %v2524 = vunpack.c.h.b16 %v2450
  %v2525 = vunpack.c.l.b16 %v2451
  %v2526 = vunpack.c.h.b16 %v2451
  %v2527 = vunpack.c.l.b16 %v2452
  %v2528 = vunpack.c.h.b16 %v2452
  %v2529 = vunpack.c.l.b16 %v2453
  %v2530 = vunpack.c.h.b16 %v2453
  %v2531 = vunpack.c.l.b16 %v2454
  %v2532 = vunpack.c.h.b16 %v2454
  %v2533 = vunpack.c.l.b16 %v2455
  %v2534 = vunpack.c.h.b16 %v2455
  %v2535 = vunpack.c.l.b16 %v2456
  %v2536 = vunpack.c.h.b16 %v2456
  %v2537 = vunpack.c.l.b16 %v2457
  %v2538 = vunpack.c.h.b16 %v2457
  %v2539 = vunpack.c.l.b16 %v2458
  %v2540 = vunpack.c.h.b16 %v2458
  %v2541 = vunpack.c.l.b16 %v2459
  %v2542 = vunpack.c.h.b16 %v2459
  %v2543 = vunpack.c.l.b16 %v2460
  %v2544 = vunpack.c.h.b16 %v2460
  %v2545 = vunpack.c.l.b16 %v2461
  %v2546 = vunpack.c.h.b16 %v2461
  %v2547 = vunpack.c.l.b16 %v2462
  %v2548 = vunpack.c.h.b16 %v2462
  %v2549 = vunpack.c.l.b16 %v2463
  %v2550 = vunpack.c.h.b16 %v2463
  %v2551 = vunpack.c.l.b16 %v2464
  %v2552 = vunpack.c.h.b16 %v2464
  %v2553 = vunpack.c.l.b16 %v2465
  %v2554 = vunpack.c.h.b16 %v2465
  %v2555 = vunpack.c.l.b16 %v2466
  %v2556 = vunpack.c.h.b16 %v2466
  %v2557 = vunpack.c.l.b16 %v2467
  %v2558 = vunpack.c.h.b16 %v2467
  %v2559 = vunpack.c.l.b16 %v2468
  %v2560 = vunpack.c.h.b16 %v2468
  %v2561 = vunpack.c.l.b16 %v2469
  %v2562 = vunpack.c.h.b16 %v2469
  %v2563 = vunpack.c.l.b16 %v2470
  %v2564 = vunpack.c.h.b16 %v2470
  %v2565 = vunpack.c.l.b16 %v2471
  %v2566 = vunpack.c.h.b16 %v2471
  %v2567 = vunpack.c.l.b16 %v2472
  %v2568 = vunpack.c.h.b16 %v2472
  %v2569 = vpack.c.b16 %v2509, %v2505
  %v2570 = vpack.c.b16 %v2510, %v2506
  %v2571 = vpack.c.b16 %v2511, %v2507
  %v2572 = vpack.c.b16 %v2512, %v2508
  %v2573 = vpack.c.b16 %v2517, %v2513
  %v2574 = vpack.c.b16 %v2518, %v2514
  %v2575 = vpack.c.b16 %v2519, %v2515
  %v2576 = vpack.c.b16 %v2520, %v2516
  %v2577 = vpack.c.b16 %v2525, %v2521
  %v2578 = vpack.c.b16 %v2526, %v2522
  %v2579 = vpack.c.b16 %v2527, %v2523
  %v2580 = vpack.c.b16 %v2528, %v2524
  %v2581 = vpack.c.b16 %v2533, %v2529
  %v2582 = vpack.c.b16 %v2534, %v2530
  %v2583 = vpack.c.b16 %v2535, %v2531
  %v2584 = vpack.c.b16 %v2536, %v2532
  %v2585 = vpack.c.b16 %v2541, %v2537
  %v2586 = vpack.c.b16 %v2542, %v2538
  %v2587 = vpack.c.b16 %v2543, %v2539
  %v2588 = vpack.c.b16 %v2544, %v2540
  %v2589 = vpack.c.b16 %v2549, %v2545
  %v2590 = vpack.c.b16 %v2550, %v2546
  %v2591 = vpack.c.b16 %v2551, %v2547
  %v2592 = vpack.c.b16 %v2552, %v2548
  %v2593 = vpack.c.b16 %v2557, %v2553
  %v2594 = vpack.c.b16 %v2558, %v2554
  %v2595 = vpack.c.b16 %v2559, %v2555
  %v2596 = vpack.c.b16 %v2560, %v2556
  %v2597 = vpack.c.b16 %v2565, %v2561
  %v2598 = vpack.c.b16 %v2566, %v2562
  %v2599 = vpack.c.b16 %v2567, %v2563
  %v2600 = vpack.c.b16 %v2568, %v2564
  %2633 = vmatprep.subr.bf16.mxu0 %v2570
  %2634 = vmatpush1.bf16.msra.mxu0 %v2569
  %2635 = vmatprep.subr.bf16.mxu0 %v2574
  %2636 = vmatpush1.bf16.msra.mxu0 %v2573
  %2637 = vmatprep.subr.bf16.mxu0 %v2578
  %2638 = vmatpush1.bf16.msra.mxu0 %v2577
  %2639 = vmatprep.subr.bf16.mxu0 %v2582
  %2640 = vmatpush1.bf16.msra.mxu0 %v2581
  %2641 = vmatprep.subr.bf16.mxu0 %v2586
  %2642 = vmatpush1.bf16.msra.mxu0 %v2585
  %2643 = vmatprep.subr.bf16.mxu0 %v2590
  %2644 = vmatpush1.bf16.msra.mxu0 %v2589
  %2645 = vmatprep.subr.bf16.mxu0 %v2594
  %2646 = vmatpush1.bf16.msra.mxu0 %v2593
  %2647 = vmatprep.subr.bf16.mxu0 %v2598
  %2648 = vmatpush1.bf16.msra.mxu0 %v2597
  %2649 = vmatprep.subr.bf16.mxu0 0
  %2650 = vmatpush1.bf16.msra.mxu0 0
  %2651 = vmatprep.subr.bf16.mxu0 0
  %2652 = vmatpush1.bf16.msra.mxu0 0
  %2653 = vmatprep.subr.bf16.mxu0 0
  %2654 = vmatpush1.bf16.msra.mxu0 0
  %2655 = vmatprep.subr.bf16.mxu0 0
  %2656 = vmatpush1.bf16.msra.mxu0 0
  %2657 = vmatprep.subr.bf16.mxu0 0
  %2658 = vmatpush1.bf16.msra.mxu0 0
  %2659 = vmatprep.subr.bf16.mxu0 0
  %2660 = vmatpush1.bf16.msra.mxu0 0
  %2661 = vmatprep.subr.bf16.mxu0 0
  %2662 = vmatpush1.bf16.msra.mxu0 0
  %2663 = vmatprep.subr.bf16.mxu0 0
  %2664 = vmatpush1.bf16.msra.mxu0 0
  %2665 = vmatprep.mubr.bf16.mxu0 0
  %2666 = vmatmul.mubr.bf16.gmra.mrb[0].mxu0 %v2440
  %v2667 = vpop.f32.mrb[0].mxu0
  %v2668 = vadd.f32 0.0, %v2667
  %v2669 = vpop.f32.mrb[0].mxu0
  %v2670 = vadd.f32 0.0, %v2669
  %v2671 = vpop.f32.mrb[0].mxu0
  %v2672 = vpop.f32.mrb[0].mxu0
  %2673 = vdwg.mxu0
  %2674 = vmatprep.subr.bf16.mxu0 %v2572
  %2675 = vmatpush1.bf16.msra.mxu0 %v2571
  %2676 = vmatprep.subr.bf16.mxu0 %v2576
  %2677 = vmatpush1.bf16.msra.mxu0 %v2575
  %2678 = vmatprep.subr.bf16.mxu0 %v2580
  %2679 = vmatpush1.bf16.msra.mxu0 %v2579
  %2680 = vmatprep.subr.bf16.mxu0 %v2584
  %2681 = vmatpush1.bf16.msra.mxu0 %v2583
  %2682 = vmatprep.subr.bf16.mxu0 %v2588
  %2683 = vmatpush1.bf16.msra.mxu0 %v2587
  %2684 = vmatprep.subr.bf16.mxu0 %v2592
  %2685 = vmatpush1.bf16.msra.mxu0 %v2591
  %2686 = vmatprep.subr.bf16.mxu0 %v2596
  %2687 = vmatpush1.bf16.msra.mxu0 %v2595
  %2688 = vmatprep.subr.bf16.mxu0 %v2600
  %2689 = vmatpush1.bf16.msra.mxu0 %v2599
  %2690 = vmatprep.subr.bf16.mxu0 0
  %2691 = vmatpush1.bf16.msra.mxu0 0
  %2692 = vmatprep.subr.bf16.mxu0 0
  %2693 = vmatpush1.bf16.msra.mxu0 0
  %2694 = vmatprep.subr.bf16.mxu0 0
  %2695 = vmatpush1.bf16.msra.mxu0 0
  %2696 = vmatprep.subr.bf16.mxu0 0
  %2697 = vmatpush1.bf16.msra.mxu0 0
  %2698 = vmatprep.subr.bf16.mxu0 0
  %2699 = vmatpush1.bf16.msra.mxu0 0
  %2700 = vmatprep.subr.bf16.mxu0 0
  %2701 = vmatpush1.bf16.msra.mxu0 0
  %2702 = vmatprep.subr.bf16.mxu0 0
  %2703 = vmatpush1.bf16.msra.mxu0 0
  %2704 = vmatprep.subr.bf16.mxu0 0
  %2705 = vmatpush1.bf16.msra.mxu0 0
  %2706 = vmatprep.mubr.bf16.mxu0 0
  %2707 = vmatmul.mubr.bf16.gmra.mrb[0].mxu0 %v2440
  %v2708 = vpop.f32.mrb[0].mxu0
  %v2709 = vadd.f32 0.0, %v2708
  %v2710 = vpop.f32.mrb[0].mxu0
  %v2711 = vadd.f32 0.0, %v2710
  %v2712 = vpop.f32.mrb[0].mxu0
  %v2713 = vpop.f32.mrb[0].mxu0
  %2714 = vdwg.mxu0
  %v2719 = vcombine.low %v2668, %v2670
  %v2720 = vcombine.low %v2709, %v2711
  %v2722 = vunpack.c.l.s4 1983009808
  %v2723 = vunpack.c.0.s8 %v2722
  %v2724 = vlaneseq
  %v2725 = vshrl.u32 %v2724, 7
  %v2726 = vsub.s32 %v2723, %v2725
  %v2727 = vrot.slane %v2719, %v2726
  %v2729 = vunpack.c.l.s4 1983009808
  %v2730 = vunpack.c.0.s8 %v2729
  %v2731 = vlaneseq
  %v2732 = vshrl.u32 %v2731, 7
  %v2733 = vsub.s32 %v2730, %v2732
  %v2734 = vrot.slane %v2720, %v2733
  %v2735 = vcombine.low %v2727, %v2734
  %v2737 = vadd.f32 %v2439, %v2735
  %v2738 = vxor.u32 %v2737, 2147483648
  %v2739 = vmul.f32 %v2738, 1.442695
  %v2740 = vpow.pop %v2739
  %v2741 = vadd.f32 %v2740, 1.0
  %v2742 = vrcp.pop %v2741
  %v2743 = vmul.f32 1.0, %v2742
  %v2745 = vrot.slane %v2737, 2
  %v2747 = vxor.u32 %v2745, 2147483648
  %v2748 = vmul.f32 %v2747, 1.442695
  %v2749 = vpow.pop %v2748
  %v2750 = vadd.f32 %v2749, 1.0
  %v2751 = vrcp.pop %v2750
  %v2752 = vmul.f32 1.0, %v2751
  %v2753 = vrot.slane %v2737, 4
  %v2755 = vtanh.pop %v2753
  %v2756 = vrot.slane %v2737, 6
  %v2758 = vxor.u32 %v2756, 2147483648
  %v2759 = vmul.f32 %v2758, 1.442695
  %v2760 = vpow.pop %v2759
  %v2761 = vadd.f32 %v2760, 1.0
  %v2762 = vrcp.pop %v2761
  %v2763 = vmul.f32 1.0, %v2762
  %v2764 = vmul.f32 %v2752, %v2422
  %v2765 = vmul.f32 %v2743, %v2755
  %v2766 = vadd.f32 %v2764, %v2765
  %v2767 = vtanh.pop %v2766
  %v2768 = vmul.f32 %v2763, %v2767
  %v2771 = vunpack.c.l.s4 1966171168
  %v2772 = vunpack.c.0.s8 %v2771
  %v2773 = vlaneseq
  %v2774 = vshrl.u32 %v2773, 7
  %v2775 = vsub.s32 %v2772, %v2774
  %v2776 = vrot.slane %v2768, %v2775
  %v2777 = vcombine.high %v2776, %v2776
  %2780 = vst [vmem:[%s4 + $0x7] sm:$0x1] %v2776
  %2781 = vst [vmem:[%s4 + $0xf] sm:$0x1] %v2777
  %2782 = vst [vmem:[#allocation2] sm:$0x3] %v2768
  %2783 = vst [vmem:[#allocation3] sm:$0x3] %v2766
  // Predicated region
  $region22: #{lstm_generator_forward.4} parent=0 // pred_check
    %p2784 = pneg %p21
  $region23: #{lstm_generator_forward.4} parent=0 // pred_check_branch
    %2786 = sbr.rel (%p2784) target = $region25
  $region24: #{lstm_generator_forward.4} parent=0 // pred_region
    %2787 = vst [vmem:[%s5] sm:$0x3] %v2768
    %2788 = vst [vmem:[%s6] sm:$0x3] %v2766
  $region25: #{lstm_generator_forward.4} parent=0 // pred_fallthru
    _
  // Predicated region
  $region26: #{lstm_generator_forward.4} parent=0 // pred_check
    _
  $region27: #{lstm_generator_forward.4} parent=0 // pred_check_branch
    %2790 = sbr.rel (0) target = $region29
  $region28: #{lstm_generator_forward.4} parent=0 // pred_region
    _
  $region29: #{lstm_generator_forward.4} parent=0 // pred_fallthru
    _
  // Predicated region
  $region30: #{lstm_generator_forward.4} parent=0 // pred_check
    _
  $region31: #{lstm_generator_forward.4} parent=0 // pred_check_branch
    %2792 = sbr.rel (0) target = $region33
  $region32: #{lstm_generator_forward.4} parent=0 // pred_region
    _
  $region33: #{lstm_generator_forward.4} parent=0 // pred_fallthru
    _
  // Predicated region
  $region34: #{lstm_generator_forward.4} parent=0 // pred_check
    _
  $region35: #{lstm_generator_forward.4} parent=0 // pred_check_branch
    %2794 = sbr.rel (0) target = $region37
  $region36: #{lstm_generator_forward.4} parent=0 // pred_region
    _
  $region37: #{lstm_generator_forward.4} parent=0 // pred_fallthru
    _
  // Predicated region
  $region38: #{lstm_generator_forward.4} parent=0 // pred_check
    _
  $region39: #{lstm_generator_forward.4} parent=0 // pred_check_branch
    %2796 = sbr.rel (0) target = $region41
  $region40: #{lstm_generator_forward.4} parent=0 // pred_region
    _
  $region41: #{lstm_generator_forward.4} parent=0 // pred_fallthru
    _
  // Predicated region
  $region42: #{lstm_generator_forward.4} parent=0 // pred_check
    _
  $region43: #{lstm_generator_forward.4} parent=0 // pred_check_branch
    %2798 = sbr.rel (0) target = $region45
  $region44: #{lstm_generator_forward.4} parent=0 // pred_region
    _
  $region45: #{lstm_generator_forward.4} parent=0 // pred_fallthru
    _
  // Predicated region
  $region46: #{lstm_generator_forward.4} parent=0 // pred_check
    _
  $region47: #{lstm_generator_forward.4} parent=0 // pred_check_branch
    %2800 = sbr.rel (0) target = $region49
  $region48: #{lstm_generator_forward.4} parent=0 // pred_region
    _
  $region49: #{lstm_generator_forward.4} parent=0 // pred_fallthru
    _

</llo_original>
